<compile_context>
chip_gen: v6e
topology: v6e:2x2x1
jax: 0.10.0
libtpu: 0.0.40
codegen_flags: <defaults>
</compile_context>

<pallas_src>
import functools

import jax
import jax.numpy as jnp
import numpy as np
from jax import lax
from jax.experimental import pallas as pl
from jax.experimental.pallas import tpu as pltpu


# ----------------------------- Pallas kernel ------------------------------ #
def _bilstm_layer_kernel(len_ref, x_ref, wih_ref, whh_ref, b_ref,
                         out_ref, hN_ref, cN_ref, gin_ref):
    """One fused bidirectional LSTM layer (both directions in one body).

    len_ref : (Bp, 1)     int32 sequence lengths (0 for batch-pad rows)
    x_ref   : (T*Bp, Din) f32 input, time-major rows [t*Bp + b]
    wih_ref : (Din, 8H)   bf16 input->gates weights [fwd i,f,o,g | bwd i,f,o,g]
    whh_ref : (H, 8H)     bf16 hidden->gates weights, same column layout
    b_ref   : (1, 8H)     f32 combined bias (b_ih + b_hh), same layout
    out_ref : (T*Bp, 2H)  f32 per-step hidden outputs [fwd | bwd], zero at pads
    hN_ref  : (Bp, 2H)    f32 final hidden states [fwd | bwd]
    cN_ref  : (Bp, 2H)    f32 final cell states [fwd | bwd]
    gin_ref : (T*Bp, 8H)  f32 VMEM scratch for the hoisted input projection
    """
    TB = x_ref.shape[0]
    Bp = len_ref.shape[0]
    T = TB // Bp
    H = whh_ref.shape[0]
    G = 4 * H

    # (1) Hoisted input projection for BOTH directions: one MXU matmul with
    #     M = T*Bp, N = 8H, bf16 operands, f32 accumulate, + combined bias.
    gin_ref[...] = (jnp.dot(x_ref[...].astype(jnp.bfloat16), wih_ref[...],
                            preferred_element_type=jnp.float32)
                    + b_ref[...])

    whh = whh_ref[...]                 # hoisted out of the recurrence (bf16)
    whh_f = whh[:, :G]
    whh_b = whh[:, G:]
    lens = len_ref[...]                # (Bp, 1) int32
    zeros = jnp.zeros((Bp, H), jnp.float32)

    def gates(g):
        # Gate order [i, f, o | g]: sigmoid over the first 3H lanes only,
        # tanh over the last H lanes only (halves EUP work per step).
        sg = jax.nn.sigmoid(g[:, :3 * H])
        gg = jnp.tanh(g[:, 3 * H:])
        return sg[:, :H], sg[:, H:2 * H], sg[:, 2 * H:], gg

    def step(s, carry):
        h_f, c_f, h_b, c_b = carry
        tb = T - 1 - s
        row_f = pl.multiple_of(s * Bp, Bp)
        row_b = pl.multiple_of(tb * Bp, Bp)

        # Two INDEPENDENT recurrence matmuls issued back-to-back: they fill
        # the MXU pipeline between the two dependent per-direction chains.
        g_f = gin_ref[pl.ds(row_f, Bp), pl.ds(0, G)] + jnp.dot(
            h_f.astype(jnp.bfloat16), whh_f, preferred_element_type=jnp.float32)
        g_b = gin_ref[pl.ds(row_b, Bp), pl.ds(G, G)] + jnp.dot(
            h_b.astype(jnp.bfloat16), whh_b, preferred_element_type=jnp.float32)

        i_f, f_f, o_f, gg_f = gates(g_f)
        i_b, f_b, o_b, gg_b = gates(g_b)
        c_fn = f_f * c_f + i_f * gg_f
        h_fn = o_f * jnp.tanh(c_fn)
        c_bn = f_b * c_b + i_b * gg_b
        h_bn = o_b * jnp.tanh(c_bn)

        # Packed-sequence masking: broadcast once per direction and reuse.
        m_f = jnp.broadcast_to(lens > s, (Bp, H))
        m_b = jnp.broadcast_to(lens > tb, (Bp, H))

        # Lane-concatenated (fwd | bwd) output written directly by the kernel.
        out_ref[pl.ds(row_f, Bp), pl.ds(0, H)] = jnp.where(m_f, h_fn, zeros)
        out_ref[pl.ds(row_b, Bp), pl.ds(H, H)] = jnp.where(m_b, h_bn, zeros)

        return (jnp.where(m_f, h_fn, h_f), jnp.where(m_f, c_fn, c_f),
                jnp.where(m_b, h_bn, h_b), jnp.where(m_b, c_bn, c_b))

    # TODO(synk): at production T use a modest unroll (4-8) instead of full.
    h_f, c_f, h_b, c_b = lax.fori_loop(0, T, step,
                                       (zeros, zeros, zeros, zeros),
                                       unroll=True)
    hN_ref[:, :H] = h_f
    hN_ref[:, H:] = h_b
    cN_ref[:, :H] = c_f
    cN_ref[:, H:] = c_b


def run_bilstm_layer(x_tbd, wih, whh, bias, lens_col):
    """x_tbd: (T, Bp, Din) f32 time-major.  wih:(Din,8H) whh:(H,8H) bf16."""
    T, Bp, Din = x_tbd.shape
    H = whh.shape[0]
    G2 = whh.shape[1]                  # 8H
    H2 = G2 // 4                       # 2H
    x2d = x_tbd.reshape(T * Bp, Din)   # contiguous -> free reshape

    vmem = pl.BlockSpec(memory_space=pltpu.MemorySpace.VMEM)
    out, hN, cN = pl.pallas_call(
        _bilstm_layer_kernel,
        out_shape=(
            jax.ShapeDtypeStruct((T * Bp, H2), jnp.float32),
            jax.ShapeDtypeStruct((Bp, H2), jnp.float32),
            jax.ShapeDtypeStruct((Bp, H2), jnp.float32),
        ),
        in_specs=[vmem, vmem, vmem, vmem, vmem],
        out_specs=(vmem, vmem, vmem),
        scratch_shapes=[pltpu.VMEM((T * Bp, G2), jnp.float32)],
        # TODO(synk): at production sizes add a T-chunk grid axis with
        # Buffered(2) x/out streaming and set vmem_limit_bytes per chip gen.
    )(lens_col, x2d, wih, whh, bias)

    return out.reshape(T, Bp, H2), hN, cN


# ------------------------------ JAX glue ---------------------------------- #
def init_params(key, index_dim, embedding_dim, hidden_dim, layers):
    keys = jax.random.split(key, 1 + 4 * layers * 2)
    emb = 0.1 * jax.random.normal(keys[0], (index_dim, embedding_dim),
                                  jnp.float32)
    emb = emb.at[0].set(0.0)                  # padding_idx=0
    std = 1.0 / jnp.sqrt(hidden_dim)
    H = hidden_dim
    # Column permutation PyTorch [i,f,g,o] -> kernel [i,f,o,g]
    # (sigmoid gates contiguous, tanh gate last).
    perm = jnp.concatenate([jnp.arange(0, 2 * H),
                            jnp.arange(3 * H, 4 * H),
                            jnp.arange(2 * H, 3 * H)])
    lstm = []
    k = 1
    for l in range(layers):
        in_dim = embedding_dim if l == 0 else 2 * hidden_dim
        wih_cols, whh_cols, b_cols = [], [], []
        for _ in range(2):                    # directions: fwd, bwd
            w_ih = jax.random.uniform(keys[k], (4 * H, in_dim),
                                      jnp.float32, -std, std); k += 1
            w_hh = jax.random.uniform(keys[k], (4 * H, H),
                                      jnp.float32, -std, std); k += 1
            b_ih = jax.random.uniform(keys[k], (4 * H,),
                                      jnp.float32, -std, std); k += 1
            b_hh = jax.random.uniform(keys[k], (4 * H,),
                                      jnp.float32, -std, std); k += 1
            wih_cols.append(w_ih.T[:, perm])           # (in_dim, 4H)
            whh_cols.append(w_hh.T[:, perm])           # (H, 4H)
            b_cols.append((b_ih + b_hh)[perm])
        # Fused per-layer weights: bf16 matmul operands, f32 bias.
        wih = jnp.concatenate(wih_cols, axis=1).astype(jnp.bfloat16)  # (in,8H)
        whh = jnp.concatenate(whh_cols, axis=1).astype(jnp.bfloat16)  # (H, 8H)
        bias = jnp.concatenate(b_cols)[None, :].astype(jnp.float32)   # (1, 8H)
        lstm.append((wih, whh, bias))
    return {"emb": emb, "lstm": lstm}


def encoder_forward(x_ids, params, layers):
    B, T = x_ids.shape
    Bp = ((B + 7) // 8) * 8                   # pad batch to the sublane tile
    ids = jnp.zeros((Bp, T), jnp.int32).at[:B, :].set(x_ids)
    lengths = (ids != 0).astype(jnp.int32).sum(axis=1)       # (Bp,)
    lens_col = lengths[:, None]                              # (Bp, 1) int32

    emb = jnp.take(params["emb"], ids, axis=0)               # (Bp, T, E)
    layer_in = jnp.transpose(emb, (1, 0, 2))                 # (T, Bp, E)

    h_list, c_list = [], []
    for l in range(layers):
        wih, whh, bias = params["lstm"][l]
        H = whh.shape[0]
        out2h, hN, cN = run_bilstm_layer(layer_in, wih, whh, bias, lens_col)
        h_list += [hN[:, :H], hN[:, H:]]
        c_list += [cN[:, :H], cN[:, H:]]
        # Layer output is already the lane-concatenated (T, Bp, 2H) tensor;
        # no wrapper-side concat.  Inter-layer dropout: identity (eval mode).
        layer_in = out2h

    out = jnp.transpose(layer_in, (1, 0, 2))[:B]             # (B, T, 2H)
    h_n = jnp.stack(h_list, axis=0)[:, :B, :]                # (layers*2,B,H)
    c_n = jnp.stack(c_list, axis=0)[:, :B, :]
    # Module-level self.dropout(out): identity in eval mode.
    return out, (h_n, c_n), lengths[:B]


# ------------------------- pure-JAX reference ------------------------------ #
def _lstm_dir_ref(x_tbd, lengths, wih, whh, bias, reverse):
    """wih:(Din,4H) whh:(H,4H) bf16, gate order [i,f,o,g]; bias:(4H,) f32."""
    T, Bp, Din = x_tbd.shape
    H = whh.shape[0]
    gin = (jnp.dot(x_tbd.reshape(T * Bp, Din).astype(jnp.bfloat16), wih,
                   preferred_element_type=jnp.float32)
           .reshape(T, Bp, 4 * H) + bias)

    def step(carry, t):
        h, c = carry
        g = gin[t] + jnp.dot(h.astype(jnp.bfloat16), whh,
                             preferred_element_type=jnp.float32)
        i = jax.nn.sigmoid(g[:, 0 * H:1 * H])
        f = jax.nn.sigmoid(g[:, 1 * H:2 * H])
        o = jax.nn.sigmoid(g[:, 2 * H:3 * H])
        gg = jnp.tanh(g[:, 3 * H:4 * H])
        c_new = f * c + i * gg
        h_new = o * jnp.tanh(c_new)
        m = lengths[:, None] > t
        h = jnp.where(m, h_new, h)
        c = jnp.where(m, c_new, c)
        return (h, c), jnp.where(m, h_new, 0.0)

    ts = jnp.arange(T)[::-1] if reverse else jnp.arange(T)
    (h, c), outs = lax.scan(step, (jnp.zeros((Bp, H), jnp.float32),
                                   jnp.zeros((Bp, H), jnp.float32)), ts)
    out = jnp.zeros((T, Bp, H), jnp.float32).at[ts].set(outs)
    return out, h, c


def encoder_forward_ref(x_ids, params, layers):
    B, T = x_ids.shape
    Bp = ((B + 7) // 8) * 8
    ids = jnp.zeros((Bp, T), jnp.int32).at[:B, :].set(x_ids)
    lengths = (ids != 0).astype(jnp.int32).sum(axis=1)
    emb = jnp.take(params["emb"], ids, axis=0)
    layer_in = jnp.transpose(emb, (1, 0, 2))
    h_list, c_list = [], []
    for l in range(layers):
        wih, whh, bias = params["lstm"][l]
        H = whh.shape[0]
        G = 4 * H
        outs = []
        for d in range(2):
            o, h, c = _lstm_dir_ref(layer_in, lengths,
                                    wih[:, d * G:(d + 1) * G],
                                    whh[:, d * G:(d + 1) * G],
                                    bias[0, d * G:(d + 1) * G],
                                    reverse=(d == 1))
            outs.append(o); h_list.append(h); c_list.append(c)
        layer_in = jnp.concatenate(outs, axis=-1)
    out = jnp.transpose(layer_in, (1, 0, 2))[:B]
    h_n = jnp.stack(h_list, axis=0)[:, :B, :]
    c_n = jnp.stack(c_list, axis=0)[:, :B, :]
    return out, (h_n, c_n), lengths[:B]


# --------------------------------- main ------------------------------------ #
if __name__ == "__main__":
    INDEX_DIM = 50
    EMB_DIM = 32
    HIDDEN_DIM = 32
    LAYERS = 2
    B, T = 2, 8

    key = jax.random.PRNGKey(0)
    k_param, k_tok = jax.random.split(key)
    params = init_params(k_param, INDEX_DIM, EMB_DIM, HIDDEN_DIM, LAYERS)

    # Token ids with trailing padding (0), as pack_padded_sequence assumes.
    tokens = jax.random.randint(k_tok, (B, T), 1, INDEX_DIM, dtype=jnp.int32)
    seq_lens = [T, 5]
    pad_mask = jnp.arange(T)[None, :] < jnp.asarray(seq_lens)[:, None]
    x_ids = jnp.where(pad_mask, tokens, 0)

    fwd = jax.jit(functools.partial(encoder_forward, layers=LAYERS))
    out, (h_n, c_n), lengths = fwd(x_ids, params)
    jax.block_until_ready((out, h_n, c_n))

    # pad_packed_sequence pads only up to max(lengths).
    t_max = int(jax.device_get(lengths).max())
    out = out[:, :t_max, :]

    assert out.shape == (B, t_max, 2 * HIDDEN_DIM)
    assert h_n.shape == (LAYERS * 2, B, HIDDEN_DIM)
    assert c_n.shape == (LAYERS * 2, B, HIDDEN_DIM)

    # Correctness check against a pure-JAX reference of the same semantics
    # (same bf16 matmul operands, f32 state math).
    ref_out, (ref_h, ref_c), _ = encoder_forward_ref(x_ids, params, LAYERS)
    ref_out = ref_out[:, :t_max, :]
    np.testing.assert_allclose(np.asarray(out), np.asarray(ref_out),
                               atol=1e-3, rtol=1e-3)
    np.testing.assert_allclose(np.asarray(h_n), np.asarray(ref_h),
                               atol=1e-3, rtol=1e-3)
    np.testing.assert_allclose(np.asarray(c_n), np.asarray(ref_c),
                               atol=1e-3, rtol=1e-3)
    print("KERNEL_OK")
</pallas_src>

<mosaic_0001>
module attributes {stable_mosaic.version = 11 : i64} {
  func.func @_bilstm_layer_kernel(%arg0: memref<8x1xi32, #tpu.memory_space<vmem>>, %arg1: memref<64x32xf32, #tpu.memory_space<vmem>>, %arg2: memref<32x256xbf16, #tpu.memory_space<vmem>>, %arg3: memref<32x256xbf16, #tpu.memory_space<vmem>>, %arg4: memref<1x256xf32, #tpu.memory_space<vmem>>, %arg5: memref<64x64xf32, #tpu.memory_space<vmem>>, %arg6: memref<8x64xf32, #tpu.memory_space<vmem>>, %arg7: memref<8x64xf32, #tpu.memory_space<vmem>>, %arg8: memref<64x256xf32, #tpu.memory_space<vmem>>) attributes {dimension_semantics = [], scalar_prefetch = 0 : i64, scratch_operands = 1 : i64, tpu.core_type = #tpu.core_type<tc>} {
    %c0 = arith.constant 0 : index
    %c0_0 = arith.constant 0 : index
    %0 = vector.load %arg1[%c0, %c0_0] : memref<64x32xf32, #tpu.memory_space<vmem>>, vector<64x32xf32>
    %1 = arith.truncf %0 : vector<64x32xf32> to vector<64x32xbf16>
    %c0_1 = arith.constant 0 : index
    %c0_2 = arith.constant 0 : index
    %2 = vector.load %arg2[%c0_1, %c0_2] : memref<32x256xbf16, #tpu.memory_space<vmem>>, vector<32x256xbf16>
    %cst = arith.constant dense<0.000000e+00> : vector<64x256xf32>
    %3 = tpu.matmul %1, %2, %cst {dimension_numbers = #tpu.dot_dimension_numbers<[1], [0], [0], [1], [0, 0, 1, 1], [], []>} : vector<64x32xbf16>, vector<32x256xbf16>, vector<64x256xf32> -> vector<64x256xf32>
    %c0_3 = arith.constant 0 : index
    %c0_4 = arith.constant 0 : index
    %4 = vector.load %arg4[%c0_3, %c0_4] : memref<1x256xf32, #tpu.memory_space<vmem>>, vector<1x256xf32>
    %5 = vector.broadcast %4 : vector<1x256xf32> to vector<64x256xf32>
    %6 = arith.addf %3, %5 : vector<64x256xf32>
    %c0_5 = arith.constant 0 : index
    %c0_6 = arith.constant 0 : index
    %7 = vector.load %arg8[%c0_5, %c0_6] : memref<64x256xf32, #tpu.memory_space<vmem>>, vector<64x256xf32>
    tpu.vector_store %arg8[%c0_5, %c0_6], %6 {strides = array<i32>} : memref<64x256xf32, #tpu.memory_space<vmem>>, vector<64x256xf32>,
    %c0_7 = arith.constant 0 : index
    %c0_8 = arith.constant 0 : index
    %8 = vector.load %arg3[%c0_7, %c0_8] : memref<32x256xbf16, #tpu.memory_space<vmem>>, vector<32x256xbf16>
    %9 = vector.extract_strided_slice %8 {offsets = [0, 0], sizes = [32, 128], strides = [1, 1]} : vector<32x256xbf16> to vector<32x128xbf16>
    %10 = vector.extract_strided_slice %8 {offsets = [0, 128], sizes = [32, 128], strides = [1, 1]} : vector<32x256xbf16> to vector<32x128xbf16>
    %c0_9 = arith.constant 0 : index
    %c0_10 = arith.constant 0 : index
    %11 = vector.load %arg0[%c0_9, %c0_10] : memref<8x1xi32, #tpu.memory_space<vmem>>, vector<8x1xi32>
    %cst_11 = arith.constant 0.000000e+00 : f32
    %12 = vector.broadcast %cst_11 : f32 to vector<8x32xf32>
    %c0_i32 = arith.constant 0 : i32
    %c7_i32 = arith.constant 7 : i32
    %13 = arith.subi %c7_i32, %c0_i32 : i32
    %c8_i32 = arith.constant 8 : i32
    %14 = arith.muli %c0_i32, %c8_i32 : i32
    %15 = tpu.assume_multiple %14, 8 : i32
    %c8_i32_12 = arith.constant 8 : i32
    %16 = arith.muli %13, %c8_i32_12 : i32
    %17 = tpu.assume_multiple %16, 8 : i32
    %18 = arith.index_cast %15 : i32 to index
    %c0_13 = arith.constant 0 : index
    %19 = vector.load %arg8[%18, %c0_13] : memref<64x256xf32, #tpu.memory_space<vmem>>, vector<8x128xf32>
    %20 = arith.truncf %12 : vector<8x32xf32> to vector<8x32xbf16>
    %cst_14 = arith.constant dense<0.000000e+00> : vector<8x128xf32>
    %21 = tpu.matmul %20, %9, %cst_14 {dimension_numbers = #tpu.dot_dimension_numbers<[1], [0], [0], [1], [0, 0, 1, 1], [], []>} : vector<8x32xbf16>, vector<32x128xbf16>, vector<8x128xf32> -> vector<8x128xf32>
    %22 = arith.addf %19, %21 : vector<8x128xf32>
    %23 = arith.index_cast %17 : i32 to index
    %c128 = arith.constant 128 : index
    %24 = vector.load %arg8[%23, %c128] : memref<64x256xf32, #tpu.memory_space<vmem>>, vector<8x128xf32>
    %25 = arith.truncf %12 : vector<8x32xf32> to vector<8x32xbf16>
    %cst_15 = arith.constant dense<0.000000e+00> : vector<8x128xf32>
    %26 = tpu.matmul %25, %10, %cst_15 {dimension_numbers = #tpu.dot_dimension_numbers<[1], [0], [0], [1], [0, 0, 1, 1], [], []>} : vector<8x32xbf16>, vector<32x128xbf16>, vector<8x128xf32> -> vector<8x128xf32>
    %27 = arith.addf %24, %26 : vector<8x128xf32>
    %28 = vector.extract_strided_slice %22 {offsets = [0, 0], sizes = [8, 96], strides = [1, 1]} : vector<8x128xf32> to vector<8x96xf32>
    %29 = arith.negf %28 : vector<8x96xf32>
    %30 = math.exp %29 : vector<8x96xf32>
    %cst_16 = arith.constant 1.000000e+00 : f32
    %31 = vector.broadcast %cst_16 : f32 to vector<8x96xf32>
    %32 = arith.addf %31, %30 : vector<8x96xf32>
    %33 = arith.divf %31, %32 : vector<8x96xf32>
    %34 = vector.extract_strided_slice %22 {offsets = [0, 96], sizes = [8, 32], strides = [1, 1]} : vector<8x128xf32> to vector<8x32xf32>
    %35 = math.tanh %34 : vector<8x32xf32>
    %36 = vector.extract_strided_slice %33 {offsets = [0, 0], sizes = [8, 32], strides = [1, 1]} : vector<8x96xf32> to vector<8x32xf32>
    %37 = vector.extract_strided_slice %33 {offsets = [0, 32], sizes = [8, 32], strides = [1, 1]} : vector<8x96xf32> to vector<8x32xf32>
    %38 = vector.extract_strided_slice %33 {offsets = [0, 64], sizes = [8, 32], strides = [1, 1]} : vector<8x96xf32> to vector<8x32xf32>
    %39 = vector.extract_strided_slice %27 {offsets = [0, 0], sizes = [8, 96], strides = [1, 1]} : vector<8x128xf32> to vector<8x96xf32>
    %40 = arith.negf %39 : vector<8x96xf32>
    %41 = math.exp %40 : vector<8x96xf32>
    %cst_17 = arith.constant 1.000000e+00 : f32
    %42 = vector.broadcast %cst_17 : f32 to vector<8x96xf32>
    %43 = arith.addf %42, %41 : vector<8x96xf32>
    %44 = arith.divf %42, %43 : vector<8x96xf32>
    %45 = vector.extract_strided_slice %27 {offsets = [0, 96], sizes = [8, 32], strides = [1, 1]} : vector<8x128xf32> to vector<8x32xf32>
    %46 = math.tanh %45 : vector<8x32xf32>
    %47 = vector.extract_strided_slice %44 {offsets = [0, 0], sizes = [8, 32], strides = [1, 1]} : vector<8x96xf32> to vector<8x32xf32>
    %48 = vector.extract_strided_slice %44 {offsets = [0, 32], sizes = [8, 32], strides = [1, 1]} : vector<8x96xf32> to vector<8x32xf32>
    %49 = vector.extract_strided_slice %44 {offsets = [0, 64], sizes = [8, 32], strides = [1, 1]} : vector<8x96xf32> to vector<8x32xf32>
    %50 = arith.mulf %37, %12 : vector<8x32xf32>
    %51 = arith.mulf %36, %35 : vector<8x32xf32>
    %52 = arith.addf %50, %51 : vector<8x32xf32>
    %53 = math.tanh %52 : vector<8x32xf32>
    %54 = arith.mulf %38, %53 : vector<8x32xf32>
    %55 = arith.mulf %48, %12 : vector<8x32xf32>
    %56 = arith.mulf %47, %46 : vector<8x32xf32>
    %57 = arith.addf %55, %56 : vector<8x32xf32>
    %58 = math.tanh %57 : vector<8x32xf32>
    %59 = arith.mulf %49, %58 : vector<8x32xf32>
    %60 = vector.broadcast %c0_i32 : i32 to vector<8x1xi32>
    %61 = arith.cmpi sgt, %11, %60 : vector<8x1xi32>
    %62 = vector.shape_cast %61 : vector<8x1xi1> to vector<8x1xi1>
    %63 = vector.broadcast %62 : vector<8x1xi1> to vector<8x32xi1>
    %64 = vector.broadcast %13 : i32 to vector<8x1xi32>
    %65 = arith.cmpi sgt, %11, %64 : vector<8x1xi32>
    %66 = vector.shape_cast %65 : vector<8x1xi1> to vector<8x1xi1>
    %67 = vector.broadcast %66 : vector<8x1xi1> to vector<8x32xi1>
    %68 = arith.select %63, %54, %12 : vector<8x32xi1>, vector<8x32xf32>
    %69 = arith.index_cast %15 : i32 to index
    %c0_18 = arith.constant 0 : index
    %70 = vector.load %arg5[%69, %c0_18] : memref<64x64xf32, #tpu.memory_space<vmem>>, vector<8x32xf32>
    tpu.vector_store %arg5[%69, %c0_18], %68 {strides = array<i32>} : memref<64x64xf32, #tpu.memory_space<vmem>>, vector<8x32xf32>,
    %71 = arith.select %67, %59, %12 : vector<8x32xi1>, vector<8x32xf32>
    %72 = arith.index_cast %17 : i32 to index
    %c32 = arith.constant 32 : index
    %73 = vector.load %arg5[%72, %c32] : memref<64x64xf32, #tpu.memory_space<vmem>>, vector<8x32xf32>
    tpu.vector_store %arg5[%72, %c32], %71 {strides = array<i32>} : memref<64x64xf32, #tpu.memory_space<vmem>>, vector<8x32xf32>,
    %74 = arith.select %63, %54, %12 : vector<8x32xi1>, vector<8x32xf32>
    %75 = arith.select %63, %52, %12 : vector<8x32xi1>, vector<8x32xf32>
    %76 = arith.select %67, %59, %12 : vector<8x32xi1>, vector<8x32xf32>
    %77 = arith.select %67, %57, %12 : vector<8x32xi1>, vector<8x32xf32>
    %c1_i32 = arith.constant 1 : i32
    %c7_i32_19 = arith.constant 7 : i32
    %78 = arith.subi %c7_i32_19, %c1_i32 : i32
    %c8_i32_20 = arith.constant 8 : i32
    %79 = arith.muli %c1_i32, %c8_i32_20 : i32
    %80 = tpu.assume_multiple %79, 8 : i32
    %c8_i32_21 = arith.constant 8 : i32
    %81 = arith.muli %78, %c8_i32_21 : i32
    %82 = tpu.assume_multiple %81, 8 : i32
    %83 = arith.index_cast %80 : i32 to index
    %c0_22 = arith.constant 0 : index
    %84 = vector.load %arg8[%83, %c0_22] : memref<64x256xf32, #tpu.memory_space<vmem>>, vector<8x128xf32>
    %85 = arith.truncf %74 : vector<8x32xf32> to vector<8x32xbf16>
    %cst_23 = arith.constant dense<0.000000e+00> : vector<8x128xf32>
    %86 = tpu.matmul %85, %9, %cst_23 {dimension_numbers = #tpu.dot_dimension_numbers<[1], [0], [0], [1], [0, 0, 1, 1], [], []>} : vector<8x32xbf16>, vector<32x128xbf16>, vector<8x128xf32> -> vector<8x128xf32>
    %87 = arith.addf %84, %86 : vector<8x128xf32>
    %88 = arith.index_cast %82 : i32 to index
    %c128_24 = arith.constant 128 : index
    %89 = vector.load %arg8[%88, %c128_24] : memref<64x256xf32, #tpu.memory_space<vmem>>, vector<8x128xf32>
    %90 = arith.truncf %76 : vector<8x32xf32> to vector<8x32xbf16>
    %cst_25 = arith.constant dense<0.000000e+00> : vector<8x128xf32>
    %91 = tpu.matmul %90, %10, %cst_25 {dimension_numbers = #tpu.dot_dimension_numbers<[1], [0], [0], [1], [0, 0, 1, 1], [], []>} : vector<8x32xbf16>, vector<32x128xbf16>, vector<8x128xf32> -> vector<8x128xf32>
    %92 = arith.addf %89, %91 : vector<8x128xf32>
    %93 = vector.extract_strided_slice %87 {offsets = [0, 0], sizes = [8, 96], strides = [1, 1]} : vector<8x128xf32> to vector<8x96xf32>
    %94 = arith.negf %93 : vector<8x96xf32>
    %95 = math.exp %94 : vector<8x96xf32>
    %cst_26 = arith.constant 1.000000e+00 : f32
    %96 = vector.broadcast %cst_26 : f32 to vector<8x96xf32>
    %97 = arith.addf %96, %95 : vector<8x96xf32>
    %98 = arith.divf %96, %97 : vector<8x96xf32>
    %99 = vector.extract_strided_slice %87 {offsets = [0, 96], sizes = [8, 32], strides = [1, 1]} : vector<8x128xf32> to vector<8x32xf32>
    %100 = math.tanh %99 : vector<8x32xf32>
    %101 = vector.extract_strided_slice %98 {offsets = [0, 0], sizes = [8, 32], strides = [1, 1]} : vector<8x96xf32> to vector<8x32xf32>
    %102 = vector.extract_strided_slice %98 {offsets = [0, 32], sizes = [8, 32], strides = [1, 1]} : vector<8x96xf32> to vector<8x32xf32>
    %103 = vector.extract_strided_slice %98 {offsets = [0, 64], sizes = [8, 32], strides = [1, 1]} : vector<8x96xf32> to vector<8x32xf32>
    %104 = vector.extract_strided_slice %92 {offsets = [0, 0], sizes = [8, 96], strides = [1, 1]} : vector<8x128xf32> to vector<8x96xf32>
    %105 = arith.negf %104 : vector<8x96xf32>
    %106 = math.exp %105 : vector<8x96xf32>
    %cst_27 = arith.constant 1.000000e+00 : f32
    %107 = vector.broadcast %cst_27 : f32 to vector<8x96xf32>
    %108 = arith.addf %107, %106 : vector<8x96xf32>
    %109 = arith.divf %107, %108 : vector<8x96xf32>
    %110 = vector.extract_strided_slice %92 {offsets = [0, 96], sizes = [8, 32], strides = [1, 1]} : vector<8x128xf32> to vector<8x32xf32>
    %111 = math.tanh %110 : vector<8x32xf32>
    %112 = vector.extract_strided_slice %109 {offsets = [0, 0], sizes = [8, 32], strides = [1, 1]} : vector<8x96xf32> to vector<8x32xf32>
    %113 = vector.extract_strided_slice %109 {offsets = [0, 32], sizes = [8, 32], strides = [1, 1]} : vector<8x96xf32> to vector<8x32xf32>
    %114 = vector.extract_strided_slice %109 {offsets = [0, 64], sizes = [8, 32], strides = [1, 1]} : vector<8x96xf32> to vector<8x32xf32>
    %115 = arith.mulf %102, %75 : vector<8x32xf32>
    %116 = arith.mulf %101, %100 : vector<8x32xf32>
    %117 = arith.addf %115, %116 : vector<8x32xf32>
    %118 = math.tanh %117 : vector<8x32xf32>
    %119 = arith.mulf %103, %118 : vector<8x32xf32>
    %120 = arith.mulf %113, %77 : vector<8x32xf32>
    %121 = arith.mulf %112, %111 : vector<8x32xf32>
    %122 = arith.addf %120, %121 : vector<8x32xf32>
    %123 = math.tanh %122 : vector<8x32xf32>
    %124 = arith.mulf %114, %123 : vector<8x32xf32>
    %125 = vector.broadcast %c1_i32 : i32 to vector<8x1xi32>
    %126 = arith.cmpi sgt, %11, %125 : vector<8x1xi32>
    %127 = vector.shape_cast %126 : vector<8x1xi1> to vector<8x1xi1>
    %128 = vector.broadcast %127 : vector<8x1xi1> to vector<8x32xi1>
    %129 = vector.broadcast %78 : i32 to vector<8x1xi32>
    %130 = arith.cmpi sgt, %11, %129 : vector<8x1xi32>
    %131 = vector.shape_cast %130 : vector<8x1xi1> to vector<8x1xi1>
    %132 = vector.broadcast %131 : vector<8x1xi1> to vector<8x32xi1>
    %133 = arith.select %128, %119, %12 : vector<8x32xi1>, vector<8x32xf32>
    %134 = arith.index_cast %80 : i32 to index
    %c0_28 = arith.constant 0 : index
    %135 = vector.load %arg5[%134, %c0_28] : memref<64x64xf32, #tpu.memory_space<vmem>>, vector<8x32xf32>
    tpu.vector_store %arg5[%134, %c0_28], %133 {strides = array<i32>} : memref<64x64xf32, #tpu.memory_space<vmem>>, vector<8x32xf32>,
    %136 = arith.select %132, %124, %12 : vector<8x32xi1>, vector<8x32xf32>
    %137 = arith.index_cast %82 : i32 to index
    %c32_29 = arith.constant 32 : index
    %138 = vector.load %arg5[%137, %c32_29] : memref<64x64xf32, #tpu.memory_space<vmem>>, vector<8x32xf32>
    tpu.vector_store %arg5[%137, %c32_29], %136 {strides = array<i32>} : memref<64x64xf32, #tpu.memory_space<vmem>>, vector<8x32xf32>,
    %139 = arith.select %128, %119, %74 : vector<8x32xi1>, vector<8x32xf32>
    %140 = arith.select %128, %117, %75 : vector<8x32xi1>, vector<8x32xf32>
    %141 = arith.select %132, %124, %76 : vector<8x32xi1>, vector<8x32xf32>
    %142 = arith.select %132, %122, %77 : vector<8x32xi1>, vector<8x32xf32>
    %c2_i32 = arith.constant 2 : i32
    %c7_i32_30 = arith.constant 7 : i32
    %143 = arith.subi %c7_i32_30, %c2_i32 : i32
    %c8_i32_31 = arith.constant 8 : i32
    %144 = arith.muli %c2_i32, %c8_i32_31 : i32
    %145 = tpu.assume_multiple %144, 8 : i32
    %c8_i32_32 = arith.constant 8 : i32
    %146 = arith.muli %143, %c8_i32_32 : i32
    %147 = tpu.assume_multiple %146, 8 : i32
    %148 = arith.index_cast %145 : i32 to index
    %c0_33 = arith.constant 0 : index
    %149 = vector.load %arg8[%148, %c0_33] : memref<64x256xf32, #tpu.memory_space<vmem>>, vector<8x128xf32>
    %150 = arith.truncf %139 : vector<8x32xf32> to vector<8x32xbf16>
    %cst_34 = arith.constant dense<0.000000e+00> : vector<8x128xf32>
    %151 = tpu.matmul %150, %9, %cst_34 {dimension_numbers = #tpu.dot_dimension_numbers<[1], [0], [0], [1], [0, 0, 1, 1], [], []>} : vector<8x32xbf16>, vector<32x128xbf16>, vector<8x128xf32> -> vector<8x128xf32>
    %152 = arith.addf %149, %151 : vector<8x128xf32>
    %153 = arith.index_cast %147 : i32 to index
    %c128_35 = arith.constant 128 : index
    %154 = vector.load %arg8[%153, %c128_35] : memref<64x256xf32, #tpu.memory_space<vmem>>, vector<8x128xf32>
    %155 = arith.truncf %141 : vector<8x32xf32> to vector<8x32xbf16>
    %cst_36 = arith.constant dense<0.000000e+00> : vector<8x128xf32>
    %156 = tpu.matmul %155, %10, %cst_36 {dimension_numbers = #tpu.dot_dimension_numbers<[1], [0], [0], [1], [0, 0, 1, 1], [], []>} : vector<8x32xbf16>, vector<32x128xbf16>, vector<8x128xf32> -> vector<8x128xf32>
    %157 = arith.addf %154, %156 : vector<8x128xf32>
    %158 = vector.extract_strided_slice %152 {offsets = [0, 0], sizes = [8, 96], strides = [1, 1]} : vector<8x128xf32> to vector<8x96xf32>
    %159 = arith.negf %158 : vector<8x96xf32>
    %160 = math.exp %159 : vector<8x96xf32>
    %cst_37 = arith.constant 1.000000e+00 : f32
    %161 = vector.broadcast %cst_37 : f32 to vector<8x96xf32>
    %162 = arith.addf %161, %160 : vector<8x96xf32>
    %163 = arith.divf %161, %162 : vector<8x96xf32>
    %164 = vector.extract_strided_slice %152 {offsets = [0, 96], sizes = [8, 32], strides = [1, 1]} : vector<8x128xf32> to vector<8x32xf32>
    %165 = math.tanh %164 : vector<8x32xf32>
    %166 = vector.extract_strided_slice %163 {offsets = [0, 0], sizes = [8, 32], strides = [1, 1]} : vector<8x96xf32> to vector<8x32xf32>
    %167 = vector.extract_strided_slice %163 {offsets = [0, 32], sizes = [8, 32], strides = [1, 1]} : vector<8x96xf32> to vector<8x32xf32>
    %168 = vector.extract_strided_slice %163 {offsets = [0, 64], sizes = [8, 32], strides = [1, 1]} : vector<8x96xf32> to vector<8x32xf32>
    %169 = vector.extract_strided_slice %157 {offsets = [0, 0], sizes = [8, 96], strides = [1, 1]} : vector<8x128xf32> to vector<8x96xf32>
    %170 = arith.negf %169 : vector<8x96xf32>
    %171 = math.exp %170 : vector<8x96xf32>
    %cst_38 = arith.constant 1.000000e+00 : f32
    %172 = vector.broadcast %cst_38 : f32 to vector<8x96xf32>
    %173 = arith.addf %172, %171 : vector<8x96xf32>
    %174 = arith.divf %172, %173 : vector<8x96xf32>
    %175 = vector.extract_strided_slice %157 {offsets = [0, 96], sizes = [8, 32], strides = [1, 1]} : vector<8x128xf32> to vector<8x32xf32>
    %176 = math.tanh %175 : vector<8x32xf32>
    %177 = vector.extract_strided_slice %174 {offsets = [0, 0], sizes = [8, 32], strides = [1, 1]} : vector<8x96xf32> to vector<8x32xf32>
    %178 = vector.extract_strided_slice %174 {offsets = [0, 32], sizes = [8, 32], strides = [1, 1]} : vector<8x96xf32> to vector<8x32xf32>
    %179 = vector.extract_strided_slice %174 {offsets = [0, 64], sizes = [8, 32], strides = [1, 1]} : vector<8x96xf32> to vector<8x32xf32>
    %180 = arith.mulf %167, %140 : vector<8x32xf32>
    %181 = arith.mulf %166, %165 : vector<8x32xf32>
    %182 = arith.addf %180, %181 : vector<8x32xf32>
    %183 = math.tanh %182 : vector<8x32xf32>
    %184 = arith.mulf %168, %183 : vector<8x32xf32>
    %185 = arith.mulf %178, %142 : vector<8x32xf32>
    %186 = arith.mulf %177, %176 : vector<8x32xf32>
    %187 = arith.addf %185, %186 : vector<8x32xf32>
    %188 = math.tanh %187 : vector<8x32xf32>
    %189 = arith.mulf %179, %188 : vector<8x32xf32>
    %190 = vector.broadcast %c2_i32 : i32 to vector<8x1xi32>
    %191 = arith.cmpi sgt, %11, %190 : vector<8x1xi32>
    %192 = vector.shape_cast %191 : vector<8x1xi1> to vector<8x1xi1>
    %193 = vector.broadcast %192 : vector<8x1xi1> to vector<8x32xi1>
    %194 = vector.broadcast %143 : i32 to vector<8x1xi32>
    %195 = arith.cmpi sgt, %11, %194 : vector<8x1xi32>
    %196 = vector.shape_cast %195 : vector<8x1xi1> to vector<8x1xi1>
    %197 = vector.broadcast %196 : vector<8x1xi1> to vector<8x32xi1>
    %198 = arith.select %193, %184, %12 : vector<8x32xi1>, vector<8x32xf32>
    %199 = arith.index_cast %145 : i32 to index
    %c0_39 = arith.constant 0 : index
    %200 = vector.load %arg5[%199, %c0_39] : memref<64x64xf32, #tpu.memory_space<vmem>>, vector<8x32xf32>
    tpu.vector_store %arg5[%199, %c0_39], %198 {strides = array<i32>} : memref<64x64xf32, #tpu.memory_space<vmem>>, vector<8x32xf32>,
    %201 = arith.select %197, %189, %12 : vector<8x32xi1>, vector<8x32xf32>
    %202 = arith.index_cast %147 : i32 to index
    %c32_40 = arith.constant 32 : index
    %203 = vector.load %arg5[%202, %c32_40] : memref<64x64xf32, #tpu.memory_space<vmem>>, vector<8x32xf32>
    tpu.vector_store %arg5[%202, %c32_40], %201 {strides = array<i32>} : memref<64x64xf32, #tpu.memory_space<vmem>>, vector<8x32xf32>,
    %204 = arith.select %193, %184, %139 : vector<8x32xi1>, vector<8x32xf32>
    %205 = arith.select %193, %182, %140 : vector<8x32xi1>, vector<8x32xf32>
    %206 = arith.select %197, %189, %141 : vector<8x32xi1>, vector<8x32xf32>
    %207 = arith.select %197, %187, %142 : vector<8x32xi1>, vector<8x32xf32>
    %c3_i32 = arith.constant 3 : i32
    %c7_i32_41 = arith.constant 7 : i32
    %208 = arith.subi %c7_i32_41, %c3_i32 : i32
    %c8_i32_42 = arith.constant 8 : i32
    %209 = arith.muli %c3_i32, %c8_i32_42 : i32
    %210 = tpu.assume_multiple %209, 8 : i32
    %c8_i32_43 = arith.constant 8 : i32
    %211 = arith.muli %208, %c8_i32_43 : i32
    %212 = tpu.assume_multiple %211, 8 : i32
    %213 = arith.index_cast %210 : i32 to index
    %c0_44 = arith.constant 0 : index
    %214 = vector.load %arg8[%213, %c0_44] : memref<64x256xf32, #tpu.memory_space<vmem>>, vector<8x128xf32>
    %215 = arith.truncf %204 : vector<8x32xf32> to vector<8x32xbf16>
    %cst_45 = arith.constant dense<0.000000e+00> : vector<8x128xf32>
    %216 = tpu.matmul %215, %9, %cst_45 {dimension_numbers = #tpu.dot_dimension_numbers<[1], [0], [0], [1], [0, 0, 1, 1], [], []>} : vector<8x32xbf16>, vector<32x128xbf16>, vector<8x128xf32> -> vector<8x128xf32>
    %217 = arith.addf %214, %216 : vector<8x128xf32>
    %218 = arith.index_cast %212 : i32 to index
    %c128_46 = arith.constant 128 : index
    %219 = vector.load %arg8[%218, %c128_46] : memref<64x256xf32, #tpu.memory_space<vmem>>, vector<8x128xf32>
    %220 = arith.truncf %206 : vector<8x32xf32> to vector<8x32xbf16>
    %cst_47 = arith.constant dense<0.000000e+00> : vector<8x128xf32>
    %221 = tpu.matmul %220, %10, %cst_47 {dimension_numbers = #tpu.dot_dimension_numbers<[1], [0], [0], [1], [0, 0, 1, 1], [], []>} : vector<8x32xbf16>, vector<32x128xbf16>, vector<8x128xf32> -> vector<8x128xf32>
    %222 = arith.addf %219, %221 : vector<8x128xf32>
    %223 = vector.extract_strided_slice %217 {offsets = [0, 0], sizes = [8, 96], strides = [1, 1]} : vector<8x128xf32> to vector<8x96xf32>
    %224 = arith.negf %223 : vector<8x96xf32>
    %225 = math.exp %224 : vector<8x96xf32>
    %cst_48 = arith.constant 1.000000e+00 : f32
    %226 = vector.broadcast %cst_48 : f32 to vector<8x96xf32>
    %227 = arith.addf %226, %225 : vector<8x96xf32>
    %228 = arith.divf %226, %227 : vector<8x96xf32>
    %229 = vector.extract_strided_slice %217 {offsets = [0, 96], sizes = [8, 32], strides = [1, 1]} : vector<8x128xf32> to vector<8x32xf32>
    %230 = math.tanh %229 : vector<8x32xf32>
    %231 = vector.extract_strided_slice %228 {offsets = [0, 0], sizes = [8, 32], strides = [1, 1]} : vector<8x96xf32> to vector<8x32xf32>
    %232 = vector.extract_strided_slice %228 {offsets = [0, 32], sizes = [8, 32], strides = [1, 1]} : vector<8x96xf32> to vector<8x32xf32>
    %233 = vector.extract_strided_slice %228 {offsets = [0, 64], sizes = [8, 32], strides = [1, 1]} : vector<8x96xf32> to vector<8x32xf32>
    %234 = vector.extract_strided_slice %222 {offsets = [0, 0], sizes = [8, 96], strides = [1, 1]} : vector<8x128xf32> to vector<8x96xf32>
    %235 = arith.negf %234 : vector<8x96xf32>
    %236 = math.exp %235 : vector<8x96xf32>
    %cst_49 = arith.constant 1.000000e+00 : f32
    %237 = vector.broadcast %cst_49 : f32 to vector<8x96xf32>
    %238 = arith.addf %237, %236 : vector<8x96xf32>
    %239 = arith.divf %237, %238 : vector<8x96xf32>
    %240 = vector.extract_strided_slice %222 {offsets = [0, 96], sizes = [8, 32], strides = [1, 1]} : vector<8x128xf32> to vector<8x32xf32>
    %241 = math.tanh %240 : vector<8x32xf32>
    %242 = vector.extract_strided_slice %239 {offsets = [0, 0], sizes = [8, 32], strides = [1, 1]} : vector<8x96xf32> to vector<8x32xf32>
    %243 = vector.extract_strided_slice %239 {offsets = [0, 32], sizes = [8, 32], strides = [1, 1]} : vector<8x96xf32> to vector<8x32xf32>
    %244 = vector.extract_strided_slice %239 {offsets = [0, 64], sizes = [8, 32], strides = [1, 1]} : vector<8x96xf32> to vector<8x32xf32>
    %245 = arith.mulf %232, %205 : vector<8x32xf32>
    %246 = arith.mulf %231, %230 : vector<8x32xf32>
    %247 = arith.addf %245, %246 : vector<8x32xf32>
    %248 = math.tanh %247 : vector<8x32xf32>
    %249 = arith.mulf %233, %248 : vector<8x32xf32>
    %250 = arith.mulf %243, %207 : vector<8x32xf32>
    %251 = arith.mulf %242, %241 : vector<8x32xf32>
    %252 = arith.addf %250, %251 : vector<8x32xf32>
    %253 = math.tanh %252 : vector<8x32xf32>
    %254 = arith.mulf %244, %253 : vector<8x32xf32>
    %255 = vector.broadcast %c3_i32 : i32 to vector<8x1xi32>
    %256 = arith.cmpi sgt, %11, %255 : vector<8x1xi32>
    %257 = vector.shape_cast %256 : vector<8x1xi1> to vector<8x1xi1>
    %258 = vector.broadcast %257 : vector<8x1xi1> to vector<8x32xi1>
    %259 = vector.broadcast %208 : i32 to vector<8x1xi32>
    %260 = arith.cmpi sgt, %11, %259 : vector<8x1xi32>
    %261 = vector.shape_cast %260 : vector<8x1xi1> to vector<8x1xi1>
    %262 = vector.broadcast %261 : vector<8x1xi1> to vector<8x32xi1>
    %263 = arith.select %258, %249, %12 : vector<8x32xi1>, vector<8x32xf32>
    %264 = arith.index_cast %210 : i32 to index
    %c0_50 = arith.constant 0 : index
    %265 = vector.load %arg5[%264, %c0_50] : memref<64x64xf32, #tpu.memory_space<vmem>>, vector<8x32xf32>
    tpu.vector_store %arg5[%264, %c0_50], %263 {strides = array<i32>} : memref<64x64xf32, #tpu.memory_space<vmem>>, vector<8x32xf32>,
    %266 = arith.select %262, %254, %12 : vector<8x32xi1>, vector<8x32xf32>
    %267 = arith.index_cast %212 : i32 to index
    %c32_51 = arith.constant 32 : index
    %268 = vector.load %arg5[%267, %c32_51] : memref<64x64xf32, #tpu.memory_space<vmem>>, vector<8x32xf32>
    tpu.vector_store %arg5[%267, %c32_51], %266 {strides = array<i32>} : memref<64x64xf32, #tpu.memory_space<vmem>>, vector<8x32xf32>,
    %269 = arith.select %258, %249, %204 : vector<8x32xi1>, vector<8x32xf32>
    %270 = arith.select %258, %247, %205 : vector<8x32xi1>, vector<8x32xf32>
    %271 = arith.select %262, %254, %206 : vector<8x32xi1>, vector<8x32xf32>
    %272 = arith.select %262, %252, %207 : vector<8x32xi1>, vector<8x32xf32>
    %c4_i32 = arith.constant 4 : i32
    %c7_i32_52 = arith.constant 7 : i32
    %273 = arith.subi %c7_i32_52, %c4_i32 : i32
    %c8_i32_53 = arith.constant 8 : i32
    %274 = arith.muli %c4_i32, %c8_i32_53 : i32
    %275 = tpu.assume_multiple %274, 8 : i32
    %c8_i32_54 = arith.constant 8 : i32
    %276 = arith.muli %273, %c8_i32_54 : i32
    %277 = tpu.assume_multiple %276, 8 : i32
    %278 = arith.index_cast %275 : i32 to index
    %c0_55 = arith.constant 0 : index
    %279 = vector.load %arg8[%278, %c0_55] : memref<64x256xf32, #tpu.memory_space<vmem>>, vector<8x128xf32>
    %280 = arith.truncf %269 : vector<8x32xf32> to vector<8x32xbf16>
    %cst_56 = arith.constant dense<0.000000e+00> : vector<8x128xf32>
    %281 = tpu.matmul %280, %9, %cst_56 {dimension_numbers = #tpu.dot_dimension_numbers<[1], [0], [0], [1], [0, 0, 1, 1], [], []>} : vector<8x32xbf16>, vector<32x128xbf16>, vector<8x128xf32> -> vector<8x128xf32>
    %282 = arith.addf %279, %281 : vector<8x128xf32>
    %283 = arith.index_cast %277 : i32 to index
    %c128_57 = arith.constant 128 : index
    %284 = vector.load %arg8[%283, %c128_57] : memref<64x256xf32, #tpu.memory_space<vmem>>, vector<8x128xf32>
    %285 = arith.truncf %271 : vector<8x32xf32> to vector<8x32xbf16>
    %cst_58 = arith.constant dense<0.000000e+00> : vector<8x128xf32>
    %286 = tpu.matmul %285, %10, %cst_58 {dimension_numbers = #tpu.dot_dimension_numbers<[1], [0], [0], [1], [0, 0, 1, 1], [], []>} : vector<8x32xbf16>, vector<32x128xbf16>, vector<8x128xf32> -> vector<8x128xf32>
    %287 = arith.addf %284, %286 : vector<8x128xf32>
    %288 = vector.extract_strided_slice %282 {offsets = [0, 0], sizes = [8, 96], strides = [1, 1]} : vector<8x128xf32> to vector<8x96xf32>
    %289 = arith.negf %288 : vector<8x96xf32>
    %290 = math.exp %289 : vector<8x96xf32>
    %cst_59 = arith.constant 1.000000e+00 : f32
    %291 = vector.broadcast %cst_59 : f32 to vector<8x96xf32>
    %292 = arith.addf %291, %290 : vector<8x96xf32>
    %293 = arith.divf %291, %292 : vector<8x96xf32>
    %294 = vector.extract_strided_slice %282 {offsets = [0, 96], sizes = [8, 32], strides = [1, 1]} : vector<8x128xf32> to vector<8x32xf32>
    %295 = math.tanh %294 : vector<8x32xf32>
    %296 = vector.extract_strided_slice %293 {offsets = [0, 0], sizes = [8, 32], strides = [1, 1]} : vector<8x96xf32> to vector<8x32xf32>
    %297 = vector.extract_strided_slice %293 {offsets = [0, 32], sizes = [8, 32], strides = [1, 1]} : vector<8x96xf32> to vector<8x32xf32>
    %298 = vector.extract_strided_slice %293 {offsets = [0, 64], sizes = [8, 32], strides = [1, 1]} : vector<8x96xf32> to vector<8x32xf32>
    %299 = vector.extract_strided_slice %287 {offsets = [0, 0], sizes = [8, 96], strides = [1, 1]} : vector<8x128xf32> to vector<8x96xf32>
    %300 = arith.negf %299 : vector<8x96xf32>
    %301 = math.exp %300 : vector<8x96xf32>
    %cst_60 = arith.constant 1.000000e+00 : f32
    %302 = vector.broadcast %cst_60 : f32 to vector<8x96xf32>
    %303 = arith.addf %302, %301 : vector<8x96xf32>
    %304 = arith.divf %302, %303 : vector<8x96xf32>
    %305 = vector.extract_strided_slice %287 {offsets = [0, 96], sizes = [8, 32], strides = [1, 1]} : vector<8x128xf32> to vector<8x32xf32>
    %306 = math.tanh %305 : vector<8x32xf32>
    %307 = vector.extract_strided_slice %304 {offsets = [0, 0], sizes = [8, 32], strides = [1, 1]} : vector<8x96xf32> to vector<8x32xf32>
    %308 = vector.extract_strided_slice %304 {offsets = [0, 32], sizes = [8, 32], strides = [1, 1]} : vector<8x96xf32> to vector<8x32xf32>
    %309 = vector.extract_strided_slice %304 {offsets = [0, 64], sizes = [8, 32], strides = [1, 1]} : vector<8x96xf32> to vector<8x32xf32>
    %310 = arith.mulf %297, %270 : vector<8x32xf32>
    %311 = arith.mulf %296, %295 : vector<8x32xf32>
    %312 = arith.addf %310, %311 : vector<8x32xf32>
    %313 = math.tanh %312 : vector<8x32xf32>
    %314 = arith.mulf %298, %313 : vector<8x32xf32>
    %315 = arith.mulf %308, %272 : vector<8x32xf32>
    %316 = arith.mulf %307, %306 : vector<8x32xf32>
    %317 = arith.addf %315, %316 : vector<8x32xf32>
    %318 = math.tanh %317 : vector<8x32xf32>
    %319 = arith.mulf %309, %318 : vector<8x32xf32>
    %320 = vector.broadcast %c4_i32 : i32 to vector<8x1xi32>
    %321 = arith.cmpi sgt, %11, %320 : vector<8x1xi32>
    %322 = vector.shape_cast %321 : vector<8x1xi1> to vector<8x1xi1>
    %323 = vector.broadcast %322 : vector<8x1xi1> to vector<8x32xi1>
    %324 = vector.broadcast %273 : i32 to vector<8x1xi32>
    %325 = arith.cmpi sgt, %11, %324 : vector<8x1xi32>
    %326 = vector.shape_cast %325 : vector<8x1xi1> to vector<8x1xi1>
    %327 = vector.broadcast %326 : vector<8x1xi1> to vector<8x32xi1>
    %328 = arith.select %323, %314, %12 : vector<8x32xi1>, vector<8x32xf32>
    %329 = arith.index_cast %275 : i32 to index
    %c0_61 = arith.constant 0 : index
    %330 = vector.load %arg5[%329, %c0_61] : memref<64x64xf32, #tpu.memory_space<vmem>>, vector<8x32xf32>
    tpu.vector_store %arg5[%329, %c0_61], %328 {strides = array<i32>} : memref<64x64xf32, #tpu.memory_space<vmem>>, vector<8x32xf32>,
    %331 = arith.select %327, %319, %12 : vector<8x32xi1>, vector<8x32xf32>
    %332 = arith.index_cast %277 : i32 to index
    %c32_62 = arith.constant 32 : index
    %333 = vector.load %arg5[%332, %c32_62] : memref<64x64xf32, #tpu.memory_space<vmem>>, vector<8x32xf32>
    tpu.vector_store %arg5[%332, %c32_62], %331 {strides = array<i32>} : memref<64x64xf32, #tpu.memory_space<vmem>>, vector<8x32xf32>,
    %334 = arith.select %323, %314, %269 : vector<8x32xi1>, vector<8x32xf32>
    %335 = arith.select %323, %312, %270 : vector<8x32xi1>, vector<8x32xf32>
    %336 = arith.select %327, %319, %271 : vector<8x32xi1>, vector<8x32xf32>
    %337 = arith.select %327, %317, %272 : vector<8x32xi1>, vector<8x32xf32>
    %c5_i32 = arith.constant 5 : i32
    %c7_i32_63 = arith.constant 7 : i32
    %338 = arith.subi %c7_i32_63, %c5_i32 : i32
    %c8_i32_64 = arith.constant 8 : i32
    %339 = arith.muli %c5_i32, %c8_i32_64 : i32
    %340 = tpu.assume_multiple %339, 8 : i32
    %c8_i32_65 = arith.constant 8 : i32
    %341 = arith.muli %338, %c8_i32_65 : i32
    %342 = tpu.assume_multiple %341, 8 : i32
    %343 = arith.index_cast %340 : i32 to index
    %c0_66 = arith.constant 0 : index
    %344 = vector.load %arg8[%343, %c0_66] : memref<64x256xf32, #tpu.memory_space<vmem>>, vector<8x128xf32>
    %345 = arith.truncf %334 : vector<8x32xf32> to vector<8x32xbf16>
    %cst_67 = arith.constant dense<0.000000e+00> : vector<8x128xf32>
    %346 = tpu.matmul %345, %9, %cst_67 {dimension_numbers = #tpu.dot_dimension_numbers<[1], [0], [0], [1], [0, 0, 1, 1], [], []>} : vector<8x32xbf16>, vector<32x128xbf16>, vector<8x128xf32> -> vector<8x128xf32>
    %347 = arith.addf %344, %346 : vector<8x128xf32>
    %348 = arith.index_cast %342 : i32 to index
    %c128_68 = arith.constant 128 : index
    %349 = vector.load %arg8[%348, %c128_68] : memref<64x256xf32, #tpu.memory_space<vmem>>, vector<8x128xf32>
    %350 = arith.truncf %336 : vector<8x32xf32> to vector<8x32xbf16>
    %cst_69 = arith.constant dense<0.000000e+00> : vector<8x128xf32>
    %351 = tpu.matmul %350, %10, %cst_69 {dimension_numbers = #tpu.dot_dimension_numbers<[1], [0], [0], [1], [0, 0, 1, 1], [], []>} : vector<8x32xbf16>, vector<32x128xbf16>, vector<8x128xf32> -> vector<8x128xf32>
    %352 = arith.addf %349, %351 : vector<8x128xf32>
    %353 = vector.extract_strided_slice %347 {offsets = [0, 0], sizes = [8, 96], strides = [1, 1]} : vector<8x128xf32> to vector<8x96xf32>
    %354 = arith.negf %353 : vector<8x96xf32>
    %355 = math.exp %354 : vector<8x96xf32>
    %cst_70 = arith.constant 1.000000e+00 : f32
    %356 = vector.broadcast %cst_70 : f32 to vector<8x96xf32>
    %357 = arith.addf %356, %355 : vector<8x96xf32>
    %358 = arith.divf %356, %357 : vector<8x96xf32>
    %359 = vector.extract_strided_slice %347 {offsets = [0, 96], sizes = [8, 32], strides = [1, 1]} : vector<8x128xf32> to vector<8x32xf32>
    %360 = math.tanh %359 : vector<8x32xf32>
    %361 = vector.extract_strided_slice %358 {offsets = [0, 0], sizes = [8, 32], strides = [1, 1]} : vector<8x96xf32> to vector<8x32xf32>
    %362 = vector.extract_strided_slice %358 {offsets = [0, 32], sizes = [8, 32], strides = [1, 1]} : vector<8x96xf32> to vector<8x32xf32>
    %363 = vector.extract_strided_slice %358 {offsets = [0, 64], sizes = [8, 32], strides = [1, 1]} : vector<8x96xf32> to vector<8x32xf32>
    %364 = vector.extract_strided_slice %352 {offsets = [0, 0], sizes = [8, 96], strides = [1, 1]} : vector<8x128xf32> to vector<8x96xf32>
    %365 = arith.negf %364 : vector<8x96xf32>
    %366 = math.exp %365 : vector<8x96xf32>
    %cst_71 = arith.constant 1.000000e+00 : f32
    %367 = vector.broadcast %cst_71 : f32 to vector<8x96xf32>
    %368 = arith.addf %367, %366 : vector<8x96xf32>
    %369 = arith.divf %367, %368 : vector<8x96xf32>
    %370 = vector.extract_strided_slice %352 {offsets = [0, 96], sizes = [8, 32], strides = [1, 1]} : vector<8x128xf32> to vector<8x32xf32>
    %371 = math.tanh %370 : vector<8x32xf32>
    %372 = vector.extract_strided_slice %369 {offsets = [0, 0], sizes = [8, 32], strides = [1, 1]} : vector<8x96xf32> to vector<8x32xf32>
    %373 = vector.extract_strided_slice %369 {offsets = [0, 32], sizes = [8, 32], strides = [1, 1]} : vector<8x96xf32> to vector<8x32xf32>
    %374 = vector.extract_strided_slice %369 {offsets = [0, 64], sizes = [8, 32], strides = [1, 1]} : vector<8x96xf32> to vector<8x32xf32>
    %375 = arith.mulf %362, %335 : vector<8x32xf32>
    %376 = arith.mulf %361, %360 : vector<8x32xf32>
    %377 = arith.addf %375, %376 : vector<8x32xf32>
    %378 = math.tanh %377 : vector<8x32xf32>
    %379 = arith.mulf %363, %378 : vector<8x32xf32>
    %380 = arith.mulf %373, %337 : vector<8x32xf32>
    %381 = arith.mulf %372, %371 : vector<8x32xf32>
    %382 = arith.addf %380, %381 : vector<8x32xf32>
    %383 = math.tanh %382 : vector<8x32xf32>
    %384 = arith.mulf %374, %383 : vector<8x32xf32>
    %385 = vector.broadcast %c5_i32 : i32 to vector<8x1xi32>
    %386 = arith.cmpi sgt, %11, %385 : vector<8x1xi32>
    %387 = vector.shape_cast %386 : vector<8x1xi1> to vector<8x1xi1>
    %388 = vector.broadcast %387 : vector<8x1xi1> to vector<8x32xi1>
    %389 = vector.broadcast %338 : i32 to vector<8x1xi32>
    %390 = arith.cmpi sgt, %11, %389 : vector<8x1xi32>
    %391 = vector.shape_cast %390 : vector<8x1xi1> to vector<8x1xi1>
    %392 = vector.broadcast %391 : vector<8x1xi1> to vector<8x32xi1>
    %393 = arith.select %388, %379, %12 : vector<8x32xi1>, vector<8x32xf32>
    %394 = arith.index_cast %340 : i32 to index
    %c0_72 = arith.constant 0 : index
    %395 = vector.load %arg5[%394, %c0_72] : memref<64x64xf32, #tpu.memory_space<vmem>>, vector<8x32xf32>
    tpu.vector_store %arg5[%394, %c0_72], %393 {strides = array<i32>} : memref<64x64xf32, #tpu.memory_space<vmem>>, vector<8x32xf32>,
    %396 = arith.select %392, %384, %12 : vector<8x32xi1>, vector<8x32xf32>
    %397 = arith.index_cast %342 : i32 to index
    %c32_73 = arith.constant 32 : index
    %398 = vector.load %arg5[%397, %c32_73] : memref<64x64xf32, #tpu.memory_space<vmem>>, vector<8x32xf32>
    tpu.vector_store %arg5[%397, %c32_73], %396 {strides = array<i32>} : memref<64x64xf32, #tpu.memory_space<vmem>>, vector<8x32xf32>,
    %399 = arith.select %388, %379, %334 : vector<8x32xi1>, vector<8x32xf32>
    %400 = arith.select %388, %377, %335 : vector<8x32xi1>, vector<8x32xf32>
    %401 = arith.select %392, %384, %336 : vector<8x32xi1>, vector<8x32xf32>
    %402 = arith.select %392, %382, %337 : vector<8x32xi1>, vector<8x32xf32>
    %c6_i32 = arith.constant 6 : i32
    %c7_i32_74 = arith.constant 7 : i32
    %403 = arith.subi %c7_i32_74, %c6_i32 : i32
    %c8_i32_75 = arith.constant 8 : i32
    %404 = arith.muli %c6_i32, %c8_i32_75 : i32
    %405 = tpu.assume_multiple %404, 8 : i32
    %c8_i32_76 = arith.constant 8 : i32
    %406 = arith.muli %403, %c8_i32_76 : i32
    %407 = tpu.assume_multiple %406, 8 : i32
    %408 = arith.index_cast %405 : i32 to index
    %c0_77 = arith.constant 0 : index
    %409 = vector.load %arg8[%408, %c0_77] : memref<64x256xf32, #tpu.memory_space<vmem>>, vector<8x128xf32>
    %410 = arith.truncf %399 : vector<8x32xf32> to vector<8x32xbf16>
    %cst_78 = arith.constant dense<0.000000e+00> : vector<8x128xf32>
    %411 = tpu.matmul %410, %9, %cst_78 {dimension_numbers = #tpu.dot_dimension_numbers<[1], [0], [0], [1], [0, 0, 1, 1], [], []>} : vector<8x32xbf16>, vector<32x128xbf16>, vector<8x128xf32> -> vector<8x128xf32>
    %412 = arith.addf %409, %411 : vector<8x128xf32>
    %413 = arith.index_cast %407 : i32 to index
    %c128_79 = arith.constant 128 : index
    %414 = vector.load %arg8[%413, %c128_79] : memref<64x256xf32, #tpu.memory_space<vmem>>, vector<8x128xf32>
    %415 = arith.truncf %401 : vector<8x32xf32> to vector<8x32xbf16>
    %cst_80 = arith.constant dense<0.000000e+00> : vector<8x128xf32>
    %416 = tpu.matmul %415, %10, %cst_80 {dimension_numbers = #tpu.dot_dimension_numbers<[1], [0], [0], [1], [0, 0, 1, 1], [], []>} : vector<8x32xbf16>, vector<32x128xbf16>, vector<8x128xf32> -> vector<8x128xf32>
    %417 = arith.addf %414, %416 : vector<8x128xf32>
    %418 = vector.extract_strided_slice %412 {offsets = [0, 0], sizes = [8, 96], strides = [1, 1]} : vector<8x128xf32> to vector<8x96xf32>
    %419 = arith.negf %418 : vector<8x96xf32>
    %420 = math.exp %419 : vector<8x96xf32>
    %cst_81 = arith.constant 1.000000e+00 : f32
    %421 = vector.broadcast %cst_81 : f32 to vector<8x96xf32>
    %422 = arith.addf %421, %420 : vector<8x96xf32>
    %423 = arith.divf %421, %422 : vector<8x96xf32>
    %424 = vector.extract_strided_slice %412 {offsets = [0, 96], sizes = [8, 32], strides = [1, 1]} : vector<8x128xf32> to vector<8x32xf32>
    %425 = math.tanh %424 : vector<8x32xf32>
    %426 = vector.extract_strided_slice %423 {offsets = [0, 0], sizes = [8, 32], strides = [1, 1]} : vector<8x96xf32> to vector<8x32xf32>
    %427 = vector.extract_strided_slice %423 {offsets = [0, 32], sizes = [8, 32], strides = [1, 1]} : vector<8x96xf32> to vector<8x32xf32>
    %428 = vector.extract_strided_slice %423 {offsets = [0, 64], sizes = [8, 32], strides = [1, 1]} : vector<8x96xf32> to vector<8x32xf32>
    %429 = vector.extract_strided_slice %417 {offsets = [0, 0], sizes = [8, 96], strides = [1, 1]} : vector<8x128xf32> to vector<8x96xf32>
    %430 = arith.negf %429 : vector<8x96xf32>
    %431 = math.exp %430 : vector<8x96xf32>
    %cst_82 = arith.constant 1.000000e+00 : f32
    %432 = vector.broadcast %cst_82 : f32 to vector<8x96xf32>
    %433 = arith.addf %432, %431 : vector<8x96xf32>
    %434 = arith.divf %432, %433 : vector<8x96xf32>
    %435 = vector.extract_strided_slice %417 {offsets = [0, 96], sizes = [8, 32], strides = [1, 1]} : vector<8x128xf32> to vector<8x32xf32>
    %436 = math.tanh %435 : vector<8x32xf32>
    %437 = vector.extract_strided_slice %434 {offsets = [0, 0], sizes = [8, 32], strides = [1, 1]} : vector<8x96xf32> to vector<8x32xf32>
    %438 = vector.extract_strided_slice %434 {offsets = [0, 32], sizes = [8, 32], strides = [1, 1]} : vector<8x96xf32> to vector<8x32xf32>
    %439 = vector.extract_strided_slice %434 {offsets = [0, 64], sizes = [8, 32], strides = [1, 1]} : vector<8x96xf32> to vector<8x32xf32>
    %440 = arith.mulf %427, %400 : vector<8x32xf32>
    %441 = arith.mulf %426, %425 : vector<8x32xf32>
    %442 = arith.addf %440, %441 : vector<8x32xf32>
    %443 = math.tanh %442 : vector<8x32xf32>
    %444 = arith.mulf %428, %443 : vector<8x32xf32>
    %445 = arith.mulf %438, %402 : vector<8x32xf32>
    %446 = arith.mulf %437, %436 : vector<8x32xf32>
    %447 = arith.addf %445, %446 : vector<8x32xf32>
    %448 = math.tanh %447 : vector<8x32xf32>
    %449 = arith.mulf %439, %448 : vector<8x32xf32>
    %450 = vector.broadcast %c6_i32 : i32 to vector<8x1xi32>
    %451 = arith.cmpi sgt, %11, %450 : vector<8x1xi32>
    %452 = vector.shape_cast %451 : vector<8x1xi1> to vector<8x1xi1>
    %453 = vector.broadcast %452 : vector<8x1xi1> to vector<8x32xi1>
    %454 = vector.broadcast %403 : i32 to vector<8x1xi32>
    %455 = arith.cmpi sgt, %11, %454 : vector<8x1xi32>
    %456 = vector.shape_cast %455 : vector<8x1xi1> to vector<8x1xi1>
    %457 = vector.broadcast %456 : vector<8x1xi1> to vector<8x32xi1>
    %458 = arith.select %453, %444, %12 : vector<8x32xi1>, vector<8x32xf32>
    %459 = arith.index_cast %405 : i32 to index
    %c0_83 = arith.constant 0 : index
    %460 = vector.load %arg5[%459, %c0_83] : memref<64x64xf32, #tpu.memory_space<vmem>>, vector<8x32xf32>
    tpu.vector_store %arg5[%459, %c0_83], %458 {strides = array<i32>} : memref<64x64xf32, #tpu.memory_space<vmem>>, vector<8x32xf32>,
    %461 = arith.select %457, %449, %12 : vector<8x32xi1>, vector<8x32xf32>
    %462 = arith.index_cast %407 : i32 to index
    %c32_84 = arith.constant 32 : index
    %463 = vector.load %arg5[%462, %c32_84] : memref<64x64xf32, #tpu.memory_space<vmem>>, vector<8x32xf32>
    tpu.vector_store %arg5[%462, %c32_84], %461 {strides = array<i32>} : memref<64x64xf32, #tpu.memory_space<vmem>>, vector<8x32xf32>,
    %464 = arith.select %453, %444, %399 : vector<8x32xi1>, vector<8x32xf32>
    %465 = arith.select %453, %442, %400 : vector<8x32xi1>, vector<8x32xf32>
    %466 = arith.select %457, %449, %401 : vector<8x32xi1>, vector<8x32xf32>
    %467 = arith.select %457, %447, %402 : vector<8x32xi1>, vector<8x32xf32>
    %c7_i32_85 = arith.constant 7 : i32
    %c7_i32_86 = arith.constant 7 : i32
    %468 = arith.subi %c7_i32_86, %c7_i32_85 : i32
    %c8_i32_87 = arith.constant 8 : i32
    %469 = arith.muli %c7_i32_85, %c8_i32_87 : i32
    %470 = tpu.assume_multiple %469, 8 : i32
    %c8_i32_88 = arith.constant 8 : i32
    %471 = arith.muli %468, %c8_i32_88 : i32
    %472 = tpu.assume_multiple %471, 8 : i32
    %473 = arith.index_cast %470 : i32 to index
    %c0_89 = arith.constant 0 : index
    %474 = vector.load %arg8[%473, %c0_89] : memref<64x256xf32, #tpu.memory_space<vmem>>, vector<8x128xf32>
    %475 = arith.truncf %464 : vector<8x32xf32> to vector<8x32xbf16>
    %cst_90 = arith.constant dense<0.000000e+00> : vector<8x128xf32>
    %476 = tpu.matmul %475, %9, %cst_90 {dimension_numbers = #tpu.dot_dimension_numbers<[1], [0], [0], [1], [0, 0, 1, 1], [], []>} : vector<8x32xbf16>, vector<32x128xbf16>, vector<8x128xf32> -> vector<8x128xf32>
    %477 = arith.addf %474, %476 : vector<8x128xf32>
    %478 = arith.index_cast %472 : i32 to index
    %c128_91 = arith.constant 128 : index
    %479 = vector.load %arg8[%478, %c128_91] : memref<64x256xf32, #tpu.memory_space<vmem>>, vector<8x128xf32>
    %480 = arith.truncf %466 : vector<8x32xf32> to vector<8x32xbf16>
    %cst_92 = arith.constant dense<0.000000e+00> : vector<8x128xf32>
    %481 = tpu.matmul %480, %10, %cst_92 {dimension_numbers = #tpu.dot_dimension_numbers<[1], [0], [0], [1], [0, 0, 1, 1], [], []>} : vector<8x32xbf16>, vector<32x128xbf16>, vector<8x128xf32> -> vector<8x128xf32>
    %482 = arith.addf %479, %481 : vector<8x128xf32>
    %483 = vector.extract_strided_slice %477 {offsets = [0, 0], sizes = [8, 96], strides = [1, 1]} : vector<8x128xf32> to vector<8x96xf32>
    %484 = arith.negf %483 : vector<8x96xf32>
    %485 = math.exp %484 : vector<8x96xf32>
    %cst_93 = arith.constant 1.000000e+00 : f32
    %486 = vector.broadcast %cst_93 : f32 to vector<8x96xf32>
    %487 = arith.addf %486, %485 : vector<8x96xf32>
    %488 = arith.divf %486, %487 : vector<8x96xf32>
    %489 = vector.extract_strided_slice %477 {offsets = [0, 96], sizes = [8, 32], strides = [1, 1]} : vector<8x128xf32> to vector<8x32xf32>
    %490 = math.tanh %489 : vector<8x32xf32>
    %491 = vector.extract_strided_slice %488 {offsets = [0, 0], sizes = [8, 32], strides = [1, 1]} : vector<8x96xf32> to vector<8x32xf32>
    %492 = vector.extract_strided_slice %488 {offsets = [0, 32], sizes = [8, 32], strides = [1, 1]} : vector<8x96xf32> to vector<8x32xf32>
    %493 = vector.extract_strided_slice %488 {offsets = [0, 64], sizes = [8, 32], strides = [1, 1]} : vector<8x96xf32> to vector<8x32xf32>
    %494 = vector.extract_strided_slice %482 {offsets = [0, 0], sizes = [8, 96], strides = [1, 1]} : vector<8x128xf32> to vector<8x96xf32>
    %495 = arith.negf %494 : vector<8x96xf32>
    %496 = math.exp %495 : vector<8x96xf32>
    %cst_94 = arith.constant 1.000000e+00 : f32
    %497 = vector.broadcast %cst_94 : f32 to vector<8x96xf32>
    %498 = arith.addf %497, %496 : vector<8x96xf32>
    %499 = arith.divf %497, %498 : vector<8x96xf32>
    %500 = vector.extract_strided_slice %482 {offsets = [0, 96], sizes = [8, 32], strides = [1, 1]} : vector<8x128xf32> to vector<8x32xf32>
    %501 = math.tanh %500 : vector<8x32xf32>
    %502 = vector.extract_strided_slice %499 {offsets = [0, 0], sizes = [8, 32], strides = [1, 1]} : vector<8x96xf32> to vector<8x32xf32>
    %503 = vector.extract_strided_slice %499 {offsets = [0, 32], sizes = [8, 32], strides = [1, 1]} : vector<8x96xf32> to vector<8x32xf32>
    %504 = vector.extract_strided_slice %499 {offsets = [0, 64], sizes = [8, 32], strides = [1, 1]} : vector<8x96xf32> to vector<8x32xf32>
    %505 = arith.mulf %492, %465 : vector<8x32xf32>
    %506 = arith.mulf %491, %490 : vector<8x32xf32>
    %507 = arith.addf %505, %506 : vector<8x32xf32>
    %508 = math.tanh %507 : vector<8x32xf32>
    %509 = arith.mulf %493, %508 : vector<8x32xf32>
    %510 = arith.mulf %503, %467 : vector<8x32xf32>
    %511 = arith.mulf %502, %501 : vector<8x32xf32>
    %512 = arith.addf %510, %511 : vector<8x32xf32>
    %513 = math.tanh %512 : vector<8x32xf32>
    %514 = arith.mulf %504, %513 : vector<8x32xf32>
    %515 = vector.broadcast %c7_i32_85 : i32 to vector<8x1xi32>
    %516 = arith.cmpi sgt, %11, %515 : vector<8x1xi32>
    %517 = vector.shape_cast %516 : vector<8x1xi1> to vector<8x1xi1>
    %518 = vector.broadcast %517 : vector<8x1xi1> to vector<8x32xi1>
    %519 = vector.broadcast %468 : i32 to vector<8x1xi32>
    %520 = arith.cmpi sgt, %11, %519 : vector<8x1xi32>
    %521 = vector.shape_cast %520 : vector<8x1xi1> to vector<8x1xi1>
    %522 = vector.broadcast %521 : vector<8x1xi1> to vector<8x32xi1>
    %523 = arith.select %518, %509, %12 : vector<8x32xi1>, vector<8x32xf32>
    %524 = arith.index_cast %470 : i32 to index
    %c0_95 = arith.constant 0 : index
    %525 = vector.load %arg5[%524, %c0_95] : memref<64x64xf32, #tpu.memory_space<vmem>>, vector<8x32xf32>
    tpu.vector_store %arg5[%524, %c0_95], %523 {strides = array<i32>} : memref<64x64xf32, #tpu.memory_space<vmem>>, vector<8x32xf32>,
    %526 = arith.select %522, %514, %12 : vector<8x32xi1>, vector<8x32xf32>
    %527 = arith.index_cast %472 : i32 to index
    %c32_96 = arith.constant 32 : index
    %528 = vector.load %arg5[%527, %c32_96] : memref<64x64xf32, #tpu.memory_space<vmem>>, vector<8x32xf32>
    tpu.vector_store %arg5[%527, %c32_96], %526 {strides = array<i32>} : memref<64x64xf32, #tpu.memory_space<vmem>>, vector<8x32xf32>,
    %529 = arith.select %518, %509, %464 : vector<8x32xi1>, vector<8x32xf32>
    %530 = arith.select %518, %507, %465 : vector<8x32xi1>, vector<8x32xf32>
    %531 = arith.select %522, %514, %466 : vector<8x32xi1>, vector<8x32xf32>
    %532 = arith.select %522, %512, %467 : vector<8x32xi1>, vector<8x32xf32>
    %c8_i32_97 = arith.constant 8 : i32
    %c0_98 = arith.constant 0 : index
    %c0_99 = arith.constant 0 : index
    %533 = vector.load %arg6[%c0_98, %c0_99] : memref<8x64xf32, #tpu.memory_space<vmem>>, vector<8x32xf32>
    tpu.vector_store %arg6[%c0_98, %c0_99], %529 {strides = array<i32>} : memref<8x64xf32, #tpu.memory_space<vmem>>, vector<8x32xf32>,
    %c0_100 = arith.constant 0 : index
    %c32_101 = arith.constant 32 : index
    %534 = vector.load %arg6[%c0_100, %c32_101] : memref<8x64xf32, #tpu.memory_space<vmem>>, vector<8x32xf32>
    tpu.vector_store %arg6[%c0_100, %c32_101], %531 {strides = array<i32>} : memref<8x64xf32, #tpu.memory_space<vmem>>, vector<8x32xf32>,
    %c0_102 = arith.constant 0 : index
    %c0_103 = arith.constant 0 : index
    %535 = vector.load %arg7[%c0_102, %c0_103] : memref<8x64xf32, #tpu.memory_space<vmem>>, vector<8x32xf32>
    tpu.vector_store %arg7[%c0_102, %c0_103], %530 {strides = array<i32>} : memref<8x64xf32, #tpu.memory_space<vmem>>, vector<8x32xf32>,
    %c0_104 = arith.constant 0 : index
    %c32_105 = arith.constant 32 : index
    %536 = vector.load %arg7[%c0_104, %c32_105] : memref<8x64xf32, #tpu.memory_space<vmem>>, vector<8x32xf32>
    tpu.vector_store %arg7[%c0_104, %c32_105], %532 {strides = array<i32>} : memref<8x64xf32, #tpu.memory_space<vmem>>, vector<8x32xf32>,
    return
  }
}

module attributes {stable_mosaic.version = 11 : i64} {
  func.func @_bilstm_layer_kernel(%arg0: memref<8x1xi32, #tpu.memory_space<vmem>>, %arg1: memref<64x64xf32, #tpu.memory_space<vmem>>, %arg2: memref<64x256xbf16, #tpu.memory_space<vmem>>, %arg3: memref<32x256xbf16, #tpu.memory_space<vmem>>, %arg4: memref<1x256xf32, #tpu.memory_space<vmem>>, %arg5: memref<64x64xf32, #tpu.memory_space<vmem>>, %arg6: memref<8x64xf32, #tpu.memory_space<vmem>>, %arg7: memref<8x64xf32, #tpu.memory_space<vmem>>, %arg8: memref<64x256xf32, #tpu.memory_space<vmem>>) attributes {dimension_semantics = [], scalar_prefetch = 0 : i64, scratch_operands = 1 : i64, tpu.core_type = #tpu.core_type<tc>} {
    %c0 = arith.constant 0 : index
    %c0_0 = arith.constant 0 : index
    %0 = vector.load %arg1[%c0, %c0_0] : memref<64x64xf32, #tpu.memory_space<vmem>>, vector<64x64xf32>
    %1 = arith.truncf %0 : vector<64x64xf32> to vector<64x64xbf16>
    %c0_1 = arith.constant 0 : index
    %c0_2 = arith.constant 0 : index
    %2 = vector.load %arg2[%c0_1, %c0_2] : memref<64x256xbf16, #tpu.memory_space<vmem>>, vector<64x256xbf16>
    %cst = arith.constant dense<0.000000e+00> : vector<64x256xf32>
    %3 = tpu.matmul %1, %2, %cst {dimension_numbers = #tpu.dot_dimension_numbers<[1], [0], [0], [1], [0, 0, 1, 1], [], []>} : vector<64x64xbf16>, vector<64x256xbf16>, vector<64x256xf32> -> vector<64x256xf32>
    %c0_3 = arith.constant 0 : index
    %c0_4 = arith.constant 0 : index
    %4 = vector.load %arg4[%c0_3, %c0_4] : memref<1x256xf32, #tpu.memory_space<vmem>>, vector<1x256xf32>
    %5 = vector.broadcast %4 : vector<1x256xf32> to vector<64x256xf32>
    %6 = arith.addf %3, %5 : vector<64x256xf32>
    %c0_5 = arith.constant 0 : index
    %c0_6 = arith.constant 0 : index
    %7 = vector.load %arg8[%c0_5, %c0_6] : memref<64x256xf32, #tpu.memory_space<vmem>>, vector<64x256xf32>
    tpu.vector_store %arg8[%c0_5, %c0_6], %6 {strides = array<i32>} : memref<64x256xf32, #tpu.memory_space<vmem>>, vector<64x256xf32>,
    %c0_7 = arith.constant 0 : index
    %c0_8 = arith.constant 0 : index
    %8 = vector.load %arg3[%c0_7, %c0_8] : memref<32x256xbf16, #tpu.memory_space<vmem>>, vector<32x256xbf16>
    %9 = vector.extract_strided_slice %8 {offsets = [0, 0], sizes = [32, 128], strides = [1, 1]} : vector<32x256xbf16> to vector<32x128xbf16>
    %10 = vector.extract_strided_slice %8 {offsets = [0, 128], sizes = [32, 128], strides = [1, 1]} : vector<32x256xbf16> to vector<32x128xbf16>
    %c0_9 = arith.constant 0 : index
    %c0_10 = arith.constant 0 : index
    %11 = vector.load %arg0[%c0_9, %c0_10] : memref<8x1xi32, #tpu.memory_space<vmem>>, vector<8x1xi32>
    %cst_11 = arith.constant 0.000000e+00 : f32
    %12 = vector.broadcast %cst_11 : f32 to vector<8x32xf32>
    %c0_i32 = arith.constant 0 : i32
    %c7_i32 = arith.constant 7 : i32
    %13 = arith.subi %c7_i32, %c0_i32 : i32
    %c8_i32 = arith.constant 8 : i32
    %14 = arith.muli %c0_i32, %c8_i32 : i32
    %15 = tpu.assume_multiple %14, 8 : i32
    %c8_i32_12 = arith.constant 8 : i32
    %16 = arith.muli %13, %c8_i32_12 : i32
    %17 = tpu.assume_multiple %16, 8 : i32
    %18 = arith.index_cast %15 : i32 to index
    %c0_13 = arith.constant 0 : index
    %19 = vector.load %arg8[%18, %c0_13] : memref<64x256xf32, #tpu.memory_space<vmem>>, vector<8x128xf32>
    %20 = arith.truncf %12 : vector<8x32xf32> to vector<8x32xbf16>
    %cst_14 = arith.constant dense<0.000000e+00> : vector<8x128xf32>
    %21 = tpu.matmul %20, %9, %cst_14 {dimension_numbers = #tpu.dot_dimension_numbers<[1], [0], [0], [1], [0, 0, 1, 1], [], []>} : vector<8x32xbf16>, vector<32x128xbf16>, vector<8x128xf32> -> vector<8x128xf32>
    %22 = arith.addf %19, %21 : vector<8x128xf32>
    %23 = arith.index_cast %17 : i32 to index
    %c128 = arith.constant 128 : index
    %24 = vector.load %arg8[%23, %c128] : memref<64x256xf32, #tpu.memory_space<vmem>>, vector<8x128xf32>
    %25 = arith.truncf %12 : vector<8x32xf32> to vector<8x32xbf16>
    %cst_15 = arith.constant dense<0.000000e+00> : vector<8x128xf32>
    %26 = tpu.matmul %25, %10, %cst_15 {dimension_numbers = #tpu.dot_dimension_numbers<[1], [0], [0], [1], [0, 0, 1, 1], [], []>} : vector<8x32xbf16>, vector<32x128xbf16>, vector<8x128xf32> -> vector<8x128xf32>
    %27 = arith.addf %24, %26 : vector<8x128xf32>
    %28 = vector.extract_strided_slice %22 {offsets = [0, 0], sizes = [8, 96], strides = [1, 1]} : vector<8x128xf32> to vector<8x96xf32>
    %29 = arith.negf %28 : vector<8x96xf32>
    %30 = math.exp %29 : vector<8x96xf32>
    %cst_16 = arith.constant 1.000000e+00 : f32
    %31 = vector.broadcast %cst_16 : f32 to vector<8x96xf32>
    %32 = arith.addf %31, %30 : vector<8x96xf32>
    %33 = arith.divf %31, %32 : vector<8x96xf32>
    %34 = vector.extract_strided_slice %22 {offsets = [0, 96], sizes = [8, 32], strides = [1, 1]} : vector<8x128xf32> to vector<8x32xf32>
    %35 = math.tanh %34 : vector<8x32xf32>
    %36 = vector.extract_strided_slice %33 {offsets = [0, 0], sizes = [8, 32], strides = [1, 1]} : vector<8x96xf32> to vector<8x32xf32>
    %37 = vector.extract_strided_slice %33 {offsets = [0, 32], sizes = [8, 32], strides = [1, 1]} : vector<8x96xf32> to vector<8x32xf32>
    %38 = vector.extract_strided_slice %33 {offsets = [0, 64], sizes = [8, 32], strides = [1, 1]} : vector<8x96xf32> to vector<8x32xf32>
    %39 = vector.extract_strided_slice %27 {offsets = [0, 0], sizes = [8, 96], strides = [1, 1]} : vector<8x128xf32> to vector<8x96xf32>
    %40 = arith.negf %39 : vector<8x96xf32>
    %41 = math.exp %40 : vector<8x96xf32>
    %cst_17 = arith.constant 1.000000e+00 : f32
    %42 = vector.broadcast %cst_17 : f32 to vector<8x96xf32>
    %43 = arith.addf %42, %41 : vector<8x96xf32>
    %44 = arith.divf %42, %43 : vector<8x96xf32>
    %45 = vector.extract_strided_slice %27 {offsets = [0, 96], sizes = [8, 32], strides = [1, 1]} : vector<8x128xf32> to vector<8x32xf32>
    %46 = math.tanh %45 : vector<8x32xf32>
    %47 = vector.extract_strided_slice %44 {offsets = [0, 0], sizes = [8, 32], strides = [1, 1]} : vector<8x96xf32> to vector<8x32xf32>
    %48 = vector.extract_strided_slice %44 {offsets = [0, 32], sizes = [8, 32], strides = [1, 1]} : vector<8x96xf32> to vector<8x32xf32>
    %49 = vector.extract_strided_slice %44 {offsets = [0, 64], sizes = [8, 32], strides = [1, 1]} : vector<8x96xf32> to vector<8x32xf32>
    %50 = arith.mulf %37, %12 : vector<8x32xf32>
    %51 = arith.mulf %36, %35 : vector<8x32xf32>
    %52 = arith.addf %50, %51 : vector<8x32xf32>
    %53 = math.tanh %52 : vector<8x32xf32>
    %54 = arith.mulf %38, %53 : vector<8x32xf32>
    %55 = arith.mulf %48, %12 : vector<8x32xf32>
    %56 = arith.mulf %47, %46 : vector<8x32xf32>
    %57 = arith.addf %55, %56 : vector<8x32xf32>
    %58 = math.tanh %57 : vector<8x32xf32>
    %59 = arith.mulf %49, %58 : vector<8x32xf32>
    %60 = vector.broadcast %c0_i32 : i32 to vector<8x1xi32>
    %61 = arith.cmpi sgt, %11, %60 : vector<8x1xi32>
    %62 = vector.shape_cast %61 : vector<8x1xi1> to vector<8x1xi1>
    %63 = vector.broadcast %62 : vector<8x1xi1> to vector<8x32xi1>
    %64 = vector.broadcast %13 : i32 to vector<8x1xi32>
    %65 = arith.cmpi sgt, %11, %64 : vector<8x1xi32>
    %66 = vector.shape_cast %65 : vector<8x1xi1> to vector<8x1xi1>
    %67 = vector.broadcast %66 : vector<8x1xi1> to vector<8x32xi1>
    %68 = arith.select %63, %54, %12 : vector<8x32xi1>, vector<8x32xf32>
    %69 = arith.index_cast %15 : i32 to index
    %c0_18 = arith.constant 0 : index
    %70 = vector.load %arg5[%69, %c0_18] : memref<64x64xf32, #tpu.memory_space<vmem>>, vector<8x32xf32>
    tpu.vector_store %arg5[%69, %c0_18], %68 {strides = array<i32>} : memref<64x64xf32, #tpu.memory_space<vmem>>, vector<8x32xf32>,
    %71 = arith.select %67, %59, %12 : vector<8x32xi1>, vector<8x32xf32>
    %72 = arith.index_cast %17 : i32 to index
    %c32 = arith.constant 32 : index
    %73 = vector.load %arg5[%72, %c32] : memref<64x64xf32, #tpu.memory_space<vmem>>, vector<8x32xf32>
    tpu.vector_store %arg5[%72, %c32], %71 {strides = array<i32>} : memref<64x64xf32, #tpu.memory_space<vmem>>, vector<8x32xf32>,
    %74 = arith.select %63, %54, %12 : vector<8x32xi1>, vector<8x32xf32>
    %75 = arith.select %63, %52, %12 : vector<8x32xi1>, vector<8x32xf32>
    %76 = arith.select %67, %59, %12 : vector<8x32xi1>, vector<8x32xf32>
    %77 = arith.select %67, %57, %12 : vector<8x32xi1>, vector<8x32xf32>
    %c1_i32 = arith.constant 1 : i32
    %c7_i32_19 = arith.constant 7 : i32
    %78 = arith.subi %c7_i32_19, %c1_i32 : i32
    %c8_i32_20 = arith.constant 8 : i32
    %79 = arith.muli %c1_i32, %c8_i32_20 : i32
    %80 = tpu.assume_multiple %79, 8 : i32
    %c8_i32_21 = arith.constant 8 : i32
    %81 = arith.muli %78, %c8_i32_21 : i32
    %82 = tpu.assume_multiple %81, 8 : i32
    %83 = arith.index_cast %80 : i32 to index
    %c0_22 = arith.constant 0 : index
    %84 = vector.load %arg8[%83, %c0_22] : memref<64x256xf32, #tpu.memory_space<vmem>>, vector<8x128xf32>
    %85 = arith.truncf %74 : vector<8x32xf32> to vector<8x32xbf16>
    %cst_23 = arith.constant dense<0.000000e+00> : vector<8x128xf32>
    %86 = tpu.matmul %85, %9, %cst_23 {dimension_numbers = #tpu.dot_dimension_numbers<[1], [0], [0], [1], [0, 0, 1, 1], [], []>} : vector<8x32xbf16>, vector<32x128xbf16>, vector<8x128xf32> -> vector<8x128xf32>
    %87 = arith.addf %84, %86 : vector<8x128xf32>
    %88 = arith.index_cast %82 : i32 to index
    %c128_24 = arith.constant 128 : index
    %89 = vector.load %arg8[%88, %c128_24] : memref<64x256xf32, #tpu.memory_space<vmem>>, vector<8x128xf32>
    %90 = arith.truncf %76 : vector<8x32xf32> to vector<8x32xbf16>
    %cst_25 = arith.constant dense<0.000000e+00> : vector<8x128xf32>
    %91 = tpu.matmul %90, %10, %cst_25 {dimension_numbers = #tpu.dot_dimension_numbers<[1], [0], [0], [1], [0, 0, 1, 1], [], []>} : vector<8x32xbf16>, vector<32x128xbf16>, vector<8x128xf32> -> vector<8x128xf32>
    %92 = arith.addf %89, %91 : vector<8x128xf32>
    %93 = vector.extract_strided_slice %87 {offsets = [0, 0], sizes = [8, 96], strides = [1, 1]} : vector<8x128xf32> to vector<8x96xf32>
    %94 = arith.negf %93 : vector<8x96xf32>
    %95 = math.exp %94 : vector<8x96xf32>
    %cst_26 = arith.constant 1.000000e+00 : f32
    %96 = vector.broadcast %cst_26 : f32 to vector<8x96xf32>
    %97 = arith.addf %96, %95 : vector<8x96xf32>
    %98 = arith.divf %96, %97 : vector<8x96xf32>
    %99 = vector.extract_strided_slice %87 {offsets = [0, 96], sizes = [8, 32], strides = [1, 1]} : vector<8x128xf32> to vector<8x32xf32>
    %100 = math.tanh %99 : vector<8x32xf32>
    %101 = vector.extract_strided_slice %98 {offsets = [0, 0], sizes = [8, 32], strides = [1, 1]} : vector<8x96xf32> to vector<8x32xf32>
    %102 = vector.extract_strided_slice %98 {offsets = [0, 32], sizes = [8, 32], strides = [1, 1]} : vector<8x96xf32> to vector<8x32xf32>
    %103 = vector.extract_strided_slice %98 {offsets = [0, 64], sizes = [8, 32], strides = [1, 1]} : vector<8x96xf32> to vector<8x32xf32>
    %104 = vector.extract_strided_slice %92 {offsets = [0, 0], sizes = [8, 96], strides = [1, 1]} : vector<8x128xf32> to vector<8x96xf32>
    %105 = arith.negf %104 : vector<8x96xf32>
    %106 = math.exp %105 : vector<8x96xf32>
    %cst_27 = arith.constant 1.000000e+00 : f32
    %107 = vector.broadcast %cst_27 : f32 to vector<8x96xf32>
    %108 = arith.addf %107, %106 : vector<8x96xf32>
    %109 = arith.divf %107, %108 : vector<8x96xf32>
    %110 = vector.extract_strided_slice %92 {offsets = [0, 96], sizes = [8, 32], strides = [1, 1]} : vector<8x128xf32> to vector<8x32xf32>
    %111 = math.tanh %110 : vector<8x32xf32>
    %112 = vector.extract_strided_slice %109 {offsets = [0, 0], sizes = [8, 32], strides = [1, 1]} : vector<8x96xf32> to vector<8x32xf32>
    %113 = vector.extract_strided_slice %109 {offsets = [0, 32], sizes = [8, 32], strides = [1, 1]} : vector<8x96xf32> to vector<8x32xf32>
    %114 = vector.extract_strided_slice %109 {offsets = [0, 64], sizes = [8, 32], strides = [1, 1]} : vector<8x96xf32> to vector<8x32xf32>
    %115 = arith.mulf %102, %75 : vector<8x32xf32>
    %116 = arith.mulf %101, %100 : vector<8x32xf32>
    %117 = arith.addf %115, %116 : vector<8x32xf32>
    %118 = math.tanh %117 : vector<8x32xf32>
    %119 = arith.mulf %103, %118 : vector<8x32xf32>
    %120 = arith.mulf %113, %77 : vector<8x32xf32>
    %121 = arith.mulf %112, %111 : vector<8x32xf32>
    %122 = arith.addf %120, %121 : vector<8x32xf32>
    %123 = math.tanh %122 : vector<8x32xf32>
    %124 = arith.mulf %114, %123 : vector<8x32xf32>
    %125 = vector.broadcast %c1_i32 : i32 to vector<8x1xi32>
    %126 = arith.cmpi sgt, %11, %125 : vector<8x1xi32>
    %127 = vector.shape_cast %126 : vector<8x1xi1> to vector<8x1xi1>
    %128 = vector.broadcast %127 : vector<8x1xi1> to vector<8x32xi1>
    %129 = vector.broadcast %78 : i32 to vector<8x1xi32>
    %130 = arith.cmpi sgt, %11, %129 : vector<8x1xi32>
    %131 = vector.shape_cast %130 : vector<8x1xi1> to vector<8x1xi1>
    %132 = vector.broadcast %131 : vector<8x1xi1> to vector<8x32xi1>
    %133 = arith.select %128, %119, %12 : vector<8x32xi1>, vector<8x32xf32>
    %134 = arith.index_cast %80 : i32 to index
    %c0_28 = arith.constant 0 : index
    %135 = vector.load %arg5[%134, %c0_28] : memref<64x64xf32, #tpu.memory_space<vmem>>, vector<8x32xf32>
    tpu.vector_store %arg5[%134, %c0_28], %133 {strides = array<i32>} : memref<64x64xf32, #tpu.memory_space<vmem>>, vector<8x32xf32>,
    %136 = arith.select %132, %124, %12 : vector<8x32xi1>, vector<8x32xf32>
    %137 = arith.index_cast %82 : i32 to index
    %c32_29 = arith.constant 32 : index
    %138 = vector.load %arg5[%137, %c32_29] : memref<64x64xf32, #tpu.memory_space<vmem>>, vector<8x32xf32>
    tpu.vector_store %arg5[%137, %c32_29], %136 {strides = array<i32>} : memref<64x64xf32, #tpu.memory_space<vmem>>, vector<8x32xf32>,
    %139 = arith.select %128, %119, %74 : vector<8x32xi1>, vector<8x32xf32>
    %140 = arith.select %128, %117, %75 : vector<8x32xi1>, vector<8x32xf32>
    %141 = arith.select %132, %124, %76 : vector<8x32xi1>, vector<8x32xf32>
    %142 = arith.select %132, %122, %77 : vector<8x32xi1>, vector<8x32xf32>
    %c2_i32 = arith.constant 2 : i32
    %c7_i32_30 = arith.constant 7 : i32
    %143 = arith.subi %c7_i32_30, %c2_i32 : i32
    %c8_i32_31 = arith.constant 8 : i32
    %144 = arith.muli %c2_i32, %c8_i32_31 : i32
    %145 = tpu.assume_multiple %144, 8 : i32
    %c8_i32_32 = arith.constant 8 : i32
    %146 = arith.muli %143, %c8_i32_32 : i32
    %147 = tpu.assume_multiple %146, 8 : i32
    %148 = arith.index_cast %145 : i32 to index
    %c0_33 = arith.constant 0 : index
    %149 = vector.load %arg8[%148, %c0_33] : memref<64x256xf32, #tpu.memory_space<vmem>>, vector<8x128xf32>
    %150 = arith.truncf %139 : vector<8x32xf32> to vector<8x32xbf16>
    %cst_34 = arith.constant dense<0.000000e+00> : vector<8x128xf32>
    %151 = tpu.matmul %150, %9, %cst_34 {dimension_numbers = #tpu.dot_dimension_numbers<[1], [0], [0], [1], [0, 0, 1, 1], [], []>} : vector<8x32xbf16>, vector<32x128xbf16>, vector<8x128xf32> -> vector<8x128xf32>
    %152 = arith.addf %149, %151 : vector<8x128xf32>
    %153 = arith.index_cast %147 : i32 to index
    %c128_35 = arith.constant 128 : index
    %154 = vector.load %arg8[%153, %c128_35] : memref<64x256xf32, #tpu.memory_space<vmem>>, vector<8x128xf32>
    %155 = arith.truncf %141 : vector<8x32xf32> to vector<8x32xbf16>
    %cst_36 = arith.constant dense<0.000000e+00> : vector<8x128xf32>
    %156 = tpu.matmul %155, %10, %cst_36 {dimension_numbers = #tpu.dot_dimension_numbers<[1], [0], [0], [1], [0, 0, 1, 1], [], []>} : vector<8x32xbf16>, vector<32x128xbf16>, vector<8x128xf32> -> vector<8x128xf32>
    %157 = arith.addf %154, %156 : vector<8x128xf32>
    %158 = vector.extract_strided_slice %152 {offsets = [0, 0], sizes = [8, 96], strides = [1, 1]} : vector<8x128xf32> to vector<8x96xf32>
    %159 = arith.negf %158 : vector<8x96xf32>
    %160 = math.exp %159 : vector<8x96xf32>
    %cst_37 = arith.constant 1.000000e+00 : f32
    %161 = vector.broadcast %cst_37 : f32 to vector<8x96xf32>
    %162 = arith.addf %161, %160 : vector<8x96xf32>
    %163 = arith.divf %161, %162 : vector<8x96xf32>
    %164 = vector.extract_strided_slice %152 {offsets = [0, 96], sizes = [8, 32], strides = [1, 1]} : vector<8x128xf32> to vector<8x32xf32>
    %165 = math.tanh %164 : vector<8x32xf32>
    %166 = vector.extract_strided_slice %163 {offsets = [0, 0], sizes = [8, 32], strides = [1, 1]} : vector<8x96xf32> to vector<8x32xf32>
    %167 = vector.extract_strided_slice %163 {offsets = [0, 32], sizes = [8, 32], strides = [1, 1]} : vector<8x96xf32> to vector<8x32xf32>
    %168 = vector.extract_strided_slice %163 {offsets = [0, 64], sizes = [8, 32], strides = [1, 1]} : vector<8x96xf32> to vector<8x32xf32>
    %169 = vector.extract_strided_slice %157 {offsets = [0, 0], sizes = [8, 96], strides = [1, 1]} : vector<8x128xf32> to vector<8x96xf32>
    %170 = arith.negf %169 : vector<8x96xf32>
    %171 = math.exp %170 : vector<8x96xf32>
    %cst_38 = arith.constant 1.000000e+00 : f32
    %172 = vector.broadcast %cst_38 : f32 to vector<8x96xf32>
    %173 = arith.addf %172, %171 : vector<8x96xf32>
    %174 = arith.divf %172, %173 : vector<8x96xf32>
    %175 = vector.extract_strided_slice %157 {offsets = [0, 96], sizes = [8, 32], strides = [1, 1]} : vector<8x128xf32> to vector<8x32xf32>
    %176 = math.tanh %175 : vector<8x32xf32>
    %177 = vector.extract_strided_slice %174 {offsets = [0, 0], sizes = [8, 32], strides = [1, 1]} : vector<8x96xf32> to vector<8x32xf32>
    %178 = vector.extract_strided_slice %174 {offsets = [0, 32], sizes = [8, 32], strides = [1, 1]} : vector<8x96xf32> to vector<8x32xf32>
    %179 = vector.extract_strided_slice %174 {offsets = [0, 64], sizes = [8, 32], strides = [1, 1]} : vector<8x96xf32> to vector<8x32xf32>
    %180 = arith.mulf %167, %140 : vector<8x32xf32>
    %181 = arith.mulf %166, %165 : vector<8x32xf32>
    %182 = arith.addf %180, %181 : vector<8x32xf32>
    %183 = math.tanh %182 : vector<8x32xf32>
    %184 = arith.mulf %168, %183 : vector<8x32xf32>
    %185 = arith.mulf %178, %142 : vector<8x32xf32>
    %186 = arith.mulf %177, %176 : vector<8x32xf32>
    %187 = arith.addf %185, %186 : vector<8x32xf32>
    %188 = math.tanh %187 : vector<8x32xf32>
    %189 = arith.mulf %179, %188 : vector<8x32xf32>
    %190 = vector.broadcast %c2_i32 : i32 to vector<8x1xi32>
    %191 = arith.cmpi sgt, %11, %190 : vector<8x1xi32>
    %192 = vector.shape_cast %191 : vector<8x1xi1> to vector<8x1xi1>
    %193 = vector.broadcast %192 : vector<8x1xi1> to vector<8x32xi1>
    %194 = vector.broadcast %143 : i32 to vector<8x1xi32>
    %195 = arith.cmpi sgt, %11, %194 : vector<8x1xi32>
    %196 = vector.shape_cast %195 : vector<8x1xi1> to vector<8x1xi1>
    %197 = vector.broadcast %196 : vector<8x1xi1> to vector<8x32xi1>
    %198 = arith.select %193, %184, %12 : vector<8x32xi1>, vector<8x32xf32>
    %199 = arith.index_cast %145 : i32 to index
    %c0_39 = arith.constant 0 : index
    %200 = vector.load %arg5[%199, %c0_39] : memref<64x64xf32, #tpu.memory_space<vmem>>, vector<8x32xf32>
    tpu.vector_store %arg5[%199, %c0_39], %198 {strides = array<i32>} : memref<64x64xf32, #tpu.memory_space<vmem>>, vector<8x32xf32>,
    %201 = arith.select %197, %189, %12 : vector<8x32xi1>, vector<8x32xf32>
    %202 = arith.index_cast %147 : i32 to index
    %c32_40 = arith.constant 32 : index
    %203 = vector.load %arg5[%202, %c32_40] : memref<64x64xf32, #tpu.memory_space<vmem>>, vector<8x32xf32>
    tpu.vector_store %arg5[%202, %c32_40], %201 {strides = array<i32>} : memref<64x64xf32, #tpu.memory_space<vmem>>, vector<8x32xf32>,
    %204 = arith.select %193, %184, %139 : vector<8x32xi1>, vector<8x32xf32>
    %205 = arith.select %193, %182, %140 : vector<8x32xi1>, vector<8x32xf32>
    %206 = arith.select %197, %189, %141 : vector<8x32xi1>, vector<8x32xf32>
    %207 = arith.select %197, %187, %142 : vector<8x32xi1>, vector<8x32xf32>
    %c3_i32 = arith.constant 3 : i32
    %c7_i32_41 = arith.constant 7 : i32
    %208 = arith.subi %c7_i32_41, %c3_i32 : i32
    %c8_i32_42 = arith.constant 8 : i32
    %209 = arith.muli %c3_i32, %c8_i32_42 : i32
    %210 = tpu.assume_multiple %209, 8 : i32
    %c8_i32_43 = arith.constant 8 : i32
    %211 = arith.muli %208, %c8_i32_43 : i32
    %212 = tpu.assume_multiple %211, 8 : i32
    %213 = arith.index_cast %210 : i32 to index
    %c0_44 = arith.constant 0 : index
    %214 = vector.load %arg8[%213, %c0_44] : memref<64x256xf32, #tpu.memory_space<vmem>>, vector<8x128xf32>
    %215 = arith.truncf %204 : vector<8x32xf32> to vector<8x32xbf16>
    %cst_45 = arith.constant dense<0.000000e+00> : vector<8x128xf32>
    %216 = tpu.matmul %215, %9, %cst_45 {dimension_numbers = #tpu.dot_dimension_numbers<[1], [0], [0], [1], [0, 0, 1, 1], [], []>} : vector<8x32xbf16>, vector<32x128xbf16>, vector<8x128xf32> -> vector<8x128xf32>
    %217 = arith.addf %214, %216 : vector<8x128xf32>
    %218 = arith.index_cast %212 : i32 to index
    %c128_46 = arith.constant 128 : index
    %219 = vector.load %arg8[%218, %c128_46] : memref<64x256xf32, #tpu.memory_space<vmem>>, vector<8x128xf32>
    %220 = arith.truncf %206 : vector<8x32xf32> to vector<8x32xbf16>
    %cst_47 = arith.constant dense<0.000000e+00> : vector<8x128xf32>
    %221 = tpu.matmul %220, %10, %cst_47 {dimension_numbers = #tpu.dot_dimension_numbers<[1], [0], [0], [1], [0, 0, 1, 1], [], []>} : vector<8x32xbf16>, vector<32x128xbf16>, vector<8x128xf32> -> vector<8x128xf32>
    %222 = arith.addf %219, %221 : vector<8x128xf32>
    %223 = vector.extract_strided_slice %217 {offsets = [0, 0], sizes = [8, 96], strides = [1, 1]} : vector<8x128xf32> to vector<8x96xf32>
    %224 = arith.negf %223 : vector<8x96xf32>
    %225 = math.exp %224 : vector<8x96xf32>
    %cst_48 = arith.constant 1.000000e+00 : f32
    %226 = vector.broadcast %cst_48 : f32 to vector<8x96xf32>
    %227 = arith.addf %226, %225 : vector<8x96xf32>
    %228 = arith.divf %226, %227 : vector<8x96xf32>
    %229 = vector.extract_strided_slice %217 {offsets = [0, 96], sizes = [8, 32], strides = [1, 1]} : vector<8x128xf32> to vector<8x32xf32>
    %230 = math.tanh %229 : vector<8x32xf32>
    %231 = vector.extract_strided_slice %228 {offsets = [0, 0], sizes = [8, 32], strides = [1, 1]} : vector<8x96xf32> to vector<8x32xf32>
    %232 = vector.extract_strided_slice %228 {offsets = [0, 32], sizes = [8, 32], strides = [1, 1]} : vector<8x96xf32> to vector<8x32xf32>
    %233 = vector.extract_strided_slice %228 {offsets = [0, 64], sizes = [8, 32], strides = [1, 1]} : vector<8x96xf32> to vector<8x32xf32>
    %234 = vector.extract_strided_slice %222 {offsets = [0, 0], sizes = [8, 96], strides = [1, 1]} : vector<8x128xf32> to vector<8x96xf32>
    %235 = arith.negf %234 : vector<8x96xf32>
    %236 = math.exp %235 : vector<8x96xf32>
    %cst_49 = arith.constant 1.000000e+00 : f32
    %237 = vector.broadcast %cst_49 : f32 to vector<8x96xf32>
    %238 = arith.addf %237, %236 : vector<8x96xf32>
    %239 = arith.divf %237, %238 : vector<8x96xf32>
    %240 = vector.extract_strided_slice %222 {offsets = [0, 96], sizes = [8, 32], strides = [1, 1]} : vector<8x128xf32> to vector<8x32xf32>
    %241 = math.tanh %240 : vector<8x32xf32>
    %242 = vector.extract_strided_slice %239 {offsets = [0, 0], sizes = [8, 32], strides = [1, 1]} : vector<8x96xf32> to vector<8x32xf32>
    %243 = vector.extract_strided_slice %239 {offsets = [0, 32], sizes = [8, 32], strides = [1, 1]} : vector<8x96xf32> to vector<8x32xf32>
    %244 = vector.extract_strided_slice %239 {offsets = [0, 64], sizes = [8, 32], strides = [1, 1]} : vector<8x96xf32> to vector<8x32xf32>
    %245 = arith.mulf %232, %205 : vector<8x32xf32>
    %246 = arith.mulf %231, %230 : vector<8x32xf32>
    %247 = arith.addf %245, %246 : vector<8x32xf32>
    %248 = math.tanh %247 : vector<8x32xf32>
    %249 = arith.mulf %233, %248 : vector<8x32xf32>
    %250 = arith.mulf %243, %207 : vector<8x32xf32>
    %251 = arith.mulf %242, %241 : vector<8x32xf32>
    %252 = arith.addf %250, %251 : vector<8x32xf32>
    %253 = math.tanh %252 : vector<8x32xf32>
    %254 = arith.mulf %244, %253 : vector<8x32xf32>
    %255 = vector.broadcast %c3_i32 : i32 to vector<8x1xi32>
    %256 = arith.cmpi sgt, %11, %255 : vector<8x1xi32>
    %257 = vector.shape_cast %256 : vector<8x1xi1> to vector<8x1xi1>
    %258 = vector.broadcast %257 : vector<8x1xi1> to vector<8x32xi1>
    %259 = vector.broadcast %208 : i32 to vector<8x1xi32>
    %260 = arith.cmpi sgt, %11, %259 : vector<8x1xi32>
    %261 = vector.shape_cast %260 : vector<8x1xi1> to vector<8x1xi1>
    %262 = vector.broadcast %261 : vector<8x1xi1> to vector<8x32xi1>
    %263 = arith.select %258, %249, %12 : vector<8x32xi1>, vector<8x32xf32>
    %264 = arith.index_cast %210 : i32 to index
    %c0_50 = arith.constant 0 : index
    %265 = vector.load %arg5[%264, %c0_50] : memref<64x64xf32, #tpu.memory_space<vmem>>, vector<8x32xf32>
    tpu.vector_store %arg5[%264, %c0_50], %263 {strides = array<i32>} : memref<64x64xf32, #tpu.memory_space<vmem>>, vector<8x32xf32>,
    %266 = arith.select %262, %254, %12 : vector<8x32xi1>, vector<8x32xf32>
    %267 = arith.index_cast %212 : i32 to index
    %c32_51 = arith.constant 32 : index
    %268 = vector.load %arg5[%267, %c32_51] : memref<64x64xf32, #tpu.memory_space<vmem>>, vector<8x32xf32>
    tpu.vector_store %arg5[%267, %c32_51], %266 {strides = array<i32>} : memref<64x64xf32, #tpu.memory_space<vmem>>, vector<8x32xf32>,
    %269 = arith.select %258, %249, %204 : vector<8x32xi1>, vector<8x32xf32>
    %270 = arith.select %258, %247, %205 : vector<8x32xi1>, vector<8x32xf32>
    %271 = arith.select %262, %254, %206 : vector<8x32xi1>, vector<8x32xf32>
    %272 = arith.select %262, %252, %207 : vector<8x32xi1>, vector<8x32xf32>
    %c4_i32 = arith.constant 4 : i32
    %c7_i32_52 = arith.constant 7 : i32
    %273 = arith.subi %c7_i32_52, %c4_i32 : i32
    %c8_i32_53 = arith.constant 8 : i32
    %274 = arith.muli %c4_i32, %c8_i32_53 : i32
    %275 = tpu.assume_multiple %274, 8 : i32
    %c8_i32_54 = arith.constant 8 : i32
    %276 = arith.muli %273, %c8_i32_54 : i32
    %277 = tpu.assume_multiple %276, 8 : i32
    %278 = arith.index_cast %275 : i32 to index
    %c0_55 = arith.constant 0 : index
    %279 = vector.load %arg8[%278, %c0_55] : memref<64x256xf32, #tpu.memory_space<vmem>>, vector<8x128xf32>
    %280 = arith.truncf %269 : vector<8x32xf32> to vector<8x32xbf16>
    %cst_56 = arith.constant dense<0.000000e+00> : vector<8x128xf32>
    %281 = tpu.matmul %280, %9, %cst_56 {dimension_numbers = #tpu.dot_dimension_numbers<[1], [0], [0], [1], [0, 0, 1, 1], [], []>} : vector<8x32xbf16>, vector<32x128xbf16>, vector<8x128xf32> -> vector<8x128xf32>
    %282 = arith.addf %279, %281 : vector<8x128xf32>
    %283 = arith.index_cast %277 : i32 to index
    %c128_57 = arith.constant 128 : index
    %284 = vector.load %arg8[%283, %c128_57] : memref<64x256xf32, #tpu.memory_space<vmem>>, vector<8x128xf32>
    %285 = arith.truncf %271 : vector<8x32xf32> to vector<8x32xbf16>
    %cst_58 = arith.constant dense<0.000000e+00> : vector<8x128xf32>
    %286 = tpu.matmul %285, %10, %cst_58 {dimension_numbers = #tpu.dot_dimension_numbers<[1], [0], [0], [1], [0, 0, 1, 1], [], []>} : vector<8x32xbf16>, vector<32x128xbf16>, vector<8x128xf32> -> vector<8x128xf32>
    %287 = arith.addf %284, %286 : vector<8x128xf32>
    %288 = vector.extract_strided_slice %282 {offsets = [0, 0], sizes = [8, 96], strides = [1, 1]} : vector<8x128xf32> to vector<8x96xf32>
    %289 = arith.negf %288 : vector<8x96xf32>
    %290 = math.exp %289 : vector<8x96xf32>
    %cst_59 = arith.constant 1.000000e+00 : f32
    %291 = vector.broadcast %cst_59 : f32 to vector<8x96xf32>
    %292 = arith.addf %291, %290 : vector<8x96xf32>
    %293 = arith.divf %291, %292 : vector<8x96xf32>
    %294 = vector.extract_strided_slice %282 {offsets = [0, 96], sizes = [8, 32], strides = [1, 1]} : vector<8x128xf32> to vector<8x32xf32>
    %295 = math.tanh %294 : vector<8x32xf32>
    %296 = vector.extract_strided_slice %293 {offsets = [0, 0], sizes = [8, 32], strides = [1, 1]} : vector<8x96xf32> to vector<8x32xf32>
    %297 = vector.extract_strided_slice %293 {offsets = [0, 32], sizes = [8, 32], strides = [1, 1]} : vector<8x96xf32> to vector<8x32xf32>
    %298 = vector.extract_strided_slice %293 {offsets = [0, 64], sizes = [8, 32], strides = [1, 1]} : vector<8x96xf32> to vector<8x32xf32>
    %299 = vector.extract_strided_slice %287 {offsets = [0, 0], sizes = [8, 96], strides = [1, 1]} : vector<8x128xf32> to vector<8x96xf32>
    %300 = arith.negf %299 : vector<8x96xf32>
    %301 = math.exp %300 : vector<8x96xf32>
    %cst_60 = arith.constant 1.000000e+00 : f32
    %302 = vector.broadcast %cst_60 : f32 to vector<8x96xf32>
    %303 = arith.addf %302, %301 : vector<8x96xf32>
    %304 = arith.divf %302, %303 : vector<8x96xf32>
    %305 = vector.extract_strided_slice %287 {offsets = [0, 96], sizes = [8, 32], strides = [1, 1]} : vector<8x128xf32> to vector<8x32xf32>
    %306 = math.tanh %305 : vector<8x32xf32>
    %307 = vector.extract_strided_slice %304 {offsets = [0, 0], sizes = [8, 32], strides = [1, 1]} : vector<8x96xf32> to vector<8x32xf32>
    %308 = vector.extract_strided_slice %304 {offsets = [0, 32], sizes = [8, 32], strides = [1, 1]} : vector<8x96xf32> to vector<8x32xf32>
    %309 = vector.extract_strided_slice %304 {offsets = [0, 64], sizes = [8, 32], strides = [1, 1]} : vector<8x96xf32> to vector<8x32xf32>
    %310 = arith.mulf %297, %270 : vector<8x32xf32>
    %311 = arith.mulf %296, %295 : vector<8x32xf32>
    %312 = arith.addf %310, %311 : vector<8x32xf32>
    %313 = math.tanh %312 : vector<8x32xf32>
    %314 = arith.mulf %298, %313 : vector<8x32xf32>
    %315 = arith.mulf %308, %272 : vector<8x32xf32>
    %316 = arith.mulf %307, %306 : vector<8x32xf32>
    %317 = arith.addf %315, %316 : vector<8x32xf32>
    %318 = math.tanh %317 : vector<8x32xf32>
    %319 = arith.mulf %309, %318 : vector<8x32xf32>
    %320 = vector.broadcast %c4_i32 : i32 to vector<8x1xi32>
    %321 = arith.cmpi sgt, %11, %320 : vector<8x1xi32>
    %322 = vector.shape_cast %321 : vector<8x1xi1> to vector<8x1xi1>
    %323 = vector.broadcast %322 : vector<8x1xi1> to vector<8x32xi1>
    %324 = vector.broadcast %273 : i32 to vector<8x1xi32>
    %325 = arith.cmpi sgt, %11, %324 : vector<8x1xi32>
    %326 = vector.shape_cast %325 : vector<8x1xi1> to vector<8x1xi1>
    %327 = vector.broadcast %326 : vector<8x1xi1> to vector<8x32xi1>
    %328 = arith.select %323, %314, %12 : vector<8x32xi1>, vector<8x32xf32>
    %329 = arith.index_cast %275 : i32 to index
    %c0_61 = arith.constant 0 : index
    %330 = vector.load %arg5[%329, %c0_61] : memref<64x64xf32, #tpu.memory_space<vmem>>, vector<8x32xf32>
    tpu.vector_store %arg5[%329, %c0_61], %328 {strides = array<i32>} : memref<64x64xf32, #tpu.memory_space<vmem>>, vector<8x32xf32>,
    %331 = arith.select %327, %319, %12 : vector<8x32xi1>, vector<8x32xf32>
    %332 = arith.index_cast %277 : i32 to index
    %c32_62 = arith.constant 32 : index
    %333 = vector.load %arg5[%332, %c32_62] : memref<64x64xf32, #tpu.memory_space<vmem>>, vector<8x32xf32>
    tpu.vector_store %arg5[%332, %c32_62], %331 {strides = array<i32>} : memref<64x64xf32, #tpu.memory_space<vmem>>, vector<8x32xf32>,
    %334 = arith.select %323, %314, %269 : vector<8x32xi1>, vector<8x32xf32>
    %335 = arith.select %323, %312, %270 : vector<8x32xi1>, vector<8x32xf32>
    %336 = arith.select %327, %319, %271 : vector<8x32xi1>, vector<8x32xf32>
    %337 = arith.select %327, %317, %272 : vector<8x32xi1>, vector<8x32xf32>
    %c5_i32 = arith.constant 5 : i32
    %c7_i32_63 = arith.constant 7 : i32
    %338 = arith.subi %c7_i32_63, %c5_i32 : i32
    %c8_i32_64 = arith.constant 8 : i32
    %339 = arith.muli %c5_i32, %c8_i32_64 : i32
    %340 = tpu.assume_multiple %339, 8 : i32
    %c8_i32_65 = arith.constant 8 : i32
    %341 = arith.muli %338, %c8_i32_65 : i32
    %342 = tpu.assume_multiple %341, 8 : i32
    %343 = arith.index_cast %340 : i32 to index
    %c0_66 = arith.constant 0 : index
    %344 = vector.load %arg8[%343, %c0_66] : memref<64x256xf32, #tpu.memory_space<vmem>>, vector<8x128xf32>
    %345 = arith.truncf %334 : vector<8x32xf32> to vector<8x32xbf16>
    %cst_67 = arith.constant dense<0.000000e+00> : vector<8x128xf32>
    %346 = tpu.matmul %345, %9, %cst_67 {dimension_numbers = #tpu.dot_dimension_numbers<[1], [0], [0], [1], [0, 0, 1, 1], [], []>} : vector<8x32xbf16>, vector<32x128xbf16>, vector<8x128xf32> -> vector<8x128xf32>
    %347 = arith.addf %344, %346 : vector<8x128xf32>
    %348 = arith.index_cast %342 : i32 to index
    %c128_68 = arith.constant 128 : index
    %349 = vector.load %arg8[%348, %c128_68] : memref<64x256xf32, #tpu.memory_space<vmem>>, vector<8x128xf32>
    %350 = arith.truncf %336 : vector<8x32xf32> to vector<8x32xbf16>
    %cst_69 = arith.constant dense<0.000000e+00> : vector<8x128xf32>
    %351 = tpu.matmul %350, %10, %cst_69 {dimension_numbers = #tpu.dot_dimension_numbers<[1], [0], [0], [1], [0, 0, 1, 1], [], []>} : vector<8x32xbf16>, vector<32x128xbf16>, vector<8x128xf32> -> vector<8x128xf32>
    %352 = arith.addf %349, %351 : vector<8x128xf32>
    %353 = vector.extract_strided_slice %347 {offsets = [0, 0], sizes = [8, 96], strides = [1, 1]} : vector<8x128xf32> to vector<8x96xf32>
    %354 = arith.negf %353 : vector<8x96xf32>
    %355 = math.exp %354 : vector<8x96xf32>
    %cst_70 = arith.constant 1.000000e+00 : f32
    %356 = vector.broadcast %cst_70 : f32 to vector<8x96xf32>
    %357 = arith.addf %356, %355 : vector<8x96xf32>
    %358 = arith.divf %356, %357 : vector<8x96xf32>
    %359 = vector.extract_strided_slice %347 {offsets = [0, 96], sizes = [8, 32], strides = [1, 1]} : vector<8x128xf32> to vector<8x32xf32>
    %360 = math.tanh %359 : vector<8x32xf32>
    %361 = vector.extract_strided_slice %358 {offsets = [0, 0], sizes = [8, 32], strides = [1, 1]} : vector<8x96xf32> to vector<8x32xf32>
    %362 = vector.extract_strided_slice %358 {offsets = [0, 32], sizes = [8, 32], strides = [1, 1]} : vector<8x96xf32> to vector<8x32xf32>
    %363 = vector.extract_strided_slice %358 {offsets = [0, 64], sizes = [8, 32], strides = [1, 1]} : vector<8x96xf32> to vector<8x32xf32>
    %364 = vector.extract_strided_slice %352 {offsets = [0, 0], sizes = [8, 96], strides = [1, 1]} : vector<8x128xf32> to vector<8x96xf32>
    %365 = arith.negf %364 : vector<8x96xf32>
    %366 = math.exp %365 : vector<8x96xf32>
    %cst_71 = arith.constant 1.000000e+00 : f32
    %367 = vector.broadcast %cst_71 : f32 to vector<8x96xf32>
    %368 = arith.addf %367, %366 : vector<8x96xf32>
    %369 = arith.divf %367, %368 : vector<8x96xf32>
    %370 = vector.extract_strided_slice %352 {offsets = [0, 96], sizes = [8, 32], strides = [1, 1]} : vector<8x128xf32> to vector<8x32xf32>
    %371 = math.tanh %370 : vector<8x32xf32>
    %372 = vector.extract_strided_slice %369 {offsets = [0, 0], sizes = [8, 32], strides = [1, 1]} : vector<8x96xf32> to vector<8x32xf32>
    %373 = vector.extract_strided_slice %369 {offsets = [0, 32], sizes = [8, 32], strides = [1, 1]} : vector<8x96xf32> to vector<8x32xf32>
    %374 = vector.extract_strided_slice %369 {offsets = [0, 64], sizes = [8, 32], strides = [1, 1]} : vector<8x96xf32> to vector<8x32xf32>
    %375 = arith.mulf %362, %335 : vector<8x32xf32>
    %376 = arith.mulf %361, %360 : vector<8x32xf32>
    %377 = arith.addf %375, %376 : vector<8x32xf32>
    %378 = math.tanh %377 : vector<8x32xf32>
    %379 = arith.mulf %363, %378 : vector<8x32xf32>
    %380 = arith.mulf %373, %337 : vector<8x32xf32>
    %381 = arith.mulf %372, %371 : vector<8x32xf32>
    %382 = arith.addf %380, %381 : vector<8x32xf32>
    %383 = math.tanh %382 : vector<8x32xf32>
    %384 = arith.mulf %374, %383 : vector<8x32xf32>
    %385 = vector.broadcast %c5_i32 : i32 to vector<8x1xi32>
    %386 = arith.cmpi sgt, %11, %385 : vector<8x1xi32>
    %387 = vector.shape_cast %386 : vector<8x1xi1> to vector<8x1xi1>
    %388 = vector.broadcast %387 : vector<8x1xi1> to vector<8x32xi1>
    %389 = vector.broadcast %338 : i32 to vector<8x1xi32>
    %390 = arith.cmpi sgt, %11, %389 : vector<8x1xi32>
    %391 = vector.shape_cast %390 : vector<8x1xi1> to vector<8x1xi1>
    %392 = vector.broadcast %391 : vector<8x1xi1> to vector<8x32xi1>
    %393 = arith.select %388, %379, %12 : vector<8x32xi1>, vector<8x32xf32>
    %394 = arith.index_cast %340 : i32 to index
    %c0_72 = arith.constant 0 : index
    %395 = vector.load %arg5[%394, %c0_72] : memref<64x64xf32, #tpu.memory_space<vmem>>, vector<8x32xf32>
    tpu.vector_store %arg5[%394, %c0_72], %393 {strides = array<i32>} : memref<64x64xf32, #tpu.memory_space<vmem>>, vector<8x32xf32>,
    %396 = arith.select %392, %384, %12 : vector<8x32xi1>, vector<8x32xf32>
    %397 = arith.index_cast %342 : i32 to index
    %c32_73 = arith.constant 32 : index
    %398 = vector.load %arg5[%397, %c32_73] : memref<64x64xf32, #tpu.memory_space<vmem>>, vector<8x32xf32>
    tpu.vector_store %arg5[%397, %c32_73], %396 {strides = array<i32>} : memref<64x64xf32, #tpu.memory_space<vmem>>, vector<8x32xf32>,
    %399 = arith.select %388, %379, %334 : vector<8x32xi1>, vector<8x32xf32>
    %400 = arith.select %388, %377, %335 : vector<8x32xi1>, vector<8x32xf32>
    %401 = arith.select %392, %384, %336 : vector<8x32xi1>, vector<8x32xf32>
    %402 = arith.select %392, %382, %337 : vector<8x32xi1>, vector<8x32xf32>
    %c6_i32 = arith.constant 6 : i32
    %c7_i32_74 = arith.constant 7 : i32
    %403 = arith.subi %c7_i32_74, %c6_i32 : i32
    %c8_i32_75 = arith.constant 8 : i32
    %404 = arith.muli %c6_i32, %c8_i32_75 : i32
    %405 = tpu.assume_multiple %404, 8 : i32
    %c8_i32_76 = arith.constant 8 : i32
    %406 = arith.muli %403, %c8_i32_76 : i32
    %407 = tpu.assume_multiple %406, 8 : i32
    %408 = arith.index_cast %405 : i32 to index
    %c0_77 = arith.constant 0 : index
    %409 = vector.load %arg8[%408, %c0_77] : memref<64x256xf32, #tpu.memory_space<vmem>>, vector<8x128xf32>
    %410 = arith.truncf %399 : vector<8x32xf32> to vector<8x32xbf16>
    %cst_78 = arith.constant dense<0.000000e+00> : vector<8x128xf32>
    %411 = tpu.matmul %410, %9, %cst_78 {dimension_numbers = #tpu.dot_dimension_numbers<[1], [0], [0], [1], [0, 0, 1, 1], [], []>} : vector<8x32xbf16>, vector<32x128xbf16>, vector<8x128xf32> -> vector<8x128xf32>
    %412 = arith.addf %409, %411 : vector<8x128xf32>
    %413 = arith.index_cast %407 : i32 to index
    %c128_79 = arith.constant 128 : index
    %414 = vector.load %arg8[%413, %c128_79] : memref<64x256xf32, #tpu.memory_space<vmem>>, vector<8x128xf32>
    %415 = arith.truncf %401 : vector<8x32xf32> to vector<8x32xbf16>
    %cst_80 = arith.constant dense<0.000000e+00> : vector<8x128xf32>
    %416 = tpu.matmul %415, %10, %cst_80 {dimension_numbers = #tpu.dot_dimension_numbers<[1], [0], [0], [1], [0, 0, 1, 1], [], []>} : vector<8x32xbf16>, vector<32x128xbf16>, vector<8x128xf32> -> vector<8x128xf32>
    %417 = arith.addf %414, %416 : vector<8x128xf32>
    %418 = vector.extract_strided_slice %412 {offsets = [0, 0], sizes = [8, 96], strides = [1, 1]} : vector<8x128xf32> to vector<8x96xf32>
    %419 = arith.negf %418 : vector<8x96xf32>
    %420 = math.exp %419 : vector<8x96xf32>
    %cst_81 = arith.constant 1.000000e+00 : f32
    %421 = vector.broadcast %cst_81 : f32 to vector<8x96xf32>
    %422 = arith.addf %421, %420 : vector<8x96xf32>
    %423 = arith.divf %421, %422 : vector<8x96xf32>
    %424 = vector.extract_strided_slice %412 {offsets = [0, 96], sizes = [8, 32], strides = [1, 1]} : vector<8x128xf32> to vector<8x32xf32>
    %425 = math.tanh %424 : vector<8x32xf32>
    %426 = vector.extract_strided_slice %423 {offsets = [0, 0], sizes = [8, 32], strides = [1, 1]} : vector<8x96xf32> to vector<8x32xf32>
    %427 = vector.extract_strided_slice %423 {offsets = [0, 32], sizes = [8, 32], strides = [1, 1]} : vector<8x96xf32> to vector<8x32xf32>
    %428 = vector.extract_strided_slice %423 {offsets = [0, 64], sizes = [8, 32], strides = [1, 1]} : vector<8x96xf32> to vector<8x32xf32>
    %429 = vector.extract_strided_slice %417 {offsets = [0, 0], sizes = [8, 96], strides = [1, 1]} : vector<8x128xf32> to vector<8x96xf32>
    %430 = arith.negf %429 : vector<8x96xf32>
    %431 = math.exp %430 : vector<8x96xf32>
    %cst_82 = arith.constant 1.000000e+00 : f32
    %432 = vector.broadcast %cst_82 : f32 to vector<8x96xf32>
    %433 = arith.addf %432, %431 : vector<8x96xf32>
    %434 = arith.divf %432, %433 : vector<8x96xf32>
    %435 = vector.extract_strided_slice %417 {offsets = [0, 96], sizes = [8, 32], strides = [1, 1]} : vector<8x128xf32> to vector<8x32xf32>
    %436 = math.tanh %435 : vector<8x32xf32>
    %437 = vector.extract_strided_slice %434 {offsets = [0, 0], sizes = [8, 32], strides = [1, 1]} : vector<8x96xf32> to vector<8x32xf32>
    %438 = vector.extract_strided_slice %434 {offsets = [0, 32], sizes = [8, 32], strides = [1, 1]} : vector<8x96xf32> to vector<8x32xf32>
    %439 = vector.extract_strided_slice %434 {offsets = [0, 64], sizes = [8, 32], strides = [1, 1]} : vector<8x96xf32> to vector<8x32xf32>
    %440 = arith.mulf %427, %400 : vector<8x32xf32>
    %441 = arith.mulf %426, %425 : vector<8x32xf32>
    %442 = arith.addf %440, %441 : vector<8x32xf32>
    %443 = math.tanh %442 : vector<8x32xf32>
    %444 = arith.mulf %428, %443 : vector<8x32xf32>
    %445 = arith.mulf %438, %402 : vector<8x32xf32>
    %446 = arith.mulf %437, %436 : vector<8x32xf32>
    %447 = arith.addf %445, %446 : vector<8x32xf32>
    %448 = math.tanh %447 : vector<8x32xf32>
    %449 = arith.mulf %439, %448 : vector<8x32xf32>
    %450 = vector.broadcast %c6_i32 : i32 to vector<8x1xi32>
    %451 = arith.cmpi sgt, %11, %450 : vector<8x1xi32>
    %452 = vector.shape_cast %451 : vector<8x1xi1> to vector<8x1xi1>
    %453 = vector.broadcast %452 : vector<8x1xi1> to vector<8x32xi1>
    %454 = vector.broadcast %403 : i32 to vector<8x1xi32>
    %455 = arith.cmpi sgt, %11, %454 : vector<8x1xi32>
    %456 = vector.shape_cast %455 : vector<8x1xi1> to vector<8x1xi1>
    %457 = vector.broadcast %456 : vector<8x1xi1> to vector<8x32xi1>
    %458 = arith.select %453, %444, %12 : vector<8x32xi1>, vector<8x32xf32>
    %459 = arith.index_cast %405 : i32 to index
    %c0_83 = arith.constant 0 : index
    %460 = vector.load %arg5[%459, %c0_83] : memref<64x64xf32, #tpu.memory_space<vmem>>, vector<8x32xf32>
    tpu.vector_store %arg5[%459, %c0_83], %458 {strides = array<i32>} : memref<64x64xf32, #tpu.memory_space<vmem>>, vector<8x32xf32>,
    %461 = arith.select %457, %449, %12 : vector<8x32xi1>, vector<8x32xf32>
    %462 = arith.index_cast %407 : i32 to index
    %c32_84 = arith.constant 32 : index
    %463 = vector.load %arg5[%462, %c32_84] : memref<64x64xf32, #tpu.memory_space<vmem>>, vector<8x32xf32>
    tpu.vector_store %arg5[%462, %c32_84], %461 {strides = array<i32>} : memref<64x64xf32, #tpu.memory_space<vmem>>, vector<8x32xf32>,
    %464 = arith.select %453, %444, %399 : vector<8x32xi1>, vector<8x32xf32>
    %465 = arith.select %453, %442, %400 : vector<8x32xi1>, vector<8x32xf32>
    %466 = arith.select %457, %449, %401 : vector<8x32xi1>, vector<8x32xf32>
    %467 = arith.select %457, %447, %402 : vector<8x32xi1>, vector<8x32xf32>
    %c7_i32_85 = arith.constant 7 : i32
    %c7_i32_86 = arith.constant 7 : i32
    %468 = arith.subi %c7_i32_86, %c7_i32_85 : i32
    %c8_i32_87 = arith.constant 8 : i32
    %469 = arith.muli %c7_i32_85, %c8_i32_87 : i32
    %470 = tpu.assume_multiple %469, 8 : i32
    %c8_i32_88 = arith.constant 8 : i32
    %471 = arith.muli %468, %c8_i32_88 : i32
    %472 = tpu.assume_multiple %471, 8 : i32
    %473 = arith.index_cast %470 : i32 to index
    %c0_89 = arith.constant 0 : index
    %474 = vector.load %arg8[%473, %c0_89] : memref<64x256xf32, #tpu.memory_space<vmem>>, vector<8x128xf32>
    %475 = arith.truncf %464 : vector<8x32xf32> to vector<8x32xbf16>
    %cst_90 = arith.constant dense<0.000000e+00> : vector<8x128xf32>
    %476 = tpu.matmul %475, %9, %cst_90 {dimension_numbers = #tpu.dot_dimension_numbers<[1], [0], [0], [1], [0, 0, 1, 1], [], []>} : vector<8x32xbf16>, vector<32x128xbf16>, vector<8x128xf32> -> vector<8x128xf32>
    %477 = arith.addf %474, %476 : vector<8x128xf32>
    %478 = arith.index_cast %472 : i32 to index
    %c128_91 = arith.constant 128 : index
    %479 = vector.load %arg8[%478, %c128_91] : memref<64x256xf32, #tpu.memory_space<vmem>>, vector<8x128xf32>
    %480 = arith.truncf %466 : vector<8x32xf32> to vector<8x32xbf16>
    %cst_92 = arith.constant dense<0.000000e+00> : vector<8x128xf32>
    %481 = tpu.matmul %480, %10, %cst_92 {dimension_numbers = #tpu.dot_dimension_numbers<[1], [0], [0], [1], [0, 0, 1, 1], [], []>} : vector<8x32xbf16>, vector<32x128xbf16>, vector<8x128xf32> -> vector<8x128xf32>
    %482 = arith.addf %479, %481 : vector<8x128xf32>
    %483 = vector.extract_strided_slice %477 {offsets = [0, 0], sizes = [8, 96], strides = [1, 1]} : vector<8x128xf32> to vector<8x96xf32>
    %484 = arith.negf %483 : vector<8x96xf32>
    %485 = math.exp %484 : vector<8x96xf32>
    %cst_93 = arith.constant 1.000000e+00 : f32
    %486 = vector.broadcast %cst_93 : f32 to vector<8x96xf32>
    %487 = arith.addf %486, %485 : vector<8x96xf32>
    %488 = arith.divf %486, %487 : vector<8x96xf32>
    %489 = vector.extract_strided_slice %477 {offsets = [0, 96], sizes = [8, 32], strides = [1, 1]} : vector<8x128xf32> to vector<8x32xf32>
    %490 = math.tanh %489 : vector<8x32xf32>
    %491 = vector.extract_strided_slice %488 {offsets = [0, 0], sizes = [8, 32], strides = [1, 1]} : vector<8x96xf32> to vector<8x32xf32>
    %492 = vector.extract_strided_slice %488 {offsets = [0, 32], sizes = [8, 32], strides = [1, 1]} : vector<8x96xf32> to vector<8x32xf32>
    %493 = vector.extract_strided_slice %488 {offsets = [0, 64], sizes = [8, 32], strides = [1, 1]} : vector<8x96xf32> to vector<8x32xf32>
    %494 = vector.extract_strided_slice %482 {offsets = [0, 0], sizes = [8, 96], strides = [1, 1]} : vector<8x128xf32> to vector<8x96xf32>
    %495 = arith.negf %494 : vector<8x96xf32>
    %496 = math.exp %495 : vector<8x96xf32>
    %cst_94 = arith.constant 1.000000e+00 : f32
    %497 = vector.broadcast %cst_94 : f32 to vector<8x96xf32>
    %498 = arith.addf %497, %496 : vector<8x96xf32>
    %499 = arith.divf %497, %498 : vector<8x96xf32>
    %500 = vector.extract_strided_slice %482 {offsets = [0, 96], sizes = [8, 32], strides = [1, 1]} : vector<8x128xf32> to vector<8x32xf32>
    %501 = math.tanh %500 : vector<8x32xf32>
    %502 = vector.extract_strided_slice %499 {offsets = [0, 0], sizes = [8, 32], strides = [1, 1]} : vector<8x96xf32> to vector<8x32xf32>
    %503 = vector.extract_strided_slice %499 {offsets = [0, 32], sizes = [8, 32], strides = [1, 1]} : vector<8x96xf32> to vector<8x32xf32>
    %504 = vector.extract_strided_slice %499 {offsets = [0, 64], sizes = [8, 32], strides = [1, 1]} : vector<8x96xf32> to vector<8x32xf32>
    %505 = arith.mulf %492, %465 : vector<8x32xf32>
    %506 = arith.mulf %491, %490 : vector<8x32xf32>
    %507 = arith.addf %505, %506 : vector<8x32xf32>
    %508 = math.tanh %507 : vector<8x32xf32>
    %509 = arith.mulf %493, %508 : vector<8x32xf32>
    %510 = arith.mulf %503, %467 : vector<8x32xf32>
    %511 = arith.mulf %502, %501 : vector<8x32xf32>
    %512 = arith.addf %510, %511 : vector<8x32xf32>
    %513 = math.tanh %512 : vector<8x32xf32>
    %514 = arith.mulf %504, %513 : vector<8x32xf32>
    %515 = vector.broadcast %c7_i32_85 : i32 to vector<8x1xi32>
    %516 = arith.cmpi sgt, %11, %515 : vector<8x1xi32>
    %517 = vector.shape_cast %516 : vector<8x1xi1> to vector<8x1xi1>
    %518 = vector.broadcast %517 : vector<8x1xi1> to vector<8x32xi1>
    %519 = vector.broadcast %468 : i32 to vector<8x1xi32>
    %520 = arith.cmpi sgt, %11, %519 : vector<8x1xi32>
    %521 = vector.shape_cast %520 : vector<8x1xi1> to vector<8x1xi1>
    %522 = vector.broadcast %521 : vector<8x1xi1> to vector<8x32xi1>
    %523 = arith.select %518, %509, %12 : vector<8x32xi1>, vector<8x32xf32>
    %524 = arith.index_cast %470 : i32 to index
    %c0_95 = arith.constant 0 : index
    %525 = vector.load %arg5[%524, %c0_95] : memref<64x64xf32, #tpu.memory_space<vmem>>, vector<8x32xf32>
    tpu.vector_store %arg5[%524, %c0_95], %523 {strides = array<i32>} : memref<64x64xf32, #tpu.memory_space<vmem>>, vector<8x32xf32>,
    %526 = arith.select %522, %514, %12 : vector<8x32xi1>, vector<8x32xf32>
    %527 = arith.index_cast %472 : i32 to index
    %c32_96 = arith.constant 32 : index
    %528 = vector.load %arg5[%527, %c32_96] : memref<64x64xf32, #tpu.memory_space<vmem>>, vector<8x32xf32>
    tpu.vector_store %arg5[%527, %c32_96], %526 {strides = array<i32>} : memref<64x64xf32, #tpu.memory_space<vmem>>, vector<8x32xf32>,
    %529 = arith.select %518, %509, %464 : vector<8x32xi1>, vector<8x32xf32>
    %530 = arith.select %518, %507, %465 : vector<8x32xi1>, vector<8x32xf32>
    %531 = arith.select %522, %514, %466 : vector<8x32xi1>, vector<8x32xf32>
    %532 = arith.select %522, %512, %467 : vector<8x32xi1>, vector<8x32xf32>
    %c8_i32_97 = arith.constant 8 : i32
    %c0_98 = arith.constant 0 : index
    %c0_99 = arith.constant 0 : index
    %533 = vector.load %arg6[%c0_98, %c0_99] : memref<8x64xf32, #tpu.memory_space<vmem>>, vector<8x32xf32>
    tpu.vector_store %arg6[%c0_98, %c0_99], %529 {strides = array<i32>} : memref<8x64xf32, #tpu.memory_space<vmem>>, vector<8x32xf32>,
    %c0_100 = arith.constant 0 : index
    %c32_101 = arith.constant 32 : index
    %534 = vector.load %arg6[%c0_100, %c32_101] : memref<8x64xf32, #tpu.memory_space<vmem>>, vector<8x32xf32>
    tpu.vector_store %arg6[%c0_100, %c32_101], %531 {strides = array<i32>} : memref<8x64xf32, #tpu.memory_space<vmem>>, vector<8x32xf32>,
    %c0_102 = arith.constant 0 : index
    %c0_103 = arith.constant 0 : index
    %535 = vector.load %arg7[%c0_102, %c0_103] : memref<8x64xf32, #tpu.memory_space<vmem>>, vector<8x32xf32>
    tpu.vector_store %arg7[%c0_102, %c0_103], %530 {strides = array<i32>} : memref<8x64xf32, #tpu.memory_space<vmem>>, vector<8x32xf32>,
    %c0_104 = arith.constant 0 : index
    %c32_105 = arith.constant 32 : index
    %536 = vector.load %arg7[%c0_104, %c32_105] : memref<8x64xf32, #tpu.memory_space<vmem>>, vector<8x32xf32>
    tpu.vector_store %arg7[%c0_104, %c32_105], %532 {strides = array<i32>} : memref<8x64xf32, #tpu.memory_space<vmem>>, vector<8x32xf32>,
    return
  }
}

</mosaic_0001>

<llo_original>
// kernel: encoder_forward.2
$region0: #{encoder_forward.2}
  #allocation0 [shape = 'u32[]', space=smem, size = 0x4, offset = 0x4, fixed_abs, tag = 'smem constant byte address 0x4 - core index']
  #allocation1 [shape = 'u32[144,128]{1,0:T(1,128)}', space=vmem, size = 0x12000, scoped, tag = 'internal scratch']
  #allocation2 [shape = 'f32[64,256]{1,0:T(8,128)}', space=vmem, size = 0x10000, scoped, tag = 'scratch operand']
  %s0 = inlined_call_operand.vmem [shape: s32[8,1], index: 0, kind: input, shape index: {}]
  %s1 = inlined_call_operand.vmem [shape: f32[64,32], index: 1, kind: input, shape index: {}]
  %s2 = inlined_call_operand.vmem [shape: bf16[32,256], index: 2, kind: input, shape index: {}]
  %s3 = inlined_call_operand.vmem [shape: bf16[32,256], index: 3, kind: input, shape index: {}]
  %s4 = inlined_call_operand.vmem [shape: f32[1,256], index: 4, kind: input, shape index: {}]
  %s5 = inlined_call_operand.vmem [shape: f32[64,64], index: 5, kind: output, shape index: {0}]
  %s6 = inlined_call_operand.vmem [shape: f32[8,64], index: 6, kind: output, shape index: {1}]
  %s7 = inlined_call_operand.vmem [shape: f32[8,64], index: 7, kind: output, shape index: {2}]
  %8 = xla_tuple %s5, %s6, %s7
  %s9 = sld [smem:[#allocation0]]
  $region46: #{encoder_forward.2} parent=0
    _
  %s11 = ssub.s32 1, %s9
  %s12 = scalar_select 0, %s11, %s9
  // Predicated region
  $region2: #{encoder_forward.2} parent=0 // pred_check
    _
  $region3: #{encoder_forward.2} parent=0 // pred_check_branch
    %14 = sbr.rel (0) target = $region5
  $region4: #{encoder_forward.2} parent=0 // pred_region
    _
  $region5: #{encoder_forward.2} parent=0 // pred_fallthru
    _
  // Predicated region
  $region6: #{encoder_forward.2} parent=0 // pred_check
    _
  $region7: #{encoder_forward.2} parent=0 // pred_check_branch
    %16 = sbr.rel (0) target = $region9
  $region8: #{encoder_forward.2} parent=0 // pred_region
    _
  $region9: #{encoder_forward.2} parent=0 // pred_fallthru
    _
  // Predicated region
  $region10: #{encoder_forward.2} parent=0 // pred_check
    _
  $region11: #{encoder_forward.2} parent=0 // pred_check_branch
    %18 = sbr.rel (0) target = $region13
  $region12: #{encoder_forward.2} parent=0 // pred_region
    _
  $region13: #{encoder_forward.2} parent=0 // pred_fallthru
    _
  // Predicated region
  $region14: #{encoder_forward.2} parent=0 // pred_check
    _
  $region15: #{encoder_forward.2} parent=0 // pred_check_branch
    %20 = sbr.rel (0) target = $region17
  $region16: #{encoder_forward.2} parent=0 // pred_region
    _
  $region17: #{encoder_forward.2} parent=0 // pred_fallthru
    _
  // Predicated region
  $region18: #{encoder_forward.2} parent=0 // pred_check
    _
  $region19: #{encoder_forward.2} parent=0 // pred_check_branch
    %22 = sbr.rel (0) target = $region21
  $region20: #{encoder_forward.2} parent=0 // pred_region
    _
  $region21: #{encoder_forward.2} parent=0 // pred_fallthru
    _
  %v24 = vld [vmem:[%s1] sm:$0xff]
  %v25 = vld [vmem:[%s1 + $0x8] sm:$0xff]
  %v26 = vld [vmem:[%s1 + $0x10] sm:$0xff]
  %v27 = vld [vmem:[%s1 + $0x18] sm:$0xff]
  %v28 = vld [vmem:[%s1 + $0x20] sm:$0xff]
  %v29 = vld [vmem:[%s1 + $0x28] sm:$0xff]
  %v30 = vld [vmem:[%s1 + $0x30] sm:$0xff]
  %v31 = vld [vmem:[%s1 + $0x38] sm:$0xff]
  %v32 = vpack.c.bf16 %v25, %v24
  %v33 = vpack.c.bf16 %v27, %v26
  %v34 = vpack.c.bf16 %v29, %v28
  %v35 = vpack.c.bf16 %v31, %v30
  %v36 = vld [vmem:[%s2] sm:$0xff]
  %v37 = vld [vmem:[%s2 + $0x8] sm:$0xff]
  %v38 = vld [vmem:[%s2 + $0x10] sm:$0xff]
  %v39 = vld [vmem:[%s2 + $0x18] sm:$0xff]
  %v40 = vld [vmem:[%s4] sm:$0x3]
  %v42 = vlaneseq
  %v43 = vshrl.u32 %v42, 7
  %v44 = vsub.s32 0, %v43
  %v45 = vrot.slane %v40, %v44
  %v46 = vlaneseq
  %v47 = vshrl.u32 %v46, 7
  %v48 = vsub.s32 1, %v47
  %v49 = vrot.slane %v40, %v48
  %v56 = vunpack.c.l.b16 %v36
  %v57 = vunpack.c.h.b16 %v36
  %v58 = vunpack.c.l.b16 %v37
  %v59 = vunpack.c.h.b16 %v37
  %v60 = vunpack.c.l.b16 %v38
  %v61 = vunpack.c.h.b16 %v38
  %v62 = vunpack.c.l.b16 %v39
  %v63 = vunpack.c.h.b16 %v39
  %v64 = vpack.c.b16 %v58, %v56
  %v65 = vpack.c.b16 %v59, %v57
  %v66 = vpack.c.b16 %v62, %v60
  %v67 = vpack.c.b16 %v63, %v61
  %vm72 = vcmask 261120
  %v74 = vsel %vm72, %v32, 0
  %v77 = vsel %vm72, %v33, 0
  %v80 = vsel %vm72, %v34, 0
  %v83 = vsel %vm72, %v35, 0
  %85 = vmatprep.subr.bf16.mxu0 0
  %86 = vmatpush1.bf16.msra.mxu0 0
  %87 = vmatprep.subr.bf16.mxu0 0
  %88 = vmatpush1.bf16.msra.mxu0 0
  %89 = vmatprep.subr.bf16.mxu0 0
  %90 = vmatpush1.bf16.msra.mxu0 0
  %91 = vmatprep.subr.bf16.mxu0 0
  %92 = vmatpush1.bf16.msra.mxu0 0
  %93 = vmatprep.subr.bf16.mxu0 0
  %94 = vmatpush1.bf16.msra.mxu0 0
  %95 = vmatprep.subr.bf16.mxu0 0
  %96 = vmatpush1.bf16.msra.mxu0 0
  %97 = vmatprep.subr.bf16.mxu0 %v67
  %98 = vmatpush1.bf16.msra.mxu0 %v66
  %99 = vmatprep.subr.bf16.mxu0 %v65
  %100 = vmatpush1.bf16.msra.mxu0 %v64
  %101 = vmatprep.subr.bf16.mxu0 0
  %102 = vmatpush2.bf16.msra.mxu0 0
  %103 = vmatprep.subr.bf16.mxu0 0
  %104 = vmatpush2.bf16.msra.mxu0 0
  %105 = vmatprep.subr.bf16.mxu0 0
  %106 = vmatpush2.bf16.msra.mxu0 0
  %107 = vmatprep.subr.bf16.mxu0 0
  %108 = vmatpush2.bf16.msra.mxu0 0
  %109 = vmatprep.subr.bf16.mxu0 0
  %110 = vmatpush2.bf16.msra.mxu0 0
  %111 = vmatprep.subr.bf16.mxu0 0
  %112 = vmatpush2.bf16.msra.mxu0 0
  %113 = vmatprep.subr.bf16.mxu0 0
  %114 = vmatpush2.bf16.msra.mxu0 0
  %115 = vmatprep.subr.bf16.mxu0 0
  %116 = vmatpush2.bf16.msra.mxu0 0
  %117 = vmatprep.mubr.bf16.mxu0 0
  %118 = vmatmul.mubr.bf16.gmra.mxu0 %v74
  %v119 = vpop.f32.mrf.mxu0
  %v120 = vadd.f32 %v45, %v119
  %v121 = vpop.f32.mrf.mxu0
  %v122 = vadd.f32 %v49, %v121
  %v123 = vpop.f32.mrf.mxu0
  %v124 = vadd.f32 %v45, %v123
  %v125 = vpop.f32.mrf.mxu0
  %v126 = vadd.f32 %v49, %v125
  %127 = vmatprep.mubr.bf16.mxu0 0
  %128 = vmatmul.mubr.bf16.gmra.mxu0 %v77
  %v129 = vpop.f32.mrf.mxu0
  %v130 = vadd.f32 %v45, %v129
  %v131 = vpop.f32.mrf.mxu0
  %v132 = vadd.f32 %v49, %v131
  %v133 = vpop.f32.mrf.mxu0
  %v134 = vadd.f32 %v45, %v133
  %v135 = vpop.f32.mrf.mxu0
  %v136 = vadd.f32 %v49, %v135
  %137 = vmatprep.mubr.bf16.mxu0 0
  %138 = vmatmul.mubr.bf16.gmra.mxu0 %v80
  %v139 = vpop.f32.mrf.mxu0
  %v140 = vadd.f32 %v45, %v139
  %v141 = vpop.f32.mrf.mxu0
  %v142 = vadd.f32 %v49, %v141
  %v143 = vpop.f32.mrf.mxu0
  %v144 = vadd.f32 %v45, %v143
  %v145 = vpop.f32.mrf.mxu0
  %v146 = vadd.f32 %v49, %v145
  %147 = vmatprep.mubr.bf16.mxu0 0
  %148 = vmatmul.mubr.bf16.gmra.mxu0 %v83
  %v149 = vpop.f32.mrf.mxu0
  %v150 = vadd.f32 %v45, %v149
  %v151 = vpop.f32.mrf.mxu0
  %v152 = vadd.f32 %v49, %v151
  %v153 = vpop.f32.mrf.mxu0
  %v154 = vadd.f32 %v45, %v153
  %v155 = vpop.f32.mrf.mxu0
  %v156 = vadd.f32 %v49, %v155
  %157 = vdwg.mxu0
  %158 = vst [vmem:[#allocation2] sm:$0xff] %v120
  %159 = vst [vmem:[#allocation2 + $0x8] sm:$0xff] %v122
  %160 = vst [vmem:[#allocation2 + $0x10] sm:$0xff] %v124
  %161 = vst [vmem:[#allocation2 + $0x18] sm:$0xff] %v126
  %162 = vst [vmem:[#allocation2 + $0x20] sm:$0xff] %v130
  %163 = vst [vmem:[#allocation2 + $0x28] sm:$0xff] %v132
  %164 = vst [vmem:[#allocation2 + $0x30] sm:$0xff] %v134
  %165 = vst [vmem:[#allocation2 + $0x38] sm:$0xff] %v136
  %166 = vst [vmem:[#allocation2 + $0x40] sm:$0xff] %v140
  %167 = vst [vmem:[#allocation2 + $0x48] sm:$0xff] %v142
  %168 = vst [vmem:[#allocation2 + $0x50] sm:$0xff] %v144
  %169 = vst [vmem:[#allocation2 + $0x58] sm:$0xff] %v146
  %170 = vst [vmem:[#allocation2 + $0x60] sm:$0xff] %v150
  %171 = vst [vmem:[#allocation2 + $0x68] sm:$0xff] %v152
  %172 = vst [vmem:[#allocation2 + $0x70] sm:$0xff] %v154
  %173 = vst [vmem:[#allocation2 + $0x78] sm:$0xff] %v156
  %v174 = vld [vmem:[%s3] sm:$0xff]
  %v175 = vld [vmem:[%s3 + $0x8] sm:$0xff]
  %v176 = vld [vmem:[%s3 + $0x10] sm:$0xff]
  %v177 = vld [vmem:[%s3 + $0x18] sm:$0xff]
  %v178 = vld [vmem:[%s0] sm:$0xff]
  %s179 = smul.u32 0, 2
  %s180 = smul.addr %s179, 8
  %s181 = scalar_lea.vmem [#allocation2], %s180
  %v182 = vld [vmem:[%s181] sm:$0xff]
  %v187 = vunpack.c.l.b16 %v174
  %v188 = vunpack.c.l.b16 %v175
  %v189 = vunpack.c.l.b16 %v176
  %v190 = vunpack.c.l.b16 %v177
  %v191 = vpack.c.b16 %v188, %v187
  %v192 = vpack.c.b16 %v190, %v189
  %v196 = vsel %vm72, 0, 0
  %198 = vmatprep.subr.bf16.mxu0 0
  %199 = vmatpush1.bf16.msra.mxu0 0
  %200 = vmatprep.subr.bf16.mxu0 0
  %201 = vmatpush1.bf16.msra.mxu0 0
  %202 = vmatprep.subr.bf16.mxu0 0
  %203 = vmatpush1.bf16.msra.mxu0 0
  %204 = vmatprep.subr.bf16.mxu0 0
  %205 = vmatpush1.bf16.msra.mxu0 0
  %206 = vmatprep.subr.bf16.mxu0 0
  %207 = vmatpush1.bf16.msra.mxu0 0
  %208 = vmatprep.subr.bf16.mxu0 0
  %209 = vmatpush1.bf16.msra.mxu0 0
  %210 = vmatprep.subr.bf16.mxu0 0
  %211 = vmatpush1.bf16.msra.mxu0 %v192
  %212 = vmatprep.subr.bf16.mxu0 0
  %213 = vmatpush1.bf16.msra.mxu0 %v191
  %214 = vmatprep.subr.bf16.mxu0 0
  %215 = vmatpush2.bf16.msra.mxu0 0
  %216 = vmatprep.subr.bf16.mxu0 0
  %217 = vmatpush2.bf16.msra.mxu0 0
  %218 = vmatprep.subr.bf16.mxu0 0
  %219 = vmatpush2.bf16.msra.mxu0 0
  %220 = vmatprep.subr.bf16.mxu0 0
  %221 = vmatpush2.bf16.msra.mxu0 0
  %222 = vmatprep.subr.bf16.mxu0 0
  %223 = vmatpush2.bf16.msra.mxu0 0
  %224 = vmatprep.subr.bf16.mxu0 0
  %225 = vmatpush2.bf16.msra.mxu0 0
  %226 = vmatprep.subr.bf16.mxu0 0
  %227 = vmatpush2.bf16.msra.mxu0 0
  %228 = vmatprep.subr.bf16.mxu0 0
  %229 = vmatpush2.bf16.msra.mxu0 0
  %230 = vmatprep.mubr.bf16.mxu0 0
  %231 = vmatmul.mubr.bf16.gmra.mxu0 %v196
  %v232 = vpop.f32.mrf.mxu0
  %v233 = vadd.f32 0.0, %v232
  %v234 = vpop.f32.mrf.mxu0
  %v235 = vpop.f32.mrf.mxu0
  %v236 = vpop.f32.mrf.mxu0
  %237 = vdwg.mxu0
  %v238 = vadd.f32 %v182, %v233
  %s239 = smul.u32 7, 2
  %s240 = smul.addr %s239, 8
  %s241 = scalar_lea.vmem [#allocation2], %s240
  %v242 = vld [vmem:[%s241 + $0x8] sm:$0xff]
  %v243 = vunpack.c.h.b16 %v174
  %v244 = vunpack.c.h.b16 %v175
  %v245 = vunpack.c.h.b16 %v176
  %v246 = vunpack.c.h.b16 %v177
  %v247 = vpack.c.b16 %v244, %v243
  %v248 = vpack.c.b16 %v246, %v245
  %251 = vmatprep.subr.bf16.mxu0 0
  %252 = vmatpush1.bf16.msra.mxu0 0
  %253 = vmatprep.subr.bf16.mxu0 0
  %254 = vmatpush1.bf16.msra.mxu0 0
  %255 = vmatprep.subr.bf16.mxu0 0
  %256 = vmatpush1.bf16.msra.mxu0 0
  %257 = vmatprep.subr.bf16.mxu0 0
  %258 = vmatpush1.bf16.msra.mxu0 0
  %259 = vmatprep.subr.bf16.mxu0 0
  %260 = vmatpush1.bf16.msra.mxu0 0
  %261 = vmatprep.subr.bf16.mxu0 0
  %262 = vmatpush1.bf16.msra.mxu0 0
  %263 = vmatprep.subr.bf16.mxu0 0
  %264 = vmatpush1.bf16.msra.mxu0 %v248
  %265 = vmatprep.subr.bf16.mxu0 0
  %266 = vmatpush1.bf16.msra.mxu0 %v247
  %267 = vmatprep.subr.bf16.mxu0 0
  %268 = vmatpush2.bf16.msra.mxu0 0
  %269 = vmatprep.subr.bf16.mxu0 0
  %270 = vmatpush2.bf16.msra.mxu0 0
  %271 = vmatprep.subr.bf16.mxu0 0
  %272 = vmatpush2.bf16.msra.mxu0 0
  %273 = vmatprep.subr.bf16.mxu0 0
  %274 = vmatpush2.bf16.msra.mxu0 0
  %275 = vmatprep.subr.bf16.mxu0 0
  %276 = vmatpush2.bf16.msra.mxu0 0
  %277 = vmatprep.subr.bf16.mxu0 0
  %278 = vmatpush2.bf16.msra.mxu0 0
  %279 = vmatprep.subr.bf16.mxu0 0
  %280 = vmatpush2.bf16.msra.mxu0 0
  %281 = vmatprep.subr.bf16.mxu0 0
  %282 = vmatpush2.bf16.msra.mxu0 0
  %283 = vmatprep.mubr.bf16.mxu0 0
  %284 = vmatmul.mubr.bf16.gmra.mxu0 %v196
  %v285 = vpop.f32.mrf.mxu0
  %v286 = vadd.f32 0.0, %v285
  %v287 = vpop.f32.mrf.mxu0
  %v288 = vpop.f32.mrf.mxu0
  %v289 = vpop.f32.mrf.mxu0
  %290 = vdwg.mxu0
  %v291 = vadd.f32 %v242, %v286
  %v292 = vxor.u32 %v238, 2147483648
  %v293 = vmul.f32 %v292, 1.442695
  %v294 = vpow.pop %v293
  %v295 = vadd.f32 %v294, 1.0
  %v296 = vrcp.pop %v295
  %v297 = vmul.f32 1.0, %v296
  %v298 = vtanh.pop %v238
  %v299 = vxor.u32 %v291, 2147483648
  %v300 = vmul.f32 %v299, 1.442695
  %v301 = vpow.pop %v300
  %v302 = vadd.f32 %v301, 1.0
  %v303 = vrcp.pop %v302
  %v304 = vmul.f32 1.0, %v303
  %v305 = vtanh.pop %v291
  %v306 = vmul.f32 %v297, 0.0
  %308 = vrot.lane.b32.xlu0 %v298, 32
  %v309 = vpop.permute.xlu0 %308
  %v311 = vmul.f32 %v297, %v309
  %313 = vrot.lane.b32.xlu0 %v311, 32
  %v314 = vpop.permute.xlu0 %313
  %v316 = vadd.f32 %v306, %v314
  %v317 = vtanh.pop %v316
  %319 = vrot.lane.b32.xlu0 %v317, 32
  %v320 = vpop.permute.xlu0 %319
  %v322 = vmul.f32 %v297, %v320
  %v323 = vmul.f32 %v304, 0.0
  %325 = vrot.lane.b32.xlu0 %v305, 32
  %v326 = vpop.permute.xlu0 %325
  %v328 = vmul.f32 %v304, %v326
  %330 = vrot.lane.b32.xlu0 %v328, 32
  %v331 = vpop.permute.xlu0 %330
  %v333 = vadd.f32 %v323, %v331
  %v334 = vtanh.pop %v333
  %336 = vrot.lane.b32.xlu0 %v334, 32
  %v337 = vpop.permute.xlu0 %336
  %v339 = vmul.f32 %v304, %v337
  %vm340 = vcmp.gt.s32.totalorder %v178, 0
  %v341 = vsel %vm340, 1, 0
  %342 = vset.pattern.permute.xlu0 0
  %343 = vperm.xlu0 %342, %v341
  %v344 = vpop.permute.xlu0 %343
  %vm345 = vcmp.eq.s32.totalorder %v344, 1
  %vm346 = vcmp.gt.s32.totalorder %v178, 7
  %v347 = vsel %vm346, 1, 0
  %348 = vset.pattern.permute.xlu0 0
  %349 = vperm.xlu0 %348, %v347
  %v350 = vpop.permute.xlu0 %349
  %vm351 = vcmp.eq.s32.totalorder %v350, 1
  %v352 = vsel %vm345, %v322, 0.0
  %354 = vrot.lane.b32.xlu0 %v352, 64
  %v355 = vpop.permute.xlu0 %354
  %357 = vst.msk [vmem:[%s5] sm:$0xff] %vm72, %v355
  %v358 = vsel %vm351, %v339, 0.0
  %360 = vrot.lane.b32.xlu0 %v358, 96
  %v361 = vpop.permute.xlu0 %360
  %s363 = scalar_lea.vmem %s5, 56
  %vm364 = vcmask 523520
  %365 = vst.msk [vmem:[%s363] sm:$0xff] %vm364, %v361
  %v366 = vsel %vm345, %v316, 0.0
  %v367 = vsel %vm351, %v333, 0.0
  %s368 = smul.u32 1, 2
  %s369 = smul.addr %s368, 8
  %s370 = scalar_lea.vmem [#allocation2], %s369
  %v371 = vld [vmem:[%s370] sm:$0xff]
  %v372 = vpack.c.bf16 %v352, %v352
  %374 = vrot.lane.b32.xlu0 %v372, 64
  %v375 = vpop.permute.xlu0 %374
  %v377 = vsel %vm72, %v375, 0
  %379 = vmatprep.subr.bf16.mxu0 0
  %380 = vmatpush1.bf16.msra.mxu0 0
  %381 = vmatprep.subr.bf16.mxu0 0
  %382 = vmatpush1.bf16.msra.mxu0 0
  %383 = vmatprep.subr.bf16.mxu0 0
  %384 = vmatpush1.bf16.msra.mxu0 0
  %385 = vmatprep.subr.bf16.mxu0 0
  %386 = vmatpush1.bf16.msra.mxu0 0
  %387 = vmatprep.subr.bf16.mxu0 0
  %388 = vmatpush1.bf16.msra.mxu0 0
  %389 = vmatprep.subr.bf16.mxu0 0
  %390 = vmatpush1.bf16.msra.mxu0 0
  %391 = vmatprep.subr.bf16.mxu0 0
  %392 = vmatpush1.bf16.msra.mxu0 %v192
  %393 = vmatprep.subr.bf16.mxu0 0
  %394 = vmatpush1.bf16.msra.mxu0 %v191
  %395 = vmatprep.subr.bf16.mxu0 0
  %396 = vmatpush2.bf16.msra.mxu0 0
  %397 = vmatprep.subr.bf16.mxu0 0
  %398 = vmatpush2.bf16.msra.mxu0 0
  %399 = vmatprep.subr.bf16.mxu0 0
  %400 = vmatpush2.bf16.msra.mxu0 0
  %401 = vmatprep.subr.bf16.mxu0 0
  %402 = vmatpush2.bf16.msra.mxu0 0
  %403 = vmatprep.subr.bf16.mxu0 0
  %404 = vmatpush2.bf16.msra.mxu0 0
  %405 = vmatprep.subr.bf16.mxu0 0
  %406 = vmatpush2.bf16.msra.mxu0 0
  %407 = vmatprep.subr.bf16.mxu0 0
  %408 = vmatpush2.bf16.msra.mxu0 0
  %409 = vmatprep.subr.bf16.mxu0 0
  %410 = vmatpush2.bf16.msra.mxu0 0
  %411 = vmatprep.mubr.bf16.mxu0 0
  %412 = vmatmul.mubr.bf16.gmra.mxu0 %v377
  %v413 = vpop.f32.mrf.mxu0
  %v414 = vadd.f32 0.0, %v413
  %v415 = vpop.f32.mrf.mxu0
  %v416 = vpop.f32.mrf.mxu0
  %v417 = vpop.f32.mrf.mxu0
  %418 = vdwg.mxu0
  %v419 = vadd.f32 %v371, %v414
  %s420 = smul.u32 6, 2
  %s421 = smul.addr %s420, 8
  %s422 = scalar_lea.vmem [#allocation2], %s421
  %v423 = vld [vmem:[%s422 + $0x8] sm:$0xff]
  %v424 = vpack.c.bf16 %v358, %v358
  %426 = vrot.lane.b32.xlu0 %v424, 64
  %v427 = vpop.permute.xlu0 %426
  %v429 = vsel %vm72, %v427, 0
  %431 = vmatprep.subr.bf16.mxu0 0
  %432 = vmatpush1.bf16.msra.mxu0 0
  %433 = vmatprep.subr.bf16.mxu0 0
  %434 = vmatpush1.bf16.msra.mxu0 0
  %435 = vmatprep.subr.bf16.mxu0 0
  %436 = vmatpush1.bf16.msra.mxu0 0
  %437 = vmatprep.subr.bf16.mxu0 0
  %438 = vmatpush1.bf16.msra.mxu0 0
  %439 = vmatprep.subr.bf16.mxu0 0
  %440 = vmatpush1.bf16.msra.mxu0 0
  %441 = vmatprep.subr.bf16.mxu0 0
  %442 = vmatpush1.bf16.msra.mxu0 0
  %443 = vmatprep.subr.bf16.mxu0 0
  %444 = vmatpush1.bf16.msra.mxu0 %v248
  %445 = vmatprep.subr.bf16.mxu0 0
  %446 = vmatpush1.bf16.msra.mxu0 %v247
  %447 = vmatprep.subr.bf16.mxu0 0
  %448 = vmatpush2.bf16.msra.mxu0 0
  %449 = vmatprep.subr.bf16.mxu0 0
  %450 = vmatpush2.bf16.msra.mxu0 0
  %451 = vmatprep.subr.bf16.mxu0 0
  %452 = vmatpush2.bf16.msra.mxu0 0
  %453 = vmatprep.subr.bf16.mxu0 0
  %454 = vmatpush2.bf16.msra.mxu0 0
  %455 = vmatprep.subr.bf16.mxu0 0
  %456 = vmatpush2.bf16.msra.mxu0 0
  %457 = vmatprep.subr.bf16.mxu0 0
  %458 = vmatpush2.bf16.msra.mxu0 0
  %459 = vmatprep.subr.bf16.mxu0 0
  %460 = vmatpush2.bf16.msra.mxu0 0
  %461 = vmatprep.subr.bf16.mxu0 0
  %462 = vmatpush2.bf16.msra.mxu0 0
  %463 = vmatprep.mubr.bf16.mxu0 0
  %464 = vmatmul.mubr.bf16.gmra.mxu0 %v429
  %v465 = vpop.f32.mrf.mxu0
  %v466 = vadd.f32 0.0, %v465
  %v467 = vpop.f32.mrf.mxu0
  %v468 = vpop.f32.mrf.mxu0
  %v469 = vpop.f32.mrf.mxu0
  %470 = vdwg.mxu0
  %v471 = vadd.f32 %v423, %v466
  %v472 = vxor.u32 %v419, 2147483648
  %v473 = vmul.f32 %v472, 1.442695
  %v474 = vpow.pop %v473
  %v475 = vadd.f32 %v474, 1.0
  %v476 = vrcp.pop %v475
  %v477 = vmul.f32 1.0, %v476
  %v478 = vtanh.pop %v419
  %v479 = vxor.u32 %v471, 2147483648
  %v480 = vmul.f32 %v479, 1.442695
  %v481 = vpow.pop %v480
  %v482 = vadd.f32 %v481, 1.0
  %v483 = vrcp.pop %v482
  %v484 = vmul.f32 1.0, %v483
  %v485 = vtanh.pop %v471
  %v486 = vmul.f32 %v477, %v366
  %488 = vrot.lane.b32.xlu0 %v478, 32
  %v489 = vpop.permute.xlu0 %488
  %v491 = vmul.f32 %v477, %v489
  %493 = vrot.lane.b32.xlu0 %v491, 32
  %v494 = vpop.permute.xlu0 %493
  %v496 = vadd.f32 %v486, %v494
  %v497 = vtanh.pop %v496
  %499 = vrot.lane.b32.xlu0 %v497, 32
  %v500 = vpop.permute.xlu0 %499
  %v502 = vmul.f32 %v477, %v500
  %v503 = vmul.f32 %v484, %v367
  %505 = vrot.lane.b32.xlu0 %v485, 32
  %v506 = vpop.permute.xlu0 %505
  %v508 = vmul.f32 %v484, %v506
  %510 = vrot.lane.b32.xlu0 %v508, 32
  %v511 = vpop.permute.xlu0 %510
  %v513 = vadd.f32 %v503, %v511
  %v514 = vtanh.pop %v513
  %516 = vrot.lane.b32.xlu0 %v514, 32
  %v517 = vpop.permute.xlu0 %516
  %v519 = vmul.f32 %v484, %v517
  %vm520 = vcmp.gt.s32.totalorder %v178, 1
  %v521 = vsel %vm520, 1, 0
  %522 = vset.pattern.permute.xlu0 0
  %523 = vperm.xlu0 %522, %v521
  %v524 = vpop.permute.xlu0 %523
  %vm525 = vcmp.eq.s32.totalorder %v524, 1
  %vm526 = vcmp.gt.s32.totalorder %v178, 6
  %v527 = vsel %vm526, 1, 0
  %528 = vset.pattern.permute.xlu0 0
  %529 = vperm.xlu0 %528, %v527
  %v530 = vpop.permute.xlu0 %529
  %vm531 = vcmp.eq.s32.totalorder %v530, 1
  %v532 = vsel %vm525, %v502, 0.0
  %534 = vrot.lane.b32.xlu0 %v532, 64
  %v535 = vpop.permute.xlu0 %534
  %s537 = scalar_lea.vmem %s5, 8
  %538 = vst.msk [vmem:[%s537] sm:$0xff] %vm72, %v535
  %v539 = vsel %vm531, %v519, 0.0
  %541 = vrot.lane.b32.xlu0 %v539, 96
  %v542 = vpop.permute.xlu0 %541
  %s544 = scalar_lea.vmem %s5, 48
  %545 = vst.msk [vmem:[%s544] sm:$0xff] %vm364, %v542
  %v546 = vsel %vm525, %v502, %v352
  %v547 = vsel %vm525, %v496, %v366
  %v548 = vsel %vm531, %v519, %v358
  %v549 = vsel %vm531, %v513, %v367
  %s550 = smul.u32 2, 2
  %s551 = smul.addr %s550, 8
  %s552 = scalar_lea.vmem [#allocation2], %s551
  %v553 = vld [vmem:[%s552] sm:$0xff]
  %v554 = vpack.c.bf16 %v546, %v546
  %556 = vrot.lane.b32.xlu0 %v554, 64
  %v557 = vpop.permute.xlu0 %556
  %v559 = vsel %vm72, %v557, 0
  %561 = vmatprep.subr.bf16.mxu0 0
  %562 = vmatpush1.bf16.msra.mxu0 0
  %563 = vmatprep.subr.bf16.mxu0 0
  %564 = vmatpush1.bf16.msra.mxu0 0
  %565 = vmatprep.subr.bf16.mxu0 0
  %566 = vmatpush1.bf16.msra.mxu0 0
  %567 = vmatprep.subr.bf16.mxu0 0
  %568 = vmatpush1.bf16.msra.mxu0 0
  %569 = vmatprep.subr.bf16.mxu0 0
  %570 = vmatpush1.bf16.msra.mxu0 0
  %571 = vmatprep.subr.bf16.mxu0 0
  %572 = vmatpush1.bf16.msra.mxu0 0
  %573 = vmatprep.subr.bf16.mxu0 0
  %574 = vmatpush1.bf16.msra.mxu0 %v192
  %575 = vmatprep.subr.bf16.mxu0 0
  %576 = vmatpush1.bf16.msra.mxu0 %v191
  %577 = vmatprep.subr.bf16.mxu0 0
  %578 = vmatpush2.bf16.msra.mxu0 0
  %579 = vmatprep.subr.bf16.mxu0 0
  %580 = vmatpush2.bf16.msra.mxu0 0
  %581 = vmatprep.subr.bf16.mxu0 0
  %582 = vmatpush2.bf16.msra.mxu0 0
  %583 = vmatprep.subr.bf16.mxu0 0
  %584 = vmatpush2.bf16.msra.mxu0 0
  %585 = vmatprep.subr.bf16.mxu0 0
  %586 = vmatpush2.bf16.msra.mxu0 0
  %587 = vmatprep.subr.bf16.mxu0 0
  %588 = vmatpush2.bf16.msra.mxu0 0
  %589 = vmatprep.subr.bf16.mxu0 0
  %590 = vmatpush2.bf16.msra.mxu0 0
  %591 = vmatprep.subr.bf16.mxu0 0
  %592 = vmatpush2.bf16.msra.mxu0 0
  %593 = vmatprep.mubr.bf16.mxu0 0
  %594 = vmatmul.mubr.bf16.gmra.mxu0 %v559
  %v595 = vpop.f32.mrf.mxu0
  %v596 = vadd.f32 0.0, %v595
  %v597 = vpop.f32.mrf.mxu0
  %v598 = vpop.f32.mrf.mxu0
  %v599 = vpop.f32.mrf.mxu0
  %600 = vdwg.mxu0
  %v601 = vadd.f32 %v553, %v596
  %s602 = smul.u32 5, 2
  %s603 = smul.addr %s602, 8
  %s604 = scalar_lea.vmem [#allocation2], %s603
  %v605 = vld [vmem:[%s604 + $0x8] sm:$0xff]
  %v606 = vpack.c.bf16 %v548, %v548
  %608 = vrot.lane.b32.xlu0 %v606, 64
  %v609 = vpop.permute.xlu0 %608
  %v611 = vsel %vm72, %v609, 0
  %613 = vmatprep.subr.bf16.mxu0 0
  %614 = vmatpush1.bf16.msra.mxu0 0
  %615 = vmatprep.subr.bf16.mxu0 0
  %616 = vmatpush1.bf16.msra.mxu0 0
  %617 = vmatprep.subr.bf16.mxu0 0
  %618 = vmatpush1.bf16.msra.mxu0 0
  %619 = vmatprep.subr.bf16.mxu0 0
  %620 = vmatpush1.bf16.msra.mxu0 0
  %621 = vmatprep.subr.bf16.mxu0 0
  %622 = vmatpush1.bf16.msra.mxu0 0
  %623 = vmatprep.subr.bf16.mxu0 0
  %624 = vmatpush1.bf16.msra.mxu0 0
  %625 = vmatprep.subr.bf16.mxu0 0
  %626 = vmatpush1.bf16.msra.mxu0 %v248
  %627 = vmatprep.subr.bf16.mxu0 0
  %628 = vmatpush1.bf16.msra.mxu0 %v247
  %629 = vmatprep.subr.bf16.mxu0 0
  %630 = vmatpush2.bf16.msra.mxu0 0
  %631 = vmatprep.subr.bf16.mxu0 0
  %632 = vmatpush2.bf16.msra.mxu0 0
  %633 = vmatprep.subr.bf16.mxu0 0
  %634 = vmatpush2.bf16.msra.mxu0 0
  %635 = vmatprep.subr.bf16.mxu0 0
  %636 = vmatpush2.bf16.msra.mxu0 0
  %637 = vmatprep.subr.bf16.mxu0 0
  %638 = vmatpush2.bf16.msra.mxu0 0
  %639 = vmatprep.subr.bf16.mxu0 0
  %640 = vmatpush2.bf16.msra.mxu0 0
  %641 = vmatprep.subr.bf16.mxu0 0
  %642 = vmatpush2.bf16.msra.mxu0 0
  %643 = vmatprep.subr.bf16.mxu0 0
  %644 = vmatpush2.bf16.msra.mxu0 0
  %645 = vmatprep.mubr.bf16.mxu0 0
  %646 = vmatmul.mubr.bf16.gmra.mxu0 %v611
  %v647 = vpop.f32.mrf.mxu0
  %v648 = vadd.f32 0.0, %v647
  %v649 = vpop.f32.mrf.mxu0
  %v650 = vpop.f32.mrf.mxu0
  %v651 = vpop.f32.mrf.mxu0
  %652 = vdwg.mxu0
  %v653 = vadd.f32 %v605, %v648
  %v654 = vxor.u32 %v601, 2147483648
  %v655 = vmul.f32 %v654, 1.442695
  %v656 = vpow.pop %v655
  %v657 = vadd.f32 %v656, 1.0
  %v658 = vrcp.pop %v657
  %v659 = vmul.f32 1.0, %v658
  %v660 = vtanh.pop %v601
  %v661 = vxor.u32 %v653, 2147483648
  %v662 = vmul.f32 %v661, 1.442695
  %v663 = vpow.pop %v662
  %v664 = vadd.f32 %v663, 1.0
  %v665 = vrcp.pop %v664
  %v666 = vmul.f32 1.0, %v665
  %v667 = vtanh.pop %v653
  %v668 = vmul.f32 %v659, %v547
  %670 = vrot.lane.b32.xlu0 %v660, 32
  %v671 = vpop.permute.xlu0 %670
  %v673 = vmul.f32 %v659, %v671
  %675 = vrot.lane.b32.xlu0 %v673, 32
  %v676 = vpop.permute.xlu0 %675
  %v678 = vadd.f32 %v668, %v676
  %v679 = vtanh.pop %v678
  %681 = vrot.lane.b32.xlu0 %v679, 32
  %v682 = vpop.permute.xlu0 %681
  %v684 = vmul.f32 %v659, %v682
  %v685 = vmul.f32 %v666, %v549
  %687 = vrot.lane.b32.xlu0 %v667, 32
  %v688 = vpop.permute.xlu0 %687
  %v690 = vmul.f32 %v666, %v688
  %692 = vrot.lane.b32.xlu0 %v690, 32
  %v693 = vpop.permute.xlu0 %692
  %v695 = vadd.f32 %v685, %v693
  %v696 = vtanh.pop %v695
  %698 = vrot.lane.b32.xlu0 %v696, 32
  %v699 = vpop.permute.xlu0 %698
  %v701 = vmul.f32 %v666, %v699
  %vm702 = vcmp.gt.s32.totalorder %v178, 2
  %v703 = vsel %vm702, 1, 0
  %704 = vset.pattern.permute.xlu0 0
  %705 = vperm.xlu0 %704, %v703
  %v706 = vpop.permute.xlu0 %705
  %vm707 = vcmp.eq.s32.totalorder %v706, 1
  %vm708 = vcmp.gt.s32.totalorder %v178, 5
  %v709 = vsel %vm708, 1, 0
  %710 = vset.pattern.permute.xlu0 0
  %711 = vperm.xlu0 %710, %v709
  %v712 = vpop.permute.xlu0 %711
  %vm713 = vcmp.eq.s32.totalorder %v712, 1
  %v714 = vsel %vm707, %v684, 0.0
  %716 = vrot.lane.b32.xlu0 %v714, 64
  %v717 = vpop.permute.xlu0 %716
  %s719 = scalar_lea.vmem %s5, 16
  %720 = vst.msk [vmem:[%s719] sm:$0xff] %vm72, %v717
  %v721 = vsel %vm713, %v701, 0.0
  %723 = vrot.lane.b32.xlu0 %v721, 96
  %v724 = vpop.permute.xlu0 %723
  %s726 = scalar_lea.vmem %s5, 40
  %727 = vst.msk [vmem:[%s726] sm:$0xff] %vm364, %v724
  %v728 = vsel %vm707, %v684, %v546
  %v729 = vsel %vm707, %v678, %v547
  %v730 = vsel %vm713, %v701, %v548
  %v731 = vsel %vm713, %v695, %v549
  %s732 = smul.u32 3, 2
  %s733 = smul.addr %s732, 8
  %s734 = scalar_lea.vmem [#allocation2], %s733
  %v735 = vld [vmem:[%s734] sm:$0xff]
  %v736 = vpack.c.bf16 %v728, %v728
  %738 = vrot.lane.b32.xlu0 %v736, 64
  %v739 = vpop.permute.xlu0 %738
  %v741 = vsel %vm72, %v739, 0
  %743 = vmatprep.subr.bf16.mxu0 0
  %744 = vmatpush1.bf16.msra.mxu0 0
  %745 = vmatprep.subr.bf16.mxu0 0
  %746 = vmatpush1.bf16.msra.mxu0 0
  %747 = vmatprep.subr.bf16.mxu0 0
  %748 = vmatpush1.bf16.msra.mxu0 0
  %749 = vmatprep.subr.bf16.mxu0 0
  %750 = vmatpush1.bf16.msra.mxu0 0
  %751 = vmatprep.subr.bf16.mxu0 0
  %752 = vmatpush1.bf16.msra.mxu0 0
  %753 = vmatprep.subr.bf16.mxu0 0
  %754 = vmatpush1.bf16.msra.mxu0 0
  %755 = vmatprep.subr.bf16.mxu0 0
  %756 = vmatpush1.bf16.msra.mxu0 %v192
  %757 = vmatprep.subr.bf16.mxu0 0
  %758 = vmatpush1.bf16.msra.mxu0 %v191
  %759 = vmatprep.subr.bf16.mxu0 0
  %760 = vmatpush2.bf16.msra.mxu0 0
  %761 = vmatprep.subr.bf16.mxu0 0
  %762 = vmatpush2.bf16.msra.mxu0 0
  %763 = vmatprep.subr.bf16.mxu0 0
  %764 = vmatpush2.bf16.msra.mxu0 0
  %765 = vmatprep.subr.bf16.mxu0 0
  %766 = vmatpush2.bf16.msra.mxu0 0
  %767 = vmatprep.subr.bf16.mxu0 0
  %768 = vmatpush2.bf16.msra.mxu0 0
  %769 = vmatprep.subr.bf16.mxu0 0
  %770 = vmatpush2.bf16.msra.mxu0 0
  %771 = vmatprep.subr.bf16.mxu0 0
  %772 = vmatpush2.bf16.msra.mxu0 0
  %773 = vmatprep.subr.bf16.mxu0 0
  %774 = vmatpush2.bf16.msra.mxu0 0
  %775 = vmatprep.mubr.bf16.mxu0 0
  %776 = vmatmul.mubr.bf16.gmra.mxu0 %v741
  %v777 = vpop.f32.mrf.mxu0
  %v778 = vadd.f32 0.0, %v777
  %v779 = vpop.f32.mrf.mxu0
  %v780 = vpop.f32.mrf.mxu0
  %v781 = vpop.f32.mrf.mxu0
  %782 = vdwg.mxu0
  %v783 = vadd.f32 %v735, %v778
  %s784 = smul.u32 4, 2
  %s785 = smul.addr %s784, 8
  %s786 = scalar_lea.vmem [#allocation2], %s785
  %v787 = vld [vmem:[%s786 + $0x8] sm:$0xff]
  %v788 = vpack.c.bf16 %v730, %v730
  %790 = vrot.lane.b32.xlu0 %v788, 64
  %v791 = vpop.permute.xlu0 %790
  %v793 = vsel %vm72, %v791, 0
  %795 = vmatprep.subr.bf16.mxu0 0
  %796 = vmatpush1.bf16.msra.mxu0 0
  %797 = vmatprep.subr.bf16.mxu0 0
  %798 = vmatpush1.bf16.msra.mxu0 0
  %799 = vmatprep.subr.bf16.mxu0 0
  %800 = vmatpush1.bf16.msra.mxu0 0
  %801 = vmatprep.subr.bf16.mxu0 0
  %802 = vmatpush1.bf16.msra.mxu0 0
  %803 = vmatprep.subr.bf16.mxu0 0
  %804 = vmatpush1.bf16.msra.mxu0 0
  %805 = vmatprep.subr.bf16.mxu0 0
  %806 = vmatpush1.bf16.msra.mxu0 0
  %807 = vmatprep.subr.bf16.mxu0 0
  %808 = vmatpush1.bf16.msra.mxu0 %v248
  %809 = vmatprep.subr.bf16.mxu0 0
  %810 = vmatpush1.bf16.msra.mxu0 %v247
  %811 = vmatprep.subr.bf16.mxu0 0
  %812 = vmatpush2.bf16.msra.mxu0 0
  %813 = vmatprep.subr.bf16.mxu0 0
  %814 = vmatpush2.bf16.msra.mxu0 0
  %815 = vmatprep.subr.bf16.mxu0 0
  %816 = vmatpush2.bf16.msra.mxu0 0
  %817 = vmatprep.subr.bf16.mxu0 0
  %818 = vmatpush2.bf16.msra.mxu0 0
  %819 = vmatprep.subr.bf16.mxu0 0
  %820 = vmatpush2.bf16.msra.mxu0 0
  %821 = vmatprep.subr.bf16.mxu0 0
  %822 = vmatpush2.bf16.msra.mxu0 0
  %823 = vmatprep.subr.bf16.mxu0 0
  %824 = vmatpush2.bf16.msra.mxu0 0
  %825 = vmatprep.subr.bf16.mxu0 0
  %826 = vmatpush2.bf16.msra.mxu0 0
  %827 = vmatprep.mubr.bf16.mxu0 0
  %828 = vmatmul.mubr.bf16.gmra.mxu0 %v793
  %v829 = vpop.f32.mrf.mxu0
  %v830 = vadd.f32 0.0, %v829
  %v831 = vpop.f32.mrf.mxu0
  %v832 = vpop.f32.mrf.mxu0
  %v833 = vpop.f32.mrf.mxu0
  %834 = vdwg.mxu0
  %v835 = vadd.f32 %v787, %v830
  %v836 = vxor.u32 %v783, 2147483648
  %v837 = vmul.f32 %v836, 1.442695
  %v838 = vpow.pop %v837
  %v839 = vadd.f32 %v838, 1.0
  %v840 = vrcp.pop %v839
  %v841 = vmul.f32 1.0, %v840
  %v842 = vtanh.pop %v783
  %v843 = vxor.u32 %v835, 2147483648
  %v844 = vmul.f32 %v843, 1.442695
  %v845 = vpow.pop %v844
  %v846 = vadd.f32 %v845, 1.0
  %v847 = vrcp.pop %v846
  %v848 = vmul.f32 1.0, %v847
  %v849 = vtanh.pop %v835
  %v850 = vmul.f32 %v841, %v729
  %852 = vrot.lane.b32.xlu0 %v842, 32
  %v853 = vpop.permute.xlu0 %852
  %v855 = vmul.f32 %v841, %v853
  %857 = vrot.lane.b32.xlu0 %v855, 32
  %v858 = vpop.permute.xlu0 %857
  %v860 = vadd.f32 %v850, %v858
  %v861 = vtanh.pop %v860
  %863 = vrot.lane.b32.xlu0 %v861, 32
  %v864 = vpop.permute.xlu0 %863
  %v866 = vmul.f32 %v841, %v864
  %v867 = vmul.f32 %v848, %v731
  %869 = vrot.lane.b32.xlu0 %v849, 32
  %v870 = vpop.permute.xlu0 %869
  %v872 = vmul.f32 %v848, %v870
  %874 = vrot.lane.b32.xlu0 %v872, 32
  %v875 = vpop.permute.xlu0 %874
  %v877 = vadd.f32 %v867, %v875
  %v878 = vtanh.pop %v877
  %880 = vrot.lane.b32.xlu0 %v878, 32
  %v881 = vpop.permute.xlu0 %880
  %v883 = vmul.f32 %v848, %v881
  %vm884 = vcmp.gt.s32.totalorder %v178, 3
  %v885 = vsel %vm884, 1, 0
  %886 = vset.pattern.permute.xlu0 0
  %887 = vperm.xlu0 %886, %v885
  %v888 = vpop.permute.xlu0 %887
  %vm889 = vcmp.eq.s32.totalorder %v888, 1
  %vm890 = vcmp.gt.s32.totalorder %v178, 4
  %v891 = vsel %vm890, 1, 0
  %892 = vset.pattern.permute.xlu0 0
  %893 = vperm.xlu0 %892, %v891
  %v894 = vpop.permute.xlu0 %893
  %vm895 = vcmp.eq.s32.totalorder %v894, 1
  %v896 = vsel %vm889, %v866, 0.0
  %898 = vrot.lane.b32.xlu0 %v896, 64
  %v899 = vpop.permute.xlu0 %898
  %s901 = scalar_lea.vmem %s5, 24
  %902 = vst.msk [vmem:[%s901] sm:$0xff] %vm72, %v899
  %v903 = vsel %vm895, %v883, 0.0
  %905 = vrot.lane.b32.xlu0 %v903, 96
  %v906 = vpop.permute.xlu0 %905
  %s908 = scalar_lea.vmem %s5, 32
  %909 = vst.msk [vmem:[%s908] sm:$0xff] %vm364, %v906
  %v910 = vsel %vm889, %v866, %v728
  %v911 = vsel %vm889, %v860, %v729
  %v912 = vsel %vm895, %v883, %v730
  %v913 = vsel %vm895, %v877, %v731
  %v914 = vld [vmem:[%s786] sm:$0xff]
  %v915 = vpack.c.bf16 %v910, %v910
  %917 = vrot.lane.b32.xlu0 %v915, 64
  %v918 = vpop.permute.xlu0 %917
  %v920 = vsel %vm72, %v918, 0
  %922 = vmatprep.subr.bf16.mxu0 0
  %923 = vmatpush1.bf16.msra.mxu0 0
  %924 = vmatprep.subr.bf16.mxu0 0
  %925 = vmatpush1.bf16.msra.mxu0 0
  %926 = vmatprep.subr.bf16.mxu0 0
  %927 = vmatpush1.bf16.msra.mxu0 0
  %928 = vmatprep.subr.bf16.mxu0 0
  %929 = vmatpush1.bf16.msra.mxu0 0
  %930 = vmatprep.subr.bf16.mxu0 0
  %931 = vmatpush1.bf16.msra.mxu0 0
  %932 = vmatprep.subr.bf16.mxu0 0
  %933 = vmatpush1.bf16.msra.mxu0 0
  %934 = vmatprep.subr.bf16.mxu0 0
  %935 = vmatpush1.bf16.msra.mxu0 %v192
  %936 = vmatprep.subr.bf16.mxu0 0
  %937 = vmatpush1.bf16.msra.mxu0 %v191
  %938 = vmatprep.subr.bf16.mxu0 0
  %939 = vmatpush2.bf16.msra.mxu0 0
  %940 = vmatprep.subr.bf16.mxu0 0
  %941 = vmatpush2.bf16.msra.mxu0 0
  %942 = vmatprep.subr.bf16.mxu0 0
  %943 = vmatpush2.bf16.msra.mxu0 0
  %944 = vmatprep.subr.bf16.mxu0 0
  %945 = vmatpush2.bf16.msra.mxu0 0
  %946 = vmatprep.subr.bf16.mxu0 0
  %947 = vmatpush2.bf16.msra.mxu0 0
  %948 = vmatprep.subr.bf16.mxu0 0
  %949 = vmatpush2.bf16.msra.mxu0 0
  %950 = vmatprep.subr.bf16.mxu0 0
  %951 = vmatpush2.bf16.msra.mxu0 0
  %952 = vmatprep.subr.bf16.mxu0 0
  %953 = vmatpush2.bf16.msra.mxu0 0
  %954 = vmatprep.mubr.bf16.mxu0 0
  %955 = vmatmul.mubr.bf16.gmra.mxu0 %v920
  %v956 = vpop.f32.mrf.mxu0
  %v957 = vadd.f32 0.0, %v956
  %v958 = vpop.f32.mrf.mxu0
  %v959 = vpop.f32.mrf.mxu0
  %v960 = vpop.f32.mrf.mxu0
  %961 = vdwg.mxu0
  %v962 = vadd.f32 %v914, %v957
  %v963 = vld [vmem:[%s734 + $0x8] sm:$0xff]
  %v964 = vpack.c.bf16 %v912, %v912
  %966 = vrot.lane.b32.xlu0 %v964, 64
  %v967 = vpop.permute.xlu0 %966
  %v969 = vsel %vm72, %v967, 0
  %971 = vmatprep.subr.bf16.mxu0 0
  %972 = vmatpush1.bf16.msra.mxu0 0
  %973 = vmatprep.subr.bf16.mxu0 0
  %974 = vmatpush1.bf16.msra.mxu0 0
  %975 = vmatprep.subr.bf16.mxu0 0
  %976 = vmatpush1.bf16.msra.mxu0 0
  %977 = vmatprep.subr.bf16.mxu0 0
  %978 = vmatpush1.bf16.msra.mxu0 0
  %979 = vmatprep.subr.bf16.mxu0 0
  %980 = vmatpush1.bf16.msra.mxu0 0
  %981 = vmatprep.subr.bf16.mxu0 0
  %982 = vmatpush1.bf16.msra.mxu0 0
  %983 = vmatprep.subr.bf16.mxu0 0
  %984 = vmatpush1.bf16.msra.mxu0 %v248
  %985 = vmatprep.subr.bf16.mxu0 0
  %986 = vmatpush1.bf16.msra.mxu0 %v247
  %987 = vmatprep.subr.bf16.mxu0 0
  %988 = vmatpush2.bf16.msra.mxu0 0
  %989 = vmatprep.subr.bf16.mxu0 0
  %990 = vmatpush2.bf16.msra.mxu0 0
  %991 = vmatprep.subr.bf16.mxu0 0
  %992 = vmatpush2.bf16.msra.mxu0 0
  %993 = vmatprep.subr.bf16.mxu0 0
  %994 = vmatpush2.bf16.msra.mxu0 0
  %995 = vmatprep.subr.bf16.mxu0 0
  %996 = vmatpush2.bf16.msra.mxu0 0
  %997 = vmatprep.subr.bf16.mxu0 0
  %998 = vmatpush2.bf16.msra.mxu0 0
  %999 = vmatprep.subr.bf16.mxu0 0
  %1000 = vmatpush2.bf16.msra.mxu0 0
  %1001 = vmatprep.subr.bf16.mxu0 0
  %1002 = vmatpush2.bf16.msra.mxu0 0
  %1003 = vmatprep.mubr.bf16.mxu0 0
  %1004 = vmatmul.mubr.bf16.gmra.mxu0 %v969
  %v1005 = vpop.f32.mrf.mxu0
  %v1006 = vadd.f32 0.0, %v1005
  %v1007 = vpop.f32.mrf.mxu0
  %v1008 = vpop.f32.mrf.mxu0
  %v1009 = vpop.f32.mrf.mxu0
  %1010 = vdwg.mxu0
  %v1011 = vadd.f32 %v963, %v1006
  %v1012 = vxor.u32 %v962, 2147483648
  %v1013 = vmul.f32 %v1012, 1.442695
  %v1014 = vpow.pop %v1013
  %v1015 = vadd.f32 %v1014, 1.0
  %v1016 = vrcp.pop %v1015
  %v1017 = vmul.f32 1.0, %v1016
  %v1018 = vtanh.pop %v962
  %v1019 = vxor.u32 %v1011, 2147483648
  %v1020 = vmul.f32 %v1019, 1.442695
  %v1021 = vpow.pop %v1020
  %v1022 = vadd.f32 %v1021, 1.0
  %v1023 = vrcp.pop %v1022
  %v1024 = vmul.f32 1.0, %v1023
  %v1025 = vtanh.pop %v1011
  %v1026 = vmul.f32 %v1017, %v911
  %1028 = vrot.lane.b32.xlu0 %v1018, 32
  %v1029 = vpop.permute.xlu0 %1028
  %v1031 = vmul.f32 %v1017, %v1029
  %1033 = vrot.lane.b32.xlu0 %v1031, 32
  %v1034 = vpop.permute.xlu0 %1033
  %v1036 = vadd.f32 %v1026, %v1034
  %v1037 = vtanh.pop %v1036
  %1039 = vrot.lane.b32.xlu0 %v1037, 32
  %v1040 = vpop.permute.xlu0 %1039
  %v1042 = vmul.f32 %v1017, %v1040
  %v1043 = vmul.f32 %v1024, %v913
  %1045 = vrot.lane.b32.xlu0 %v1025, 32
  %v1046 = vpop.permute.xlu0 %1045
  %v1048 = vmul.f32 %v1024, %v1046
  %1050 = vrot.lane.b32.xlu0 %v1048, 32
  %v1051 = vpop.permute.xlu0 %1050
  %v1053 = vadd.f32 %v1043, %v1051
  %v1054 = vtanh.pop %v1053
  %1056 = vrot.lane.b32.xlu0 %v1054, 32
  %v1057 = vpop.permute.xlu0 %1056
  %v1059 = vmul.f32 %v1024, %v1057
  %v1060 = vsel %vm895, %v1042, 0.0
  %1062 = vrot.lane.b32.xlu0 %v1060, 64
  %v1063 = vpop.permute.xlu0 %1062
  %1065 = vst.msk [vmem:[%s908] sm:$0xff] %vm72, %v1063
  %v1066 = vsel %vm889, %v1059, 0.0
  %1068 = vrot.lane.b32.xlu0 %v1066, 96
  %v1069 = vpop.permute.xlu0 %1068
  %1071 = vst.msk [vmem:[%s901] sm:$0xff] %vm364, %v1069
  %v1072 = vsel %vm895, %v1042, %v910
  %v1073 = vsel %vm895, %v1036, %v911
  %v1074 = vsel %vm889, %v1059, %v912
  %v1075 = vsel %vm889, %v1053, %v913
  %v1076 = vld [vmem:[%s604] sm:$0xff]
  %v1077 = vpack.c.bf16 %v1072, %v1072
  %1079 = vrot.lane.b32.xlu0 %v1077, 64
  %v1080 = vpop.permute.xlu0 %1079
  %v1082 = vsel %vm72, %v1080, 0
  %1084 = vmatprep.subr.bf16.mxu0 0
  %1085 = vmatpush1.bf16.msra.mxu0 0
  %1086 = vmatprep.subr.bf16.mxu0 0
  %1087 = vmatpush1.bf16.msra.mxu0 0
  %1088 = vmatprep.subr.bf16.mxu0 0
  %1089 = vmatpush1.bf16.msra.mxu0 0
  %1090 = vmatprep.subr.bf16.mxu0 0
  %1091 = vmatpush1.bf16.msra.mxu0 0
  %1092 = vmatprep.subr.bf16.mxu0 0
  %1093 = vmatpush1.bf16.msra.mxu0 0
  %1094 = vmatprep.subr.bf16.mxu0 0
  %1095 = vmatpush1.bf16.msra.mxu0 0
  %1096 = vmatprep.subr.bf16.mxu0 0
  %1097 = vmatpush1.bf16.msra.mxu0 %v192
  %1098 = vmatprep.subr.bf16.mxu0 0
  %1099 = vmatpush1.bf16.msra.mxu0 %v191
  %1100 = vmatprep.subr.bf16.mxu0 0
  %1101 = vmatpush2.bf16.msra.mxu0 0
  %1102 = vmatprep.subr.bf16.mxu0 0
  %1103 = vmatpush2.bf16.msra.mxu0 0
  %1104 = vmatprep.subr.bf16.mxu0 0
  %1105 = vmatpush2.bf16.msra.mxu0 0
  %1106 = vmatprep.subr.bf16.mxu0 0
  %1107 = vmatpush2.bf16.msra.mxu0 0
  %1108 = vmatprep.subr.bf16.mxu0 0
  %1109 = vmatpush2.bf16.msra.mxu0 0
  %1110 = vmatprep.subr.bf16.mxu0 0
  %1111 = vmatpush2.bf16.msra.mxu0 0
  %1112 = vmatprep.subr.bf16.mxu0 0
  %1113 = vmatpush2.bf16.msra.mxu0 0
  %1114 = vmatprep.subr.bf16.mxu0 0
  %1115 = vmatpush2.bf16.msra.mxu0 0
  %1116 = vmatprep.mubr.bf16.mxu0 0
  %1117 = vmatmul.mubr.bf16.gmra.mxu0 %v1082
  %v1118 = vpop.f32.mrf.mxu0
  %v1119 = vadd.f32 0.0, %v1118
  %v1120 = vpop.f32.mrf.mxu0
  %v1121 = vpop.f32.mrf.mxu0
  %v1122 = vpop.f32.mrf.mxu0
  %1123 = vdwg.mxu0
  %v1124 = vadd.f32 %v1076, %v1119
  %v1125 = vld [vmem:[%s552 + $0x8] sm:$0xff]
  %v1126 = vpack.c.bf16 %v1074, %v1074
  %1128 = vrot.lane.b32.xlu0 %v1126, 64
  %v1129 = vpop.permute.xlu0 %1128
  %v1131 = vsel %vm72, %v1129, 0
  %1133 = vmatprep.subr.bf16.mxu0 0
  %1134 = vmatpush1.bf16.msra.mxu0 0
  %1135 = vmatprep.subr.bf16.mxu0 0
  %1136 = vmatpush1.bf16.msra.mxu0 0
  %1137 = vmatprep.subr.bf16.mxu0 0
  %1138 = vmatpush1.bf16.msra.mxu0 0
  %1139 = vmatprep.subr.bf16.mxu0 0
  %1140 = vmatpush1.bf16.msra.mxu0 0
  %1141 = vmatprep.subr.bf16.mxu0 0
  %1142 = vmatpush1.bf16.msra.mxu0 0
  %1143 = vmatprep.subr.bf16.mxu0 0
  %1144 = vmatpush1.bf16.msra.mxu0 0
  %1145 = vmatprep.subr.bf16.mxu0 0
  %1146 = vmatpush1.bf16.msra.mxu0 %v248
  %1147 = vmatprep.subr.bf16.mxu0 0
  %1148 = vmatpush1.bf16.msra.mxu0 %v247
  %1149 = vmatprep.subr.bf16.mxu0 0
  %1150 = vmatpush2.bf16.msra.mxu0 0
  %1151 = vmatprep.subr.bf16.mxu0 0
  %1152 = vmatpush2.bf16.msra.mxu0 0
  %1153 = vmatprep.subr.bf16.mxu0 0
  %1154 = vmatpush2.bf16.msra.mxu0 0
  %1155 = vmatprep.subr.bf16.mxu0 0
  %1156 = vmatpush2.bf16.msra.mxu0 0
  %1157 = vmatprep.subr.bf16.mxu0 0
  %1158 = vmatpush2.bf16.msra.mxu0 0
  %1159 = vmatprep.subr.bf16.mxu0 0
  %1160 = vmatpush2.bf16.msra.mxu0 0
  %1161 = vmatprep.subr.bf16.mxu0 0
  %1162 = vmatpush2.bf16.msra.mxu0 0
  %1163 = vmatprep.subr.bf16.mxu0 0
  %1164 = vmatpush2.bf16.msra.mxu0 0
  %1165 = vmatprep.mubr.bf16.mxu0 0
  %1166 = vmatmul.mubr.bf16.gmra.mxu0 %v1131
  %v1167 = vpop.f32.mrf.mxu0
  %v1168 = vadd.f32 0.0, %v1167
  %v1169 = vpop.f32.mrf.mxu0
  %v1170 = vpop.f32.mrf.mxu0
  %v1171 = vpop.f32.mrf.mxu0
  %1172 = vdwg.mxu0
  %v1173 = vadd.f32 %v1125, %v1168
  %v1174 = vxor.u32 %v1124, 2147483648
  %v1175 = vmul.f32 %v1174, 1.442695
  %v1176 = vpow.pop %v1175
  %v1177 = vadd.f32 %v1176, 1.0
  %v1178 = vrcp.pop %v1177
  %v1179 = vmul.f32 1.0, %v1178
  %v1180 = vtanh.pop %v1124
  %v1181 = vxor.u32 %v1173, 2147483648
  %v1182 = vmul.f32 %v1181, 1.442695
  %v1183 = vpow.pop %v1182
  %v1184 = vadd.f32 %v1183, 1.0
  %v1185 = vrcp.pop %v1184
  %v1186 = vmul.f32 1.0, %v1185
  %v1187 = vtanh.pop %v1173
  %v1188 = vmul.f32 %v1179, %v1073
  %1190 = vrot.lane.b32.xlu0 %v1180, 32
  %v1191 = vpop.permute.xlu0 %1190
  %v1193 = vmul.f32 %v1179, %v1191
  %1195 = vrot.lane.b32.xlu0 %v1193, 32
  %v1196 = vpop.permute.xlu0 %1195
  %v1198 = vadd.f32 %v1188, %v1196
  %v1199 = vtanh.pop %v1198
  %1201 = vrot.lane.b32.xlu0 %v1199, 32
  %v1202 = vpop.permute.xlu0 %1201
  %v1204 = vmul.f32 %v1179, %v1202
  %v1205 = vmul.f32 %v1186, %v1075
  %1207 = vrot.lane.b32.xlu0 %v1187, 32
  %v1208 = vpop.permute.xlu0 %1207
  %v1210 = vmul.f32 %v1186, %v1208
  %1212 = vrot.lane.b32.xlu0 %v1210, 32
  %v1213 = vpop.permute.xlu0 %1212
  %v1215 = vadd.f32 %v1205, %v1213
  %v1216 = vtanh.pop %v1215
  %1218 = vrot.lane.b32.xlu0 %v1216, 32
  %v1219 = vpop.permute.xlu0 %1218
  %v1221 = vmul.f32 %v1186, %v1219
  %v1222 = vsel %vm713, %v1204, 0.0
  %1224 = vrot.lane.b32.xlu0 %v1222, 64
  %v1225 = vpop.permute.xlu0 %1224
  %1227 = vst.msk [vmem:[%s726] sm:$0xff] %vm72, %v1225
  %v1228 = vsel %vm707, %v1221, 0.0
  %1230 = vrot.lane.b32.xlu0 %v1228, 96
  %v1231 = vpop.permute.xlu0 %1230
  %1233 = vst.msk [vmem:[%s719] sm:$0xff] %vm364, %v1231
  %v1234 = vsel %vm713, %v1204, %v1072
  %v1235 = vsel %vm713, %v1198, %v1073
  %v1236 = vsel %vm707, %v1221, %v1074
  %v1237 = vsel %vm707, %v1215, %v1075
  %v1238 = vld [vmem:[%s422] sm:$0xff]
  %v1239 = vpack.c.bf16 %v1234, %v1234
  %1241 = vrot.lane.b32.xlu0 %v1239, 64
  %v1242 = vpop.permute.xlu0 %1241
  %v1244 = vsel %vm72, %v1242, 0
  %1246 = vmatprep.subr.bf16.mxu0 0
  %1247 = vmatpush1.bf16.msra.mxu0 0
  %1248 = vmatprep.subr.bf16.mxu0 0
  %1249 = vmatpush1.bf16.msra.mxu0 0
  %1250 = vmatprep.subr.bf16.mxu0 0
  %1251 = vmatpush1.bf16.msra.mxu0 0
  %1252 = vmatprep.subr.bf16.mxu0 0
  %1253 = vmatpush1.bf16.msra.mxu0 0
  %1254 = vmatprep.subr.bf16.mxu0 0
  %1255 = vmatpush1.bf16.msra.mxu0 0
  %1256 = vmatprep.subr.bf16.mxu0 0
  %1257 = vmatpush1.bf16.msra.mxu0 0
  %1258 = vmatprep.subr.bf16.mxu0 0
  %1259 = vmatpush1.bf16.msra.mxu0 %v192
  %1260 = vmatprep.subr.bf16.mxu0 0
  %1261 = vmatpush1.bf16.msra.mxu0 %v191
  %1262 = vmatprep.subr.bf16.mxu0 0
  %1263 = vmatpush2.bf16.msra.mxu0 0
  %1264 = vmatprep.subr.bf16.mxu0 0
  %1265 = vmatpush2.bf16.msra.mxu0 0
  %1266 = vmatprep.subr.bf16.mxu0 0
  %1267 = vmatpush2.bf16.msra.mxu0 0
  %1268 = vmatprep.subr.bf16.mxu0 0
  %1269 = vmatpush2.bf16.msra.mxu0 0
  %1270 = vmatprep.subr.bf16.mxu0 0
  %1271 = vmatpush2.bf16.msra.mxu0 0
  %1272 = vmatprep.subr.bf16.mxu0 0
  %1273 = vmatpush2.bf16.msra.mxu0 0
  %1274 = vmatprep.subr.bf16.mxu0 0
  %1275 = vmatpush2.bf16.msra.mxu0 0
  %1276 = vmatprep.subr.bf16.mxu0 0
  %1277 = vmatpush2.bf16.msra.mxu0 0
  %1278 = vmatprep.mubr.bf16.mxu0 0
  %1279 = vmatmul.mubr.bf16.gmra.mxu0 %v1244
  %v1280 = vpop.f32.mrf.mxu0
  %v1281 = vadd.f32 0.0, %v1280
  %v1282 = vpop.f32.mrf.mxu0
  %v1283 = vpop.f32.mrf.mxu0
  %v1284 = vpop.f32.mrf.mxu0
  %1285 = vdwg.mxu0
  %v1286 = vadd.f32 %v1238, %v1281
  %v1287 = vld [vmem:[%s370 + $0x8] sm:$0xff]
  %v1288 = vpack.c.bf16 %v1236, %v1236
  %1290 = vrot.lane.b32.xlu0 %v1288, 64
  %v1291 = vpop.permute.xlu0 %1290
  %v1293 = vsel %vm72, %v1291, 0
  %1295 = vmatprep.subr.bf16.mxu0 0
  %1296 = vmatpush1.bf16.msra.mxu0 0
  %1297 = vmatprep.subr.bf16.mxu0 0
  %1298 = vmatpush1.bf16.msra.mxu0 0
  %1299 = vmatprep.subr.bf16.mxu0 0
  %1300 = vmatpush1.bf16.msra.mxu0 0
  %1301 = vmatprep.subr.bf16.mxu0 0
  %1302 = vmatpush1.bf16.msra.mxu0 0
  %1303 = vmatprep.subr.bf16.mxu0 0
  %1304 = vmatpush1.bf16.msra.mxu0 0
  %1305 = vmatprep.subr.bf16.mxu0 0
  %1306 = vmatpush1.bf16.msra.mxu0 0
  %1307 = vmatprep.subr.bf16.mxu0 0
  %1308 = vmatpush1.bf16.msra.mxu0 %v248
  %1309 = vmatprep.subr.bf16.mxu0 0
  %1310 = vmatpush1.bf16.msra.mxu0 %v247
  %1311 = vmatprep.subr.bf16.mxu0 0
  %1312 = vmatpush2.bf16.msra.mxu0 0
  %1313 = vmatprep.subr.bf16.mxu0 0
  %1314 = vmatpush2.bf16.msra.mxu0 0
  %1315 = vmatprep.subr.bf16.mxu0 0
  %1316 = vmatpush2.bf16.msra.mxu0 0
  %1317 = vmatprep.subr.bf16.mxu0 0
  %1318 = vmatpush2.bf16.msra.mxu0 0
  %1319 = vmatprep.subr.bf16.mxu0 0
  %1320 = vmatpush2.bf16.msra.mxu0 0
  %1321 = vmatprep.subr.bf16.mxu0 0
  %1322 = vmatpush2.bf16.msra.mxu0 0
  %1323 = vmatprep.subr.bf16.mxu0 0
  %1324 = vmatpush2.bf16.msra.mxu0 0
  %1325 = vmatprep.subr.bf16.mxu0 0
  %1326 = vmatpush2.bf16.msra.mxu0 0
  %1327 = vmatprep.mubr.bf16.mxu0 0
  %1328 = vmatmul.mubr.bf16.gmra.mxu0 %v1293
  %v1329 = vpop.f32.mrf.mxu0
  %v1330 = vadd.f32 0.0, %v1329
  %v1331 = vpop.f32.mrf.mxu0
  %v1332 = vpop.f32.mrf.mxu0
  %v1333 = vpop.f32.mrf.mxu0
  %1334 = vdwg.mxu0
  %v1335 = vadd.f32 %v1287, %v1330
  %v1336 = vxor.u32 %v1286, 2147483648
  %v1337 = vmul.f32 %v1336, 1.442695
  %v1338 = vpow.pop %v1337
  %v1339 = vadd.f32 %v1338, 1.0
  %v1340 = vrcp.pop %v1339
  %v1341 = vmul.f32 1.0, %v1340
  %v1342 = vtanh.pop %v1286
  %v1343 = vxor.u32 %v1335, 2147483648
  %v1344 = vmul.f32 %v1343, 1.442695
  %v1345 = vpow.pop %v1344
  %v1346 = vadd.f32 %v1345, 1.0
  %v1347 = vrcp.pop %v1346
  %v1348 = vmul.f32 1.0, %v1347
  %v1349 = vtanh.pop %v1335
  %v1350 = vmul.f32 %v1341, %v1235
  %1352 = vrot.lane.b32.xlu0 %v1342, 32
  %v1353 = vpop.permute.xlu0 %1352
  %v1355 = vmul.f32 %v1341, %v1353
  %1357 = vrot.lane.b32.xlu0 %v1355, 32
  %v1358 = vpop.permute.xlu0 %1357
  %v1360 = vadd.f32 %v1350, %v1358
  %v1361 = vtanh.pop %v1360
  %1363 = vrot.lane.b32.xlu0 %v1361, 32
  %v1364 = vpop.permute.xlu0 %1363
  %v1366 = vmul.f32 %v1341, %v1364
  %v1367 = vmul.f32 %v1348, %v1237
  %1369 = vrot.lane.b32.xlu0 %v1349, 32
  %v1370 = vpop.permute.xlu0 %1369
  %v1372 = vmul.f32 %v1348, %v1370
  %1374 = vrot.lane.b32.xlu0 %v1372, 32
  %v1375 = vpop.permute.xlu0 %1374
  %v1377 = vadd.f32 %v1367, %v1375
  %v1378 = vtanh.pop %v1377
  %1380 = vrot.lane.b32.xlu0 %v1378, 32
  %v1381 = vpop.permute.xlu0 %1380
  %v1383 = vmul.f32 %v1348, %v1381
  %v1384 = vsel %vm531, %v1366, 0.0
  %1386 = vrot.lane.b32.xlu0 %v1384, 64
  %v1387 = vpop.permute.xlu0 %1386
  %1389 = vst.msk [vmem:[%s544] sm:$0xff] %vm72, %v1387
  %v1390 = vsel %vm525, %v1383, 0.0
  %1392 = vrot.lane.b32.xlu0 %v1390, 96
  %v1393 = vpop.permute.xlu0 %1392
  %1395 = vst.msk [vmem:[%s537] sm:$0xff] %vm364, %v1393
  %v1396 = vsel %vm531, %v1366, %v1234
  %v1397 = vsel %vm531, %v1360, %v1235
  %v1398 = vsel %vm525, %v1383, %v1236
  %v1399 = vsel %vm525, %v1377, %v1237
  %v1400 = vld [vmem:[%s241] sm:$0xff]
  %v1401 = vpack.c.bf16 %v1396, %v1396
  %1403 = vrot.lane.b32.xlu0 %v1401, 64
  %v1404 = vpop.permute.xlu0 %1403
  %v1406 = vsel %vm72, %v1404, 0
  %1408 = vmatprep.subr.bf16.mxu0 0
  %1409 = vmatpush1.bf16.msra.mxu0 0
  %1410 = vmatprep.subr.bf16.mxu0 0
  %1411 = vmatpush1.bf16.msra.mxu0 0
  %1412 = vmatprep.subr.bf16.mxu0 0
  %1413 = vmatpush1.bf16.msra.mxu0 0
  %1414 = vmatprep.subr.bf16.mxu0 0
  %1415 = vmatpush1.bf16.msra.mxu0 0
  %1416 = vmatprep.subr.bf16.mxu0 0
  %1417 = vmatpush1.bf16.msra.mxu0 0
  %1418 = vmatprep.subr.bf16.mxu0 0
  %1419 = vmatpush1.bf16.msra.mxu0 0
  %1420 = vmatprep.subr.bf16.mxu0 0
  %1421 = vmatpush1.bf16.msra.mxu0 %v192
  %1422 = vmatprep.subr.bf16.mxu0 0
  %1423 = vmatpush1.bf16.msra.mxu0 %v191
  %1424 = vmatprep.subr.bf16.mxu0 0
  %1425 = vmatpush2.bf16.msra.mxu0 0
  %1426 = vmatprep.subr.bf16.mxu0 0
  %1427 = vmatpush2.bf16.msra.mxu0 0
  %1428 = vmatprep.subr.bf16.mxu0 0
  %1429 = vmatpush2.bf16.msra.mxu0 0
  %1430 = vmatprep.subr.bf16.mxu0 0
  %1431 = vmatpush2.bf16.msra.mxu0 0
  %1432 = vmatprep.subr.bf16.mxu0 0
  %1433 = vmatpush2.bf16.msra.mxu0 0
  %1434 = vmatprep.subr.bf16.mxu0 0
  %1435 = vmatpush2.bf16.msra.mxu0 0
  %1436 = vmatprep.subr.bf16.mxu0 0
  %1437 = vmatpush2.bf16.msra.mxu0 0
  %1438 = vmatprep.subr.bf16.mxu0 0
  %1439 = vmatpush2.bf16.msra.mxu0 0
  %1440 = vmatprep.mubr.bf16.mxu0 0
  %1441 = vmatmul.mubr.bf16.gmra.mxu0 %v1406
  %v1442 = vpop.f32.mrf.mxu0
  %v1443 = vadd.f32 0.0, %v1442
  %v1444 = vpop.f32.mrf.mxu0
  %v1445 = vpop.f32.mrf.mxu0
  %v1446 = vpop.f32.mrf.mxu0
  %1447 = vdwg.mxu0
  %v1448 = vadd.f32 %v1400, %v1443
  %v1449 = vld [vmem:[%s181 + $0x8] sm:$0xff]
  %v1450 = vpack.c.bf16 %v1398, %v1398
  %1452 = vrot.lane.b32.xlu0 %v1450, 64
  %v1453 = vpop.permute.xlu0 %1452
  %v1455 = vsel %vm72, %v1453, 0
  %1457 = vmatprep.subr.bf16.mxu0 0
  %1458 = vmatpush1.bf16.msra.mxu0 0
  %1459 = vmatprep.subr.bf16.mxu0 0
  %1460 = vmatpush1.bf16.msra.mxu0 0
  %1461 = vmatprep.subr.bf16.mxu0 0
  %1462 = vmatpush1.bf16.msra.mxu0 0
  %1463 = vmatprep.subr.bf16.mxu0 0
  %1464 = vmatpush1.bf16.msra.mxu0 0
  %1465 = vmatprep.subr.bf16.mxu0 0
  %1466 = vmatpush1.bf16.msra.mxu0 0
  %1467 = vmatprep.subr.bf16.mxu0 0
  %1468 = vmatpush1.bf16.msra.mxu0 0
  %1469 = vmatprep.subr.bf16.mxu0 0
  %1470 = vmatpush1.bf16.msra.mxu0 %v248
  %1471 = vmatprep.subr.bf16.mxu0 0
  %1472 = vmatpush1.bf16.msra.mxu0 %v247
  %1473 = vmatprep.subr.bf16.mxu0 0
  %1474 = vmatpush2.bf16.msra.mxu0 0
  %1475 = vmatprep.subr.bf16.mxu0 0
  %1476 = vmatpush2.bf16.msra.mxu0 0
  %1477 = vmatprep.subr.bf16.mxu0 0
  %1478 = vmatpush2.bf16.msra.mxu0 0
  %1479 = vmatprep.subr.bf16.mxu0 0
  %1480 = vmatpush2.bf16.msra.mxu0 0
  %1481 = vmatprep.subr.bf16.mxu0 0
  %1482 = vmatpush2.bf16.msra.mxu0 0
  %1483 = vmatprep.subr.bf16.mxu0 0
  %1484 = vmatpush2.bf16.msra.mxu0 0
  %1485 = vmatprep.subr.bf16.mxu0 0
  %1486 = vmatpush2.bf16.msra.mxu0 0
  %1487 = vmatprep.subr.bf16.mxu0 0
  %1488 = vmatpush2.bf16.msra.mxu0 0
  %1489 = vmatprep.mubr.bf16.mxu0 0
  %1490 = vmatmul.mubr.bf16.gmra.mxu0 %v1455
  %v1491 = vpop.f32.mrf.mxu0
  %v1492 = vadd.f32 0.0, %v1491
  %v1493 = vpop.f32.mrf.mxu0
  %v1494 = vpop.f32.mrf.mxu0
  %v1495 = vpop.f32.mrf.mxu0
  %1496 = vdwg.mxu0
  %v1497 = vadd.f32 %v1449, %v1492
  %v1498 = vxor.u32 %v1448, 2147483648
  %v1499 = vmul.f32 %v1498, 1.442695
  %v1500 = vpow.pop %v1499
  %v1501 = vadd.f32 %v1500, 1.0
  %v1502 = vrcp.pop %v1501
  %v1503 = vmul.f32 1.0, %v1502
  %v1504 = vtanh.pop %v1448
  %v1505 = vxor.u32 %v1497, 2147483648
  %v1506 = vmul.f32 %v1505, 1.442695
  %v1507 = vpow.pop %v1506
  %v1508 = vadd.f32 %v1507, 1.0
  %v1509 = vrcp.pop %v1508
  %v1510 = vmul.f32 1.0, %v1509
  %v1511 = vtanh.pop %v1497
  %v1512 = vmul.f32 %v1503, %v1397
  %1514 = vrot.lane.b32.xlu0 %v1504, 32
  %v1515 = vpop.permute.xlu0 %1514
  %v1517 = vmul.f32 %v1503, %v1515
  %1519 = vrot.lane.b32.xlu0 %v1517, 32
  %v1520 = vpop.permute.xlu0 %1519
  %v1522 = vadd.f32 %v1512, %v1520
  %v1523 = vtanh.pop %v1522
  %1525 = vrot.lane.b32.xlu0 %v1523, 32
  %v1526 = vpop.permute.xlu0 %1525
  %v1528 = vmul.f32 %v1503, %v1526
  %v1529 = vmul.f32 %v1510, %v1399
  %1531 = vrot.lane.b32.xlu0 %v1511, 32
  %v1532 = vpop.permute.xlu0 %1531
  %v1534 = vmul.f32 %v1510, %v1532
  %1536 = vrot.lane.b32.xlu0 %v1534, 32
  %v1537 = vpop.permute.xlu0 %1536
  %v1539 = vadd.f32 %v1529, %v1537
  %v1540 = vtanh.pop %v1539
  %1542 = vrot.lane.b32.xlu0 %v1540, 32
  %v1543 = vpop.permute.xlu0 %1542
  %v1545 = vmul.f32 %v1510, %v1543
  %v1546 = vsel %vm351, %v1528, 0.0
  %1548 = vrot.lane.b32.xlu0 %v1546, 64
  %v1549 = vpop.permute.xlu0 %1548
  %1551 = vst.msk [vmem:[%s363] sm:$0xff] %vm72, %v1549
  %v1552 = vsel %vm345, %v1545, 0.0
  %1554 = vrot.lane.b32.xlu0 %v1552, 96
  %v1555 = vpop.permute.xlu0 %1554
  %1557 = vst.msk [vmem:[%s5] sm:$0xff] %vm364, %v1555
  %v1558 = vsel %vm351, %v1528, %v1396
  %v1559 = vsel %vm351, %v1522, %v1397
  %v1560 = vsel %vm345, %v1545, %v1398
  %v1561 = vsel %vm345, %v1539, %v1399
  %1563 = vrot.lane.b32.xlu0 %v1558, 64
  %v1564 = vpop.permute.xlu0 %1563
  %1566 = vst.msk [vmem:[%s6] sm:$0xff] %vm72, %v1564
  %1568 = vrot.lane.b32.xlu0 %v1560, 96
  %v1569 = vpop.permute.xlu0 %1568
  %1571 = vst.msk [vmem:[%s6] sm:$0xff] %vm364, %v1569
  %1573 = vrot.lane.b32.xlu0 %v1559, 96
  %v1574 = vpop.permute.xlu0 %1573
  %1576 = vst.msk [vmem:[%s7] sm:$0xff] %vm72, %v1574
  %1577 = vst.msk [vmem:[%s7] sm:$0xff] %vm364, %v1561
  // Predicated region
  $region22: #{encoder_forward.2} parent=0 // pred_check
    _
  $region23: #{encoder_forward.2} parent=0 // pred_check_branch
    %1579 = sbr.rel (0) target = $region25
  $region24: #{encoder_forward.2} parent=0 // pred_region
    _
  $region25: #{encoder_forward.2} parent=0 // pred_fallthru
    _
  // Predicated region
  $region26: #{encoder_forward.2} parent=0 // pred_check
    _
  $region27: #{encoder_forward.2} parent=0 // pred_check_branch
    %1581 = sbr.rel (0) target = $region29
  $region28: #{encoder_forward.2} parent=0 // pred_region
    _
  $region29: #{encoder_forward.2} parent=0 // pred_fallthru
    _
  // Predicated region
  $region30: #{encoder_forward.2} parent=0 // pred_check
    _
  $region31: #{encoder_forward.2} parent=0 // pred_check_branch
    %1583 = sbr.rel (0) target = $region33
  $region32: #{encoder_forward.2} parent=0 // pred_region
    _
  $region33: #{encoder_forward.2} parent=0 // pred_fallthru
    _
  // Predicated region
  $region34: #{encoder_forward.2} parent=0 // pred_check
    _
  $region35: #{encoder_forward.2} parent=0 // pred_check_branch
    %1585 = sbr.rel (0) target = $region37
  $region36: #{encoder_forward.2} parent=0 // pred_region
    _
  $region37: #{encoder_forward.2} parent=0 // pred_fallthru
    _
  // Predicated region
  $region38: #{encoder_forward.2} parent=0 // pred_check
    _
  $region39: #{encoder_forward.2} parent=0 // pred_check_branch
    %1587 = sbr.rel (0) target = $region41
  $region40: #{encoder_forward.2} parent=0 // pred_region
    _
  $region41: #{encoder_forward.2} parent=0 // pred_fallthru
    _
  // Predicated region
  $region42: #{encoder_forward.2} parent=0 // pred_check
    _
  $region43: #{encoder_forward.2} parent=0 // pred_check_branch
    %1589 = sbr.rel (0) target = $region45
  $region44: #{encoder_forward.2} parent=0 // pred_region
    _
  $region45: #{encoder_forward.2} parent=0 // pred_fallthru
    _

// kernel: encoder_forward.3
$region0: #{encoder_forward.3}
  #allocation0 [shape = 'u32[]', space=smem, size = 0x4, offset = 0x4, fixed_abs, tag = 'smem constant byte address 0x4 - core index']
  #allocation1 [shape = 'u32[144,128]{1,0:T(1,128)}', space=vmem, size = 0x12000, scoped, tag = 'internal scratch']
  #allocation2 [shape = 'f32[64,256]{1,0:T(8,128)}', space=vmem, size = 0x10000, scoped, tag = 'scratch operand']
  %s0 = inlined_call_operand.vmem [shape: s32[8,1], index: 0, kind: input, shape index: {}]
  %s1 = inlined_call_operand.vmem [shape: f32[64,64], index: 1, kind: input, shape index: {}]
  %s2 = inlined_call_operand.vmem [shape: bf16[64,256], index: 2, kind: input, shape index: {}]
  %s3 = inlined_call_operand.vmem [shape: bf16[32,256], index: 3, kind: input, shape index: {}]
  %s4 = inlined_call_operand.vmem [shape: f32[1,256], index: 4, kind: input, shape index: {}]
  %s5 = inlined_call_operand.vmem [shape: f32[64,64], index: 5, kind: output, shape index: {0}]
  %s6 = inlined_call_operand.vmem [shape: f32[8,64], index: 6, kind: output, shape index: {1}]
  %s7 = inlined_call_operand.vmem [shape: f32[8,64], index: 7, kind: output, shape index: {2}]
  %8 = xla_tuple %s5, %s6, %s7
  %s9 = sld [smem:[#allocation0]]
  $region46: #{encoder_forward.3} parent=0
    _
  %s11 = ssub.s32 1, %s9
  %s12 = scalar_select 0, %s11, %s9
  // Predicated region
  $region2: #{encoder_forward.3} parent=0 // pred_check
    _
  $region3: #{encoder_forward.3} parent=0 // pred_check_branch
    %14 = sbr.rel (0) target = $region5
  $region4: #{encoder_forward.3} parent=0 // pred_region
    _
  $region5: #{encoder_forward.3} parent=0 // pred_fallthru
    _
  // Predicated region
  $region6: #{encoder_forward.3} parent=0 // pred_check
    _
  $region7: #{encoder_forward.3} parent=0 // pred_check_branch
    %16 = sbr.rel (0) target = $region9
  $region8: #{encoder_forward.3} parent=0 // pred_region
    _
  $region9: #{encoder_forward.3} parent=0 // pred_fallthru
    _
  // Predicated region
  $region10: #{encoder_forward.3} parent=0 // pred_check
    _
  $region11: #{encoder_forward.3} parent=0 // pred_check_branch
    %18 = sbr.rel (0) target = $region13
  $region12: #{encoder_forward.3} parent=0 // pred_region
    _
  $region13: #{encoder_forward.3} parent=0 // pred_fallthru
    _
  // Predicated region
  $region14: #{encoder_forward.3} parent=0 // pred_check
    _
  $region15: #{encoder_forward.3} parent=0 // pred_check_branch
    %20 = sbr.rel (0) target = $region17
  $region16: #{encoder_forward.3} parent=0 // pred_region
    _
  $region17: #{encoder_forward.3} parent=0 // pred_fallthru
    _
  // Predicated region
  $region18: #{encoder_forward.3} parent=0 // pred_check
    _
  $region19: #{encoder_forward.3} parent=0 // pred_check_branch
    %22 = sbr.rel (0) target = $region21
  $region20: #{encoder_forward.3} parent=0 // pred_region
    _
  $region21: #{encoder_forward.3} parent=0 // pred_fallthru
    _
  %v24 = vld [vmem:[%s1] sm:$0xff]
  %v25 = vld [vmem:[%s1 + $0x8] sm:$0xff]
  %v26 = vld [vmem:[%s1 + $0x10] sm:$0xff]
  %v27 = vld [vmem:[%s1 + $0x18] sm:$0xff]
  %v28 = vld [vmem:[%s1 + $0x20] sm:$0xff]
  %v29 = vld [vmem:[%s1 + $0x28] sm:$0xff]
  %v30 = vld [vmem:[%s1 + $0x30] sm:$0xff]
  %v31 = vld [vmem:[%s1 + $0x38] sm:$0xff]
  %v32 = vpack.c.bf16 %v25, %v24
  %v33 = vpack.c.bf16 %v27, %v26
  %v34 = vpack.c.bf16 %v29, %v28
  %v35 = vpack.c.bf16 %v31, %v30
  %v36 = vld [vmem:[%s2] sm:$0xff]
  %v37 = vld [vmem:[%s2 + $0x8] sm:$0xff]
  %v38 = vld [vmem:[%s2 + $0x10] sm:$0xff]
  %v39 = vld [vmem:[%s2 + $0x18] sm:$0xff]
  %v40 = vld [vmem:[%s2 + $0x20] sm:$0xff]
  %v41 = vld [vmem:[%s2 + $0x28] sm:$0xff]
  %v42 = vld [vmem:[%s2 + $0x30] sm:$0xff]
  %v43 = vld [vmem:[%s2 + $0x38] sm:$0xff]
  %v44 = vld [vmem:[%s4] sm:$0x3]
  %v46 = vlaneseq
  %v47 = vshrl.u32 %v46, 7
  %v48 = vsub.s32 0, %v47
  %v49 = vrot.slane %v44, %v48
  %v50 = vlaneseq
  %v51 = vshrl.u32 %v50, 7
  %v52 = vsub.s32 1, %v51
  %v53 = vrot.slane %v44, %v52
  %v64 = vunpack.c.l.b16 %v36
  %v65 = vunpack.c.h.b16 %v36
  %v66 = vunpack.c.l.b16 %v37
  %v67 = vunpack.c.h.b16 %v37
  %v68 = vunpack.c.l.b16 %v38
  %v69 = vunpack.c.h.b16 %v38
  %v70 = vunpack.c.l.b16 %v39
  %v71 = vunpack.c.h.b16 %v39
  %v72 = vunpack.c.l.b16 %v40
  %v73 = vunpack.c.h.b16 %v40
  %v74 = vunpack.c.l.b16 %v41
  %v75 = vunpack.c.h.b16 %v41
  %v76 = vunpack.c.l.b16 %v42
  %v77 = vunpack.c.h.b16 %v42
  %v78 = vunpack.c.l.b16 %v43
  %v79 = vunpack.c.h.b16 %v43
  %v80 = vpack.c.b16 %v66, %v64
  %v81 = vpack.c.b16 %v67, %v65
  %v82 = vpack.c.b16 %v70, %v68
  %v83 = vpack.c.b16 %v71, %v69
  %v84 = vpack.c.b16 %v74, %v72
  %v85 = vpack.c.b16 %v75, %v73
  %v86 = vpack.c.b16 %v78, %v76
  %v87 = vpack.c.b16 %v79, %v77
  %vm96 = vcmask 523264
  %v98 = vsel %vm96, %v32, 0
  %v101 = vsel %vm96, %v33, 0
  %v104 = vsel %vm96, %v34, 0
  %v107 = vsel %vm96, %v35, 0
  %109 = vmatprep.subr.bf16.mxu0 0
  %110 = vmatpush1.bf16.msra.mxu0 0
  %111 = vmatprep.subr.bf16.mxu0 0
  %112 = vmatpush1.bf16.msra.mxu0 0
  %113 = vmatprep.subr.bf16.mxu0 0
  %114 = vmatpush1.bf16.msra.mxu0 0
  %115 = vmatprep.subr.bf16.mxu0 0
  %116 = vmatpush1.bf16.msra.mxu0 0
  %117 = vmatprep.subr.bf16.mxu0 %v87
  %118 = vmatpush1.bf16.msra.mxu0 %v86
  %119 = vmatprep.subr.bf16.mxu0 %v85
  %120 = vmatpush1.bf16.msra.mxu0 %v84
  %121 = vmatprep.subr.bf16.mxu0 %v83
  %122 = vmatpush1.bf16.msra.mxu0 %v82
  %123 = vmatprep.subr.bf16.mxu0 %v81
  %124 = vmatpush1.bf16.msra.mxu0 %v80
  %125 = vmatprep.subr.bf16.mxu0 0
  %126 = vmatpush2.bf16.msra.mxu0 0
  %127 = vmatprep.subr.bf16.mxu0 0
  %128 = vmatpush2.bf16.msra.mxu0 0
  %129 = vmatprep.subr.bf16.mxu0 0
  %130 = vmatpush2.bf16.msra.mxu0 0
  %131 = vmatprep.subr.bf16.mxu0 0
  %132 = vmatpush2.bf16.msra.mxu0 0
  %133 = vmatprep.subr.bf16.mxu0 0
  %134 = vmatpush2.bf16.msra.mxu0 0
  %135 = vmatprep.subr.bf16.mxu0 0
  %136 = vmatpush2.bf16.msra.mxu0 0
  %137 = vmatprep.subr.bf16.mxu0 0
  %138 = vmatpush2.bf16.msra.mxu0 0
  %139 = vmatprep.subr.bf16.mxu0 0
  %140 = vmatpush2.bf16.msra.mxu0 0
  %141 = vmatprep.mubr.bf16.mxu0 0
  %142 = vmatmul.mubr.bf16.gmra.mxu0 %v98
  %v143 = vpop.f32.mrf.mxu0
  %v144 = vadd.f32 %v49, %v143
  %v145 = vpop.f32.mrf.mxu0
  %v146 = vadd.f32 %v53, %v145
  %v147 = vpop.f32.mrf.mxu0
  %v148 = vadd.f32 %v49, %v147
  %v149 = vpop.f32.mrf.mxu0
  %v150 = vadd.f32 %v53, %v149
  %151 = vmatprep.mubr.bf16.mxu0 0
  %152 = vmatmul.mubr.bf16.gmra.mxu0 %v101
  %v153 = vpop.f32.mrf.mxu0
  %v154 = vadd.f32 %v49, %v153
  %v155 = vpop.f32.mrf.mxu0
  %v156 = vadd.f32 %v53, %v155
  %v157 = vpop.f32.mrf.mxu0
  %v158 = vadd.f32 %v49, %v157
  %v159 = vpop.f32.mrf.mxu0
  %v160 = vadd.f32 %v53, %v159
  %161 = vmatprep.mubr.bf16.mxu0 0
  %162 = vmatmul.mubr.bf16.gmra.mxu0 %v104
  %v163 = vpop.f32.mrf.mxu0
  %v164 = vadd.f32 %v49, %v163
  %v165 = vpop.f32.mrf.mxu0
  %v166 = vadd.f32 %v53, %v165
  %v167 = vpop.f32.mrf.mxu0
  %v168 = vadd.f32 %v49, %v167
  %v169 = vpop.f32.mrf.mxu0
  %v170 = vadd.f32 %v53, %v169
  %171 = vmatprep.mubr.bf16.mxu0 0
  %172 = vmatmul.mubr.bf16.gmra.mxu0 %v107
  %v173 = vpop.f32.mrf.mxu0
  %v174 = vadd.f32 %v49, %v173
  %v175 = vpop.f32.mrf.mxu0
  %v176 = vadd.f32 %v53, %v175
  %v177 = vpop.f32.mrf.mxu0
  %v178 = vadd.f32 %v49, %v177
  %v179 = vpop.f32.mrf.mxu0
  %v180 = vadd.f32 %v53, %v179
  %181 = vdwg.mxu0
  %182 = vst [vmem:[#allocation2] sm:$0xff] %v144
  %183 = vst [vmem:[#allocation2 + $0x8] sm:$0xff] %v146
  %184 = vst [vmem:[#allocation2 + $0x10] sm:$0xff] %v148
  %185 = vst [vmem:[#allocation2 + $0x18] sm:$0xff] %v150
  %186 = vst [vmem:[#allocation2 + $0x20] sm:$0xff] %v154
  %187 = vst [vmem:[#allocation2 + $0x28] sm:$0xff] %v156
  %188 = vst [vmem:[#allocation2 + $0x30] sm:$0xff] %v158
  %189 = vst [vmem:[#allocation2 + $0x38] sm:$0xff] %v160
  %190 = vst [vmem:[#allocation2 + $0x40] sm:$0xff] %v164
  %191 = vst [vmem:[#allocation2 + $0x48] sm:$0xff] %v166
  %192 = vst [vmem:[#allocation2 + $0x50] sm:$0xff] %v168
  %193 = vst [vmem:[#allocation2 + $0x58] sm:$0xff] %v170
  %194 = vst [vmem:[#allocation2 + $0x60] sm:$0xff] %v174
  %195 = vst [vmem:[#allocation2 + $0x68] sm:$0xff] %v176
  %196 = vst [vmem:[#allocation2 + $0x70] sm:$0xff] %v178
  %197 = vst [vmem:[#allocation2 + $0x78] sm:$0xff] %v180
  %v198 = vld [vmem:[%s3] sm:$0xff]
  %v199 = vld [vmem:[%s3 + $0x8] sm:$0xff]
  %v200 = vld [vmem:[%s3 + $0x10] sm:$0xff]
  %v201 = vld [vmem:[%s3 + $0x18] sm:$0xff]
  %v202 = vld [vmem:[%s0] sm:$0xff]
  %s203 = smul.u32 0, 2
  %s204 = smul.addr %s203, 8
  %s205 = scalar_lea.vmem [#allocation2], %s204
  %v206 = vld [vmem:[%s205] sm:$0xff]
  %v211 = vunpack.c.l.b16 %v198
  %v212 = vunpack.c.l.b16 %v199
  %v213 = vunpack.c.l.b16 %v200
  %v214 = vunpack.c.l.b16 %v201
  %v215 = vpack.c.b16 %v212, %v211
  %v216 = vpack.c.b16 %v214, %v213
  %vm219 = vcmask 261120
  %v221 = vsel %vm219, 0, 0
  %223 = vmatprep.subr.bf16.mxu0 0
  %224 = vmatpush1.bf16.msra.mxu0 0
  %225 = vmatprep.subr.bf16.mxu0 0
  %226 = vmatpush1.bf16.msra.mxu0 0
  %227 = vmatprep.subr.bf16.mxu0 0
  %228 = vmatpush1.bf16.msra.mxu0 0
  %229 = vmatprep.subr.bf16.mxu0 0
  %230 = vmatpush1.bf16.msra.mxu0 0
  %231 = vmatprep.subr.bf16.mxu0 0
  %232 = vmatpush1.bf16.msra.mxu0 0
  %233 = vmatprep.subr.bf16.mxu0 0
  %234 = vmatpush1.bf16.msra.mxu0 0
  %235 = vmatprep.subr.bf16.mxu0 0
  %236 = vmatpush1.bf16.msra.mxu0 %v216
  %237 = vmatprep.subr.bf16.mxu0 0
  %238 = vmatpush1.bf16.msra.mxu0 %v215
  %239 = vmatprep.subr.bf16.mxu0 0
  %240 = vmatpush2.bf16.msra.mxu0 0
  %241 = vmatprep.subr.bf16.mxu0 0
  %242 = vmatpush2.bf16.msra.mxu0 0
  %243 = vmatprep.subr.bf16.mxu0 0
  %244 = vmatpush2.bf16.msra.mxu0 0
  %245 = vmatprep.subr.bf16.mxu0 0
  %246 = vmatpush2.bf16.msra.mxu0 0
  %247 = vmatprep.subr.bf16.mxu0 0
  %248 = vmatpush2.bf16.msra.mxu0 0
  %249 = vmatprep.subr.bf16.mxu0 0
  %250 = vmatpush2.bf16.msra.mxu0 0
  %251 = vmatprep.subr.bf16.mxu0 0
  %252 = vmatpush2.bf16.msra.mxu0 0
  %253 = vmatprep.subr.bf16.mxu0 0
  %254 = vmatpush2.bf16.msra.mxu0 0
  %255 = vmatprep.mubr.bf16.mxu0 0
  %256 = vmatmul.mubr.bf16.gmra.mxu0 %v221
  %v257 = vpop.f32.mrf.mxu0
  %v258 = vadd.f32 0.0, %v257
  %v259 = vpop.f32.mrf.mxu0
  %v260 = vpop.f32.mrf.mxu0
  %v261 = vpop.f32.mrf.mxu0
  %262 = vdwg.mxu0
  %v263 = vadd.f32 %v206, %v258
  %s264 = smul.u32 7, 2
  %s265 = smul.addr %s264, 8
  %s266 = scalar_lea.vmem [#allocation2], %s265
  %v267 = vld [vmem:[%s266 + $0x8] sm:$0xff]
  %v268 = vunpack.c.h.b16 %v198
  %v269 = vunpack.c.h.b16 %v199
  %v270 = vunpack.c.h.b16 %v200
  %v271 = vunpack.c.h.b16 %v201
  %v272 = vpack.c.b16 %v269, %v268
  %v273 = vpack.c.b16 %v271, %v270
  %276 = vmatprep.subr.bf16.mxu0 0
  %277 = vmatpush1.bf16.msra.mxu0 0
  %278 = vmatprep.subr.bf16.mxu0 0
  %279 = vmatpush1.bf16.msra.mxu0 0
  %280 = vmatprep.subr.bf16.mxu0 0
  %281 = vmatpush1.bf16.msra.mxu0 0
  %282 = vmatprep.subr.bf16.mxu0 0
  %283 = vmatpush1.bf16.msra.mxu0 0
  %284 = vmatprep.subr.bf16.mxu0 0
  %285 = vmatpush1.bf16.msra.mxu0 0
  %286 = vmatprep.subr.bf16.mxu0 0
  %287 = vmatpush1.bf16.msra.mxu0 0
  %288 = vmatprep.subr.bf16.mxu0 0
  %289 = vmatpush1.bf16.msra.mxu0 %v273
  %290 = vmatprep.subr.bf16.mxu0 0
  %291 = vmatpush1.bf16.msra.mxu0 %v272
  %292 = vmatprep.subr.bf16.mxu0 0
  %293 = vmatpush2.bf16.msra.mxu0 0
  %294 = vmatprep.subr.bf16.mxu0 0
  %295 = vmatpush2.bf16.msra.mxu0 0
  %296 = vmatprep.subr.bf16.mxu0 0
  %297 = vmatpush2.bf16.msra.mxu0 0
  %298 = vmatprep.subr.bf16.mxu0 0
  %299 = vmatpush2.bf16.msra.mxu0 0
  %300 = vmatprep.subr.bf16.mxu0 0
  %301 = vmatpush2.bf16.msra.mxu0 0
  %302 = vmatprep.subr.bf16.mxu0 0
  %303 = vmatpush2.bf16.msra.mxu0 0
  %304 = vmatprep.subr.bf16.mxu0 0
  %305 = vmatpush2.bf16.msra.mxu0 0
  %306 = vmatprep.subr.bf16.mxu0 0
  %307 = vmatpush2.bf16.msra.mxu0 0
  %308 = vmatprep.mubr.bf16.mxu0 0
  %309 = vmatmul.mubr.bf16.gmra.mxu0 %v221
  %v310 = vpop.f32.mrf.mxu0
  %v311 = vadd.f32 0.0, %v310
  %v312 = vpop.f32.mrf.mxu0
  %v313 = vpop.f32.mrf.mxu0
  %v314 = vpop.f32.mrf.mxu0
  %315 = vdwg.mxu0
  %v316 = vadd.f32 %v267, %v311
  %v317 = vxor.u32 %v263, 2147483648
  %v318 = vmul.f32 %v317, 1.442695
  %v319 = vpow.pop %v318
  %v320 = vadd.f32 %v319, 1.0
  %v321 = vrcp.pop %v320
  %v322 = vmul.f32 1.0, %v321
  %v323 = vtanh.pop %v263
  %v324 = vxor.u32 %v316, 2147483648
  %v325 = vmul.f32 %v324, 1.442695
  %v326 = vpow.pop %v325
  %v327 = vadd.f32 %v326, 1.0
  %v328 = vrcp.pop %v327
  %v329 = vmul.f32 1.0, %v328
  %v330 = vtanh.pop %v316
  %v331 = vmul.f32 %v322, 0.0
  %333 = vrot.lane.b32.xlu0 %v323, 32
  %v334 = vpop.permute.xlu0 %333
  %v336 = vmul.f32 %v322, %v334
  %338 = vrot.lane.b32.xlu0 %v336, 32
  %v339 = vpop.permute.xlu0 %338
  %v341 = vadd.f32 %v331, %v339
  %v342 = vtanh.pop %v341
  %344 = vrot.lane.b32.xlu0 %v342, 32
  %v345 = vpop.permute.xlu0 %344
  %v347 = vmul.f32 %v322, %v345
  %v348 = vmul.f32 %v329, 0.0
  %350 = vrot.lane.b32.xlu0 %v330, 32
  %v351 = vpop.permute.xlu0 %350
  %v353 = vmul.f32 %v329, %v351
  %355 = vrot.lane.b32.xlu0 %v353, 32
  %v356 = vpop.permute.xlu0 %355
  %v358 = vadd.f32 %v348, %v356
  %v359 = vtanh.pop %v358
  %361 = vrot.lane.b32.xlu0 %v359, 32
  %v362 = vpop.permute.xlu0 %361
  %v364 = vmul.f32 %v329, %v362
  %vm365 = vcmp.gt.s32.totalorder %v202, 0
  %v366 = vsel %vm365, 1, 0
  %367 = vset.pattern.permute.xlu0 0
  %368 = vperm.xlu0 %367, %v366
  %v369 = vpop.permute.xlu0 %368
  %vm370 = vcmp.eq.s32.totalorder %v369, 1
  %vm371 = vcmp.gt.s32.totalorder %v202, 7
  %v372 = vsel %vm371, 1, 0
  %373 = vset.pattern.permute.xlu0 0
  %374 = vperm.xlu0 %373, %v372
  %v375 = vpop.permute.xlu0 %374
  %vm376 = vcmp.eq.s32.totalorder %v375, 1
  %v377 = vsel %vm370, %v347, 0.0
  %379 = vrot.lane.b32.xlu0 %v377, 64
  %v380 = vpop.permute.xlu0 %379
  %382 = vst.msk [vmem:[%s5] sm:$0xff] %vm219, %v380
  %v383 = vsel %vm376, %v364, 0.0
  %385 = vrot.lane.b32.xlu0 %v383, 96
  %v386 = vpop.permute.xlu0 %385
  %s388 = scalar_lea.vmem %s5, 56
  %vm389 = vcmask 523520
  %390 = vst.msk [vmem:[%s388] sm:$0xff] %vm389, %v386
  %v391 = vsel %vm370, %v341, 0.0
  %v392 = vsel %vm376, %v358, 0.0
  %s393 = smul.u32 1, 2
  %s394 = smul.addr %s393, 8
  %s395 = scalar_lea.vmem [#allocation2], %s394
  %v396 = vld [vmem:[%s395] sm:$0xff]
  %v397 = vpack.c.bf16 %v377, %v377
  %399 = vrot.lane.b32.xlu0 %v397, 64
  %v400 = vpop.permute.xlu0 %399
  %v402 = vsel %vm219, %v400, 0
  %404 = vmatprep.subr.bf16.mxu0 0
  %405 = vmatpush1.bf16.msra.mxu0 0
  %406 = vmatprep.subr.bf16.mxu0 0
  %407 = vmatpush1.bf16.msra.mxu0 0
  %408 = vmatprep.subr.bf16.mxu0 0
  %409 = vmatpush1.bf16.msra.mxu0 0
  %410 = vmatprep.subr.bf16.mxu0 0
  %411 = vmatpush1.bf16.msra.mxu0 0
  %412 = vmatprep.subr.bf16.mxu0 0
  %413 = vmatpush1.bf16.msra.mxu0 0
  %414 = vmatprep.subr.bf16.mxu0 0
  %415 = vmatpush1.bf16.msra.mxu0 0
  %416 = vmatprep.subr.bf16.mxu0 0
  %417 = vmatpush1.bf16.msra.mxu0 %v216
  %418 = vmatprep.subr.bf16.mxu0 0
  %419 = vmatpush1.bf16.msra.mxu0 %v215
  %420 = vmatprep.subr.bf16.mxu0 0
  %421 = vmatpush2.bf16.msra.mxu0 0
  %422 = vmatprep.subr.bf16.mxu0 0
  %423 = vmatpush2.bf16.msra.mxu0 0
  %424 = vmatprep.subr.bf16.mxu0 0
  %425 = vmatpush2.bf16.msra.mxu0 0
  %426 = vmatprep.subr.bf16.mxu0 0
  %427 = vmatpush2.bf16.msra.mxu0 0
  %428 = vmatprep.subr.bf16.mxu0 0
  %429 = vmatpush2.bf16.msra.mxu0 0
  %430 = vmatprep.subr.bf16.mxu0 0
  %431 = vmatpush2.bf16.msra.mxu0 0
  %432 = vmatprep.subr.bf16.mxu0 0
  %433 = vmatpush2.bf16.msra.mxu0 0
  %434 = vmatprep.subr.bf16.mxu0 0
  %435 = vmatpush2.bf16.msra.mxu0 0
  %436 = vmatprep.mubr.bf16.mxu0 0
  %437 = vmatmul.mubr.bf16.gmra.mxu0 %v402
  %v438 = vpop.f32.mrf.mxu0
  %v439 = vadd.f32 0.0, %v438
  %v440 = vpop.f32.mrf.mxu0
  %v441 = vpop.f32.mrf.mxu0
  %v442 = vpop.f32.mrf.mxu0
  %443 = vdwg.mxu0
  %v444 = vadd.f32 %v396, %v439
  %s445 = smul.u32 6, 2
  %s446 = smul.addr %s445, 8
  %s447 = scalar_lea.vmem [#allocation2], %s446
  %v448 = vld [vmem:[%s447 + $0x8] sm:$0xff]
  %v449 = vpack.c.bf16 %v383, %v383
  %451 = vrot.lane.b32.xlu0 %v449, 64
  %v452 = vpop.permute.xlu0 %451
  %v454 = vsel %vm219, %v452, 0
  %456 = vmatprep.subr.bf16.mxu0 0
  %457 = vmatpush1.bf16.msra.mxu0 0
  %458 = vmatprep.subr.bf16.mxu0 0
  %459 = vmatpush1.bf16.msra.mxu0 0
  %460 = vmatprep.subr.bf16.mxu0 0
  %461 = vmatpush1.bf16.msra.mxu0 0
  %462 = vmatprep.subr.bf16.mxu0 0
  %463 = vmatpush1.bf16.msra.mxu0 0
  %464 = vmatprep.subr.bf16.mxu0 0
  %465 = vmatpush1.bf16.msra.mxu0 0
  %466 = vmatprep.subr.bf16.mxu0 0
  %467 = vmatpush1.bf16.msra.mxu0 0
  %468 = vmatprep.subr.bf16.mxu0 0
  %469 = vmatpush1.bf16.msra.mxu0 %v273
  %470 = vmatprep.subr.bf16.mxu0 0
  %471 = vmatpush1.bf16.msra.mxu0 %v272
  %472 = vmatprep.subr.bf16.mxu0 0
  %473 = vmatpush2.bf16.msra.mxu0 0
  %474 = vmatprep.subr.bf16.mxu0 0
  %475 = vmatpush2.bf16.msra.mxu0 0
  %476 = vmatprep.subr.bf16.mxu0 0
  %477 = vmatpush2.bf16.msra.mxu0 0
  %478 = vmatprep.subr.bf16.mxu0 0
  %479 = vmatpush2.bf16.msra.mxu0 0
  %480 = vmatprep.subr.bf16.mxu0 0
  %481 = vmatpush2.bf16.msra.mxu0 0
  %482 = vmatprep.subr.bf16.mxu0 0
  %483 = vmatpush2.bf16.msra.mxu0 0
  %484 = vmatprep.subr.bf16.mxu0 0
  %485 = vmatpush2.bf16.msra.mxu0 0
  %486 = vmatprep.subr.bf16.mxu0 0
  %487 = vmatpush2.bf16.msra.mxu0 0
  %488 = vmatprep.mubr.bf16.mxu0 0
  %489 = vmatmul.mubr.bf16.gmra.mxu0 %v454
  %v490 = vpop.f32.mrf.mxu0
  %v491 = vadd.f32 0.0, %v490
  %v492 = vpop.f32.mrf.mxu0
  %v493 = vpop.f32.mrf.mxu0
  %v494 = vpop.f32.mrf.mxu0
  %495 = vdwg.mxu0
  %v496 = vadd.f32 %v448, %v491
  %v497 = vxor.u32 %v444, 2147483648
  %v498 = vmul.f32 %v497, 1.442695
  %v499 = vpow.pop %v498
  %v500 = vadd.f32 %v499, 1.0
  %v501 = vrcp.pop %v500
  %v502 = vmul.f32 1.0, %v501
  %v503 = vtanh.pop %v444
  %v504 = vxor.u32 %v496, 2147483648
  %v505 = vmul.f32 %v504, 1.442695
  %v506 = vpow.pop %v505
  %v507 = vadd.f32 %v506, 1.0
  %v508 = vrcp.pop %v507
  %v509 = vmul.f32 1.0, %v508
  %v510 = vtanh.pop %v496
  %v511 = vmul.f32 %v502, %v391
  %513 = vrot.lane.b32.xlu0 %v503, 32
  %v514 = vpop.permute.xlu0 %513
  %v516 = vmul.f32 %v502, %v514
  %518 = vrot.lane.b32.xlu0 %v516, 32
  %v519 = vpop.permute.xlu0 %518
  %v521 = vadd.f32 %v511, %v519
  %v522 = vtanh.pop %v521
  %524 = vrot.lane.b32.xlu0 %v522, 32
  %v525 = vpop.permute.xlu0 %524
  %v527 = vmul.f32 %v502, %v525
  %v528 = vmul.f32 %v509, %v392
  %530 = vrot.lane.b32.xlu0 %v510, 32
  %v531 = vpop.permute.xlu0 %530
  %v533 = vmul.f32 %v509, %v531
  %535 = vrot.lane.b32.xlu0 %v533, 32
  %v536 = vpop.permute.xlu0 %535
  %v538 = vadd.f32 %v528, %v536
  %v539 = vtanh.pop %v538
  %541 = vrot.lane.b32.xlu0 %v539, 32
  %v542 = vpop.permute.xlu0 %541
  %v544 = vmul.f32 %v509, %v542
  %vm545 = vcmp.gt.s32.totalorder %v202, 1
  %v546 = vsel %vm545, 1, 0
  %547 = vset.pattern.permute.xlu0 0
  %548 = vperm.xlu0 %547, %v546
  %v549 = vpop.permute.xlu0 %548
  %vm550 = vcmp.eq.s32.totalorder %v549, 1
  %vm551 = vcmp.gt.s32.totalorder %v202, 6
  %v552 = vsel %vm551, 1, 0
  %553 = vset.pattern.permute.xlu0 0
  %554 = vperm.xlu0 %553, %v552
  %v555 = vpop.permute.xlu0 %554
  %vm556 = vcmp.eq.s32.totalorder %v555, 1
  %v557 = vsel %vm550, %v527, 0.0
  %559 = vrot.lane.b32.xlu0 %v557, 64
  %v560 = vpop.permute.xlu0 %559
  %s562 = scalar_lea.vmem %s5, 8
  %563 = vst.msk [vmem:[%s562] sm:$0xff] %vm219, %v560
  %v564 = vsel %vm556, %v544, 0.0
  %566 = vrot.lane.b32.xlu0 %v564, 96
  %v567 = vpop.permute.xlu0 %566
  %s569 = scalar_lea.vmem %s5, 48
  %570 = vst.msk [vmem:[%s569] sm:$0xff] %vm389, %v567
  %v571 = vsel %vm550, %v527, %v377
  %v572 = vsel %vm550, %v521, %v391
  %v573 = vsel %vm556, %v544, %v383
  %v574 = vsel %vm556, %v538, %v392
  %s575 = smul.u32 2, 2
  %s576 = smul.addr %s575, 8
  %s577 = scalar_lea.vmem [#allocation2], %s576
  %v578 = vld [vmem:[%s577] sm:$0xff]
  %v579 = vpack.c.bf16 %v571, %v571
  %581 = vrot.lane.b32.xlu0 %v579, 64
  %v582 = vpop.permute.xlu0 %581
  %v584 = vsel %vm219, %v582, 0
  %586 = vmatprep.subr.bf16.mxu0 0
  %587 = vmatpush1.bf16.msra.mxu0 0
  %588 = vmatprep.subr.bf16.mxu0 0
  %589 = vmatpush1.bf16.msra.mxu0 0
  %590 = vmatprep.subr.bf16.mxu0 0
  %591 = vmatpush1.bf16.msra.mxu0 0
  %592 = vmatprep.subr.bf16.mxu0 0
  %593 = vmatpush1.bf16.msra.mxu0 0
  %594 = vmatprep.subr.bf16.mxu0 0
  %595 = vmatpush1.bf16.msra.mxu0 0
  %596 = vmatprep.subr.bf16.mxu0 0
  %597 = vmatpush1.bf16.msra.mxu0 0
  %598 = vmatprep.subr.bf16.mxu0 0
  %599 = vmatpush1.bf16.msra.mxu0 %v216
  %600 = vmatprep.subr.bf16.mxu0 0
  %601 = vmatpush1.bf16.msra.mxu0 %v215
  %602 = vmatprep.subr.bf16.mxu0 0
  %603 = vmatpush2.bf16.msra.mxu0 0
  %604 = vmatprep.subr.bf16.mxu0 0
  %605 = vmatpush2.bf16.msra.mxu0 0
  %606 = vmatprep.subr.bf16.mxu0 0
  %607 = vmatpush2.bf16.msra.mxu0 0
  %608 = vmatprep.subr.bf16.mxu0 0
  %609 = vmatpush2.bf16.msra.mxu0 0
  %610 = vmatprep.subr.bf16.mxu0 0
  %611 = vmatpush2.bf16.msra.mxu0 0
  %612 = vmatprep.subr.bf16.mxu0 0
  %613 = vmatpush2.bf16.msra.mxu0 0
  %614 = vmatprep.subr.bf16.mxu0 0
  %615 = vmatpush2.bf16.msra.mxu0 0
  %616 = vmatprep.subr.bf16.mxu0 0
  %617 = vmatpush2.bf16.msra.mxu0 0
  %618 = vmatprep.mubr.bf16.mxu0 0
  %619 = vmatmul.mubr.bf16.gmra.mxu0 %v584
  %v620 = vpop.f32.mrf.mxu0
  %v621 = vadd.f32 0.0, %v620
  %v622 = vpop.f32.mrf.mxu0
  %v623 = vpop.f32.mrf.mxu0
  %v624 = vpop.f32.mrf.mxu0
  %625 = vdwg.mxu0
  %v626 = vadd.f32 %v578, %v621
  %s627 = smul.u32 5, 2
  %s628 = smul.addr %s627, 8
  %s629 = scalar_lea.vmem [#allocation2], %s628
  %v630 = vld [vmem:[%s629 + $0x8] sm:$0xff]
  %v631 = vpack.c.bf16 %v573, %v573
  %633 = vrot.lane.b32.xlu0 %v631, 64
  %v634 = vpop.permute.xlu0 %633
  %v636 = vsel %vm219, %v634, 0
  %638 = vmatprep.subr.bf16.mxu0 0
  %639 = vmatpush1.bf16.msra.mxu0 0
  %640 = vmatprep.subr.bf16.mxu0 0
  %641 = vmatpush1.bf16.msra.mxu0 0
  %642 = vmatprep.subr.bf16.mxu0 0
  %643 = vmatpush1.bf16.msra.mxu0 0
  %644 = vmatprep.subr.bf16.mxu0 0
  %645 = vmatpush1.bf16.msra.mxu0 0
  %646 = vmatprep.subr.bf16.mxu0 0
  %647 = vmatpush1.bf16.msra.mxu0 0
  %648 = vmatprep.subr.bf16.mxu0 0
  %649 = vmatpush1.bf16.msra.mxu0 0
  %650 = vmatprep.subr.bf16.mxu0 0
  %651 = vmatpush1.bf16.msra.mxu0 %v273
  %652 = vmatprep.subr.bf16.mxu0 0
  %653 = vmatpush1.bf16.msra.mxu0 %v272
  %654 = vmatprep.subr.bf16.mxu0 0
  %655 = vmatpush2.bf16.msra.mxu0 0
  %656 = vmatprep.subr.bf16.mxu0 0
  %657 = vmatpush2.bf16.msra.mxu0 0
  %658 = vmatprep.subr.bf16.mxu0 0
  %659 = vmatpush2.bf16.msra.mxu0 0
  %660 = vmatprep.subr.bf16.mxu0 0
  %661 = vmatpush2.bf16.msra.mxu0 0
  %662 = vmatprep.subr.bf16.mxu0 0
  %663 = vmatpush2.bf16.msra.mxu0 0
  %664 = vmatprep.subr.bf16.mxu0 0
  %665 = vmatpush2.bf16.msra.mxu0 0
  %666 = vmatprep.subr.bf16.mxu0 0
  %667 = vmatpush2.bf16.msra.mxu0 0
  %668 = vmatprep.subr.bf16.mxu0 0
  %669 = vmatpush2.bf16.msra.mxu0 0
  %670 = vmatprep.mubr.bf16.mxu0 0
  %671 = vmatmul.mubr.bf16.gmra.mxu0 %v636
  %v672 = vpop.f32.mrf.mxu0
  %v673 = vadd.f32 0.0, %v672
  %v674 = vpop.f32.mrf.mxu0
  %v675 = vpop.f32.mrf.mxu0
  %v676 = vpop.f32.mrf.mxu0
  %677 = vdwg.mxu0
  %v678 = vadd.f32 %v630, %v673
  %v679 = vxor.u32 %v626, 2147483648
  %v680 = vmul.f32 %v679, 1.442695
  %v681 = vpow.pop %v680
  %v682 = vadd.f32 %v681, 1.0
  %v683 = vrcp.pop %v682
  %v684 = vmul.f32 1.0, %v683
  %v685 = vtanh.pop %v626
  %v686 = vxor.u32 %v678, 2147483648
  %v687 = vmul.f32 %v686, 1.442695
  %v688 = vpow.pop %v687
  %v689 = vadd.f32 %v688, 1.0
  %v690 = vrcp.pop %v689
  %v691 = vmul.f32 1.0, %v690
  %v692 = vtanh.pop %v678
  %v693 = vmul.f32 %v684, %v572
  %695 = vrot.lane.b32.xlu0 %v685, 32
  %v696 = vpop.permute.xlu0 %695
  %v698 = vmul.f32 %v684, %v696
  %700 = vrot.lane.b32.xlu0 %v698, 32
  %v701 = vpop.permute.xlu0 %700
  %v703 = vadd.f32 %v693, %v701
  %v704 = vtanh.pop %v703
  %706 = vrot.lane.b32.xlu0 %v704, 32
  %v707 = vpop.permute.xlu0 %706
  %v709 = vmul.f32 %v684, %v707
  %v710 = vmul.f32 %v691, %v574
  %712 = vrot.lane.b32.xlu0 %v692, 32
  %v713 = vpop.permute.xlu0 %712
  %v715 = vmul.f32 %v691, %v713
  %717 = vrot.lane.b32.xlu0 %v715, 32
  %v718 = vpop.permute.xlu0 %717
  %v720 = vadd.f32 %v710, %v718
  %v721 = vtanh.pop %v720
  %723 = vrot.lane.b32.xlu0 %v721, 32
  %v724 = vpop.permute.xlu0 %723
  %v726 = vmul.f32 %v691, %v724
  %vm727 = vcmp.gt.s32.totalorder %v202, 2
  %v728 = vsel %vm727, 1, 0
  %729 = vset.pattern.permute.xlu0 0
  %730 = vperm.xlu0 %729, %v728
  %v731 = vpop.permute.xlu0 %730
  %vm732 = vcmp.eq.s32.totalorder %v731, 1
  %vm733 = vcmp.gt.s32.totalorder %v202, 5
  %v734 = vsel %vm733, 1, 0
  %735 = vset.pattern.permute.xlu0 0
  %736 = vperm.xlu0 %735, %v734
  %v737 = vpop.permute.xlu0 %736
  %vm738 = vcmp.eq.s32.totalorder %v737, 1
  %v739 = vsel %vm732, %v709, 0.0
  %741 = vrot.lane.b32.xlu0 %v739, 64
  %v742 = vpop.permute.xlu0 %741
  %s744 = scalar_lea.vmem %s5, 16
  %745 = vst.msk [vmem:[%s744] sm:$0xff] %vm219, %v742
  %v746 = vsel %vm738, %v726, 0.0
  %748 = vrot.lane.b32.xlu0 %v746, 96
  %v749 = vpop.permute.xlu0 %748
  %s751 = scalar_lea.vmem %s5, 40
  %752 = vst.msk [vmem:[%s751] sm:$0xff] %vm389, %v749
  %v753 = vsel %vm732, %v709, %v571
  %v754 = vsel %vm732, %v703, %v572
  %v755 = vsel %vm738, %v726, %v573
  %v756 = vsel %vm738, %v720, %v574
  %s757 = smul.u32 3, 2
  %s758 = smul.addr %s757, 8
  %s759 = scalar_lea.vmem [#allocation2], %s758
  %v760 = vld [vmem:[%s759] sm:$0xff]
  %v761 = vpack.c.bf16 %v753, %v753
  %763 = vrot.lane.b32.xlu0 %v761, 64
  %v764 = vpop.permute.xlu0 %763
  %v766 = vsel %vm219, %v764, 0
  %768 = vmatprep.subr.bf16.mxu0 0
  %769 = vmatpush1.bf16.msra.mxu0 0
  %770 = vmatprep.subr.bf16.mxu0 0
  %771 = vmatpush1.bf16.msra.mxu0 0
  %772 = vmatprep.subr.bf16.mxu0 0
  %773 = vmatpush1.bf16.msra.mxu0 0
  %774 = vmatprep.subr.bf16.mxu0 0
  %775 = vmatpush1.bf16.msra.mxu0 0
  %776 = vmatprep.subr.bf16.mxu0 0
  %777 = vmatpush1.bf16.msra.mxu0 0
  %778 = vmatprep.subr.bf16.mxu0 0
  %779 = vmatpush1.bf16.msra.mxu0 0
  %780 = vmatprep.subr.bf16.mxu0 0
  %781 = vmatpush1.bf16.msra.mxu0 %v216
  %782 = vmatprep.subr.bf16.mxu0 0
  %783 = vmatpush1.bf16.msra.mxu0 %v215
  %784 = vmatprep.subr.bf16.mxu0 0
  %785 = vmatpush2.bf16.msra.mxu0 0
  %786 = vmatprep.subr.bf16.mxu0 0
  %787 = vmatpush2.bf16.msra.mxu0 0
  %788 = vmatprep.subr.bf16.mxu0 0
  %789 = vmatpush2.bf16.msra.mxu0 0
  %790 = vmatprep.subr.bf16.mxu0 0
  %791 = vmatpush2.bf16.msra.mxu0 0
  %792 = vmatprep.subr.bf16.mxu0 0
  %793 = vmatpush2.bf16.msra.mxu0 0
  %794 = vmatprep.subr.bf16.mxu0 0
  %795 = vmatpush2.bf16.msra.mxu0 0
  %796 = vmatprep.subr.bf16.mxu0 0
  %797 = vmatpush2.bf16.msra.mxu0 0
  %798 = vmatprep.subr.bf16.mxu0 0
  %799 = vmatpush2.bf16.msra.mxu0 0
  %800 = vmatprep.mubr.bf16.mxu0 0
  %801 = vmatmul.mubr.bf16.gmra.mxu0 %v766
  %v802 = vpop.f32.mrf.mxu0
  %v803 = vadd.f32 0.0, %v802
  %v804 = vpop.f32.mrf.mxu0
  %v805 = vpop.f32.mrf.mxu0
  %v806 = vpop.f32.mrf.mxu0
  %807 = vdwg.mxu0
  %v808 = vadd.f32 %v760, %v803
  %s809 = smul.u32 4, 2
  %s810 = smul.addr %s809, 8
  %s811 = scalar_lea.vmem [#allocation2], %s810
  %v812 = vld [vmem:[%s811 + $0x8] sm:$0xff]
  %v813 = vpack.c.bf16 %v755, %v755
  %815 = vrot.lane.b32.xlu0 %v813, 64
  %v816 = vpop.permute.xlu0 %815
  %v818 = vsel %vm219, %v816, 0
  %820 = vmatprep.subr.bf16.mxu0 0
  %821 = vmatpush1.bf16.msra.mxu0 0
  %822 = vmatprep.subr.bf16.mxu0 0
  %823 = vmatpush1.bf16.msra.mxu0 0
  %824 = vmatprep.subr.bf16.mxu0 0
  %825 = vmatpush1.bf16.msra.mxu0 0
  %826 = vmatprep.subr.bf16.mxu0 0
  %827 = vmatpush1.bf16.msra.mxu0 0
  %828 = vmatprep.subr.bf16.mxu0 0
  %829 = vmatpush1.bf16.msra.mxu0 0
  %830 = vmatprep.subr.bf16.mxu0 0
  %831 = vmatpush1.bf16.msra.mxu0 0
  %832 = vmatprep.subr.bf16.mxu0 0
  %833 = vmatpush1.bf16.msra.mxu0 %v273
  %834 = vmatprep.subr.bf16.mxu0 0
  %835 = vmatpush1.bf16.msra.mxu0 %v272
  %836 = vmatprep.subr.bf16.mxu0 0
  %837 = vmatpush2.bf16.msra.mxu0 0
  %838 = vmatprep.subr.bf16.mxu0 0
  %839 = vmatpush2.bf16.msra.mxu0 0
  %840 = vmatprep.subr.bf16.mxu0 0
  %841 = vmatpush2.bf16.msra.mxu0 0
  %842 = vmatprep.subr.bf16.mxu0 0
  %843 = vmatpush2.bf16.msra.mxu0 0
  %844 = vmatprep.subr.bf16.mxu0 0
  %845 = vmatpush2.bf16.msra.mxu0 0
  %846 = vmatprep.subr.bf16.mxu0 0
  %847 = vmatpush2.bf16.msra.mxu0 0
  %848 = vmatprep.subr.bf16.mxu0 0
  %849 = vmatpush2.bf16.msra.mxu0 0
  %850 = vmatprep.subr.bf16.mxu0 0
  %851 = vmatpush2.bf16.msra.mxu0 0
  %852 = vmatprep.mubr.bf16.mxu0 0
  %853 = vmatmul.mubr.bf16.gmra.mxu0 %v818
  %v854 = vpop.f32.mrf.mxu0
  %v855 = vadd.f32 0.0, %v854
  %v856 = vpop.f32.mrf.mxu0
  %v857 = vpop.f32.mrf.mxu0
  %v858 = vpop.f32.mrf.mxu0
  %859 = vdwg.mxu0
  %v860 = vadd.f32 %v812, %v855
  %v861 = vxor.u32 %v808, 2147483648
  %v862 = vmul.f32 %v861, 1.442695
  %v863 = vpow.pop %v862
  %v864 = vadd.f32 %v863, 1.0
  %v865 = vrcp.pop %v864
  %v866 = vmul.f32 1.0, %v865
  %v867 = vtanh.pop %v808
  %v868 = vxor.u32 %v860, 2147483648
  %v869 = vmul.f32 %v868, 1.442695
  %v870 = vpow.pop %v869
  %v871 = vadd.f32 %v870, 1.0
  %v872 = vrcp.pop %v871
  %v873 = vmul.f32 1.0, %v872
  %v874 = vtanh.pop %v860
  %v875 = vmul.f32 %v866, %v754
  %877 = vrot.lane.b32.xlu0 %v867, 32
  %v878 = vpop.permute.xlu0 %877
  %v880 = vmul.f32 %v866, %v878
  %882 = vrot.lane.b32.xlu0 %v880, 32
  %v883 = vpop.permute.xlu0 %882
  %v885 = vadd.f32 %v875, %v883
  %v886 = vtanh.pop %v885
  %888 = vrot.lane.b32.xlu0 %v886, 32
  %v889 = vpop.permute.xlu0 %888
  %v891 = vmul.f32 %v866, %v889
  %v892 = vmul.f32 %v873, %v756
  %894 = vrot.lane.b32.xlu0 %v874, 32
  %v895 = vpop.permute.xlu0 %894
  %v897 = vmul.f32 %v873, %v895
  %899 = vrot.lane.b32.xlu0 %v897, 32
  %v900 = vpop.permute.xlu0 %899
  %v902 = vadd.f32 %v892, %v900
  %v903 = vtanh.pop %v902
  %905 = vrot.lane.b32.xlu0 %v903, 32
  %v906 = vpop.permute.xlu0 %905
  %v908 = vmul.f32 %v873, %v906
  %vm909 = vcmp.gt.s32.totalorder %v202, 3
  %v910 = vsel %vm909, 1, 0
  %911 = vset.pattern.permute.xlu0 0
  %912 = vperm.xlu0 %911, %v910
  %v913 = vpop.permute.xlu0 %912
  %vm914 = vcmp.eq.s32.totalorder %v913, 1
  %vm915 = vcmp.gt.s32.totalorder %v202, 4
  %v916 = vsel %vm915, 1, 0
  %917 = vset.pattern.permute.xlu0 0
  %918 = vperm.xlu0 %917, %v916
  %v919 = vpop.permute.xlu0 %918
  %vm920 = vcmp.eq.s32.totalorder %v919, 1
  %v921 = vsel %vm914, %v891, 0.0
  %923 = vrot.lane.b32.xlu0 %v921, 64
  %v924 = vpop.permute.xlu0 %923
  %s926 = scalar_lea.vmem %s5, 24
  %927 = vst.msk [vmem:[%s926] sm:$0xff] %vm219, %v924
  %v928 = vsel %vm920, %v908, 0.0
  %930 = vrot.lane.b32.xlu0 %v928, 96
  %v931 = vpop.permute.xlu0 %930
  %s933 = scalar_lea.vmem %s5, 32
  %934 = vst.msk [vmem:[%s933] sm:$0xff] %vm389, %v931
  %v935 = vsel %vm914, %v891, %v753
  %v936 = vsel %vm914, %v885, %v754
  %v937 = vsel %vm920, %v908, %v755
  %v938 = vsel %vm920, %v902, %v756
  %v939 = vld [vmem:[%s811] sm:$0xff]
  %v940 = vpack.c.bf16 %v935, %v935
  %942 = vrot.lane.b32.xlu0 %v940, 64
  %v943 = vpop.permute.xlu0 %942
  %v945 = vsel %vm219, %v943, 0
  %947 = vmatprep.subr.bf16.mxu0 0
  %948 = vmatpush1.bf16.msra.mxu0 0
  %949 = vmatprep.subr.bf16.mxu0 0
  %950 = vmatpush1.bf16.msra.mxu0 0
  %951 = vmatprep.subr.bf16.mxu0 0
  %952 = vmatpush1.bf16.msra.mxu0 0
  %953 = vmatprep.subr.bf16.mxu0 0
  %954 = vmatpush1.bf16.msra.mxu0 0
  %955 = vmatprep.subr.bf16.mxu0 0
  %956 = vmatpush1.bf16.msra.mxu0 0
  %957 = vmatprep.subr.bf16.mxu0 0
  %958 = vmatpush1.bf16.msra.mxu0 0
  %959 = vmatprep.subr.bf16.mxu0 0
  %960 = vmatpush1.bf16.msra.mxu0 %v216
  %961 = vmatprep.subr.bf16.mxu0 0
  %962 = vmatpush1.bf16.msra.mxu0 %v215
  %963 = vmatprep.subr.bf16.mxu0 0
  %964 = vmatpush2.bf16.msra.mxu0 0
  %965 = vmatprep.subr.bf16.mxu0 0
  %966 = vmatpush2.bf16.msra.mxu0 0
  %967 = vmatprep.subr.bf16.mxu0 0
  %968 = vmatpush2.bf16.msra.mxu0 0
  %969 = vmatprep.subr.bf16.mxu0 0
  %970 = vmatpush2.bf16.msra.mxu0 0
  %971 = vmatprep.subr.bf16.mxu0 0
  %972 = vmatpush2.bf16.msra.mxu0 0
  %973 = vmatprep.subr.bf16.mxu0 0
  %974 = vmatpush2.bf16.msra.mxu0 0
  %975 = vmatprep.subr.bf16.mxu0 0
  %976 = vmatpush2.bf16.msra.mxu0 0
  %977 = vmatprep.subr.bf16.mxu0 0
  %978 = vmatpush2.bf16.msra.mxu0 0
  %979 = vmatprep.mubr.bf16.mxu0 0
  %980 = vmatmul.mubr.bf16.gmra.mxu0 %v945
  %v981 = vpop.f32.mrf.mxu0
  %v982 = vadd.f32 0.0, %v981
  %v983 = vpop.f32.mrf.mxu0
  %v984 = vpop.f32.mrf.mxu0
  %v985 = vpop.f32.mrf.mxu0
  %986 = vdwg.mxu0
  %v987 = vadd.f32 %v939, %v982
  %v988 = vld [vmem:[%s759 + $0x8] sm:$0xff]
  %v989 = vpack.c.bf16 %v937, %v937
  %991 = vrot.lane.b32.xlu0 %v989, 64
  %v992 = vpop.permute.xlu0 %991
  %v994 = vsel %vm219, %v992, 0
  %996 = vmatprep.subr.bf16.mxu0 0
  %997 = vmatpush1.bf16.msra.mxu0 0
  %998 = vmatprep.subr.bf16.mxu0 0
  %999 = vmatpush1.bf16.msra.mxu0 0
  %1000 = vmatprep.subr.bf16.mxu0 0
  %1001 = vmatpush1.bf16.msra.mxu0 0
  %1002 = vmatprep.subr.bf16.mxu0 0
  %1003 = vmatpush1.bf16.msra.mxu0 0
  %1004 = vmatprep.subr.bf16.mxu0 0
  %1005 = vmatpush1.bf16.msra.mxu0 0
  %1006 = vmatprep.subr.bf16.mxu0 0
  %1007 = vmatpush1.bf16.msra.mxu0 0
  %1008 = vmatprep.subr.bf16.mxu0 0
  %1009 = vmatpush1.bf16.msra.mxu0 %v273
  %1010 = vmatprep.subr.bf16.mxu0 0
  %1011 = vmatpush1.bf16.msra.mxu0 %v272
  %1012 = vmatprep.subr.bf16.mxu0 0
  %1013 = vmatpush2.bf16.msra.mxu0 0
  %1014 = vmatprep.subr.bf16.mxu0 0
  %1015 = vmatpush2.bf16.msra.mxu0 0
  %1016 = vmatprep.subr.bf16.mxu0 0
  %1017 = vmatpush2.bf16.msra.mxu0 0
  %1018 = vmatprep.subr.bf16.mxu0 0
  %1019 = vmatpush2.bf16.msra.mxu0 0
  %1020 = vmatprep.subr.bf16.mxu0 0
  %1021 = vmatpush2.bf16.msra.mxu0 0
  %1022 = vmatprep.subr.bf16.mxu0 0
  %1023 = vmatpush2.bf16.msra.mxu0 0
  %1024 = vmatprep.subr.bf16.mxu0 0
  %1025 = vmatpush2.bf16.msra.mxu0 0
  %1026 = vmatprep.subr.bf16.mxu0 0
  %1027 = vmatpush2.bf16.msra.mxu0 0
  %1028 = vmatprep.mubr.bf16.mxu0 0
  %1029 = vmatmul.mubr.bf16.gmra.mxu0 %v994
  %v1030 = vpop.f32.mrf.mxu0
  %v1031 = vadd.f32 0.0, %v1030
  %v1032 = vpop.f32.mrf.mxu0
  %v1033 = vpop.f32.mrf.mxu0
  %v1034 = vpop.f32.mrf.mxu0
  %1035 = vdwg.mxu0
  %v1036 = vadd.f32 %v988, %v1031
  %v1037 = vxor.u32 %v987, 2147483648
  %v1038 = vmul.f32 %v1037, 1.442695
  %v1039 = vpow.pop %v1038
  %v1040 = vadd.f32 %v1039, 1.0
  %v1041 = vrcp.pop %v1040
  %v1042 = vmul.f32 1.0, %v1041
  %v1043 = vtanh.pop %v987
  %v1044 = vxor.u32 %v1036, 2147483648
  %v1045 = vmul.f32 %v1044, 1.442695
  %v1046 = vpow.pop %v1045
  %v1047 = vadd.f32 %v1046, 1.0
  %v1048 = vrcp.pop %v1047
  %v1049 = vmul.f32 1.0, %v1048
  %v1050 = vtanh.pop %v1036
  %v1051 = vmul.f32 %v1042, %v936
  %1053 = vrot.lane.b32.xlu0 %v1043, 32
  %v1054 = vpop.permute.xlu0 %1053
  %v1056 = vmul.f32 %v1042, %v1054
  %1058 = vrot.lane.b32.xlu0 %v1056, 32
  %v1059 = vpop.permute.xlu0 %1058
  %v1061 = vadd.f32 %v1051, %v1059
  %v1062 = vtanh.pop %v1061
  %1064 = vrot.lane.b32.xlu0 %v1062, 32
  %v1065 = vpop.permute.xlu0 %1064
  %v1067 = vmul.f32 %v1042, %v1065
  %v1068 = vmul.f32 %v1049, %v938
  %1070 = vrot.lane.b32.xlu0 %v1050, 32
  %v1071 = vpop.permute.xlu0 %1070
  %v1073 = vmul.f32 %v1049, %v1071
  %1075 = vrot.lane.b32.xlu0 %v1073, 32
  %v1076 = vpop.permute.xlu0 %1075
  %v1078 = vadd.f32 %v1068, %v1076
  %v1079 = vtanh.pop %v1078
  %1081 = vrot.lane.b32.xlu0 %v1079, 32
  %v1082 = vpop.permute.xlu0 %1081
  %v1084 = vmul.f32 %v1049, %v1082
  %v1085 = vsel %vm920, %v1067, 0.0
  %1087 = vrot.lane.b32.xlu0 %v1085, 64
  %v1088 = vpop.permute.xlu0 %1087
  %1090 = vst.msk [vmem:[%s933] sm:$0xff] %vm219, %v1088
  %v1091 = vsel %vm914, %v1084, 0.0
  %1093 = vrot.lane.b32.xlu0 %v1091, 96
  %v1094 = vpop.permute.xlu0 %1093
  %1096 = vst.msk [vmem:[%s926] sm:$0xff] %vm389, %v1094
  %v1097 = vsel %vm920, %v1067, %v935
  %v1098 = vsel %vm920, %v1061, %v936
  %v1099 = vsel %vm914, %v1084, %v937
  %v1100 = vsel %vm914, %v1078, %v938
  %v1101 = vld [vmem:[%s629] sm:$0xff]
  %v1102 = vpack.c.bf16 %v1097, %v1097
  %1104 = vrot.lane.b32.xlu0 %v1102, 64
  %v1105 = vpop.permute.xlu0 %1104
  %v1107 = vsel %vm219, %v1105, 0
  %1109 = vmatprep.subr.bf16.mxu0 0
  %1110 = vmatpush1.bf16.msra.mxu0 0
  %1111 = vmatprep.subr.bf16.mxu0 0
  %1112 = vmatpush1.bf16.msra.mxu0 0
  %1113 = vmatprep.subr.bf16.mxu0 0
  %1114 = vmatpush1.bf16.msra.mxu0 0
  %1115 = vmatprep.subr.bf16.mxu0 0
  %1116 = vmatpush1.bf16.msra.mxu0 0
  %1117 = vmatprep.subr.bf16.mxu0 0
  %1118 = vmatpush1.bf16.msra.mxu0 0
  %1119 = vmatprep.subr.bf16.mxu0 0
  %1120 = vmatpush1.bf16.msra.mxu0 0
  %1121 = vmatprep.subr.bf16.mxu0 0
  %1122 = vmatpush1.bf16.msra.mxu0 %v216
  %1123 = vmatprep.subr.bf16.mxu0 0
  %1124 = vmatpush1.bf16.msra.mxu0 %v215
  %1125 = vmatprep.subr.bf16.mxu0 0
  %1126 = vmatpush2.bf16.msra.mxu0 0
  %1127 = vmatprep.subr.bf16.mxu0 0
  %1128 = vmatpush2.bf16.msra.mxu0 0
  %1129 = vmatprep.subr.bf16.mxu0 0
  %1130 = vmatpush2.bf16.msra.mxu0 0
  %1131 = vmatprep.subr.bf16.mxu0 0
  %1132 = vmatpush2.bf16.msra.mxu0 0
  %1133 = vmatprep.subr.bf16.mxu0 0
  %1134 = vmatpush2.bf16.msra.mxu0 0
  %1135 = vmatprep.subr.bf16.mxu0 0
  %1136 = vmatpush2.bf16.msra.mxu0 0
  %1137 = vmatprep.subr.bf16.mxu0 0
  %1138 = vmatpush2.bf16.msra.mxu0 0
  %1139 = vmatprep.subr.bf16.mxu0 0
  %1140 = vmatpush2.bf16.msra.mxu0 0
  %1141 = vmatprep.mubr.bf16.mxu0 0
  %1142 = vmatmul.mubr.bf16.gmra.mxu0 %v1107
  %v1143 = vpop.f32.mrf.mxu0
  %v1144 = vadd.f32 0.0, %v1143
  %v1145 = vpop.f32.mrf.mxu0
  %v1146 = vpop.f32.mrf.mxu0
  %v1147 = vpop.f32.mrf.mxu0
  %1148 = vdwg.mxu0
  %v1149 = vadd.f32 %v1101, %v1144
  %v1150 = vld [vmem:[%s577 + $0x8] sm:$0xff]
  %v1151 = vpack.c.bf16 %v1099, %v1099
  %1153 = vrot.lane.b32.xlu0 %v1151, 64
  %v1154 = vpop.permute.xlu0 %1153
  %v1156 = vsel %vm219, %v1154, 0
  %1158 = vmatprep.subr.bf16.mxu0 0
  %1159 = vmatpush1.bf16.msra.mxu0 0
  %1160 = vmatprep.subr.bf16.mxu0 0
  %1161 = vmatpush1.bf16.msra.mxu0 0
  %1162 = vmatprep.subr.bf16.mxu0 0
  %1163 = vmatpush1.bf16.msra.mxu0 0
  %1164 = vmatprep.subr.bf16.mxu0 0
  %1165 = vmatpush1.bf16.msra.mxu0 0
  %1166 = vmatprep.subr.bf16.mxu0 0
  %1167 = vmatpush1.bf16.msra.mxu0 0
  %1168 = vmatprep.subr.bf16.mxu0 0
  %1169 = vmatpush1.bf16.msra.mxu0 0
  %1170 = vmatprep.subr.bf16.mxu0 0
  %1171 = vmatpush1.bf16.msra.mxu0 %v273
  %1172 = vmatprep.subr.bf16.mxu0 0
  %1173 = vmatpush1.bf16.msra.mxu0 %v272
  %1174 = vmatprep.subr.bf16.mxu0 0
  %1175 = vmatpush2.bf16.msra.mxu0 0
  %1176 = vmatprep.subr.bf16.mxu0 0
  %1177 = vmatpush2.bf16.msra.mxu0 0
  %1178 = vmatprep.subr.bf16.mxu0 0
  %1179 = vmatpush2.bf16.msra.mxu0 0
  %1180 = vmatprep.subr.bf16.mxu0 0
  %1181 = vmatpush2.bf16.msra.mxu0 0
  %1182 = vmatprep.subr.bf16.mxu0 0
  %1183 = vmatpush2.bf16.msra.mxu0 0
  %1184 = vmatprep.subr.bf16.mxu0 0
  %1185 = vmatpush2.bf16.msra.mxu0 0
  %1186 = vmatprep.subr.bf16.mxu0 0
  %1187 = vmatpush2.bf16.msra.mxu0 0
  %1188 = vmatprep.subr.bf16.mxu0 0
  %1189 = vmatpush2.bf16.msra.mxu0 0
  %1190 = vmatprep.mubr.bf16.mxu0 0
  %1191 = vmatmul.mubr.bf16.gmra.mxu0 %v1156
  %v1192 = vpop.f32.mrf.mxu0
  %v1193 = vadd.f32 0.0, %v1192
  %v1194 = vpop.f32.mrf.mxu0
  %v1195 = vpop.f32.mrf.mxu0
  %v1196 = vpop.f32.mrf.mxu0
  %1197 = vdwg.mxu0
  %v1198 = vadd.f32 %v1150, %v1193
  %v1199 = vxor.u32 %v1149, 2147483648
  %v1200 = vmul.f32 %v1199, 1.442695
  %v1201 = vpow.pop %v1200
  %v1202 = vadd.f32 %v1201, 1.0
  %v1203 = vrcp.pop %v1202
  %v1204 = vmul.f32 1.0, %v1203
  %v1205 = vtanh.pop %v1149
  %v1206 = vxor.u32 %v1198, 2147483648
  %v1207 = vmul.f32 %v1206, 1.442695
  %v1208 = vpow.pop %v1207
  %v1209 = vadd.f32 %v1208, 1.0
  %v1210 = vrcp.pop %v1209
  %v1211 = vmul.f32 1.0, %v1210
  %v1212 = vtanh.pop %v1198
  %v1213 = vmul.f32 %v1204, %v1098
  %1215 = vrot.lane.b32.xlu0 %v1205, 32
  %v1216 = vpop.permute.xlu0 %1215
  %v1218 = vmul.f32 %v1204, %v1216
  %1220 = vrot.lane.b32.xlu0 %v1218, 32
  %v1221 = vpop.permute.xlu0 %1220
  %v1223 = vadd.f32 %v1213, %v1221
  %v1224 = vtanh.pop %v1223
  %1226 = vrot.lane.b32.xlu0 %v1224, 32
  %v1227 = vpop.permute.xlu0 %1226
  %v1229 = vmul.f32 %v1204, %v1227
  %v1230 = vmul.f32 %v1211, %v1100
  %1232 = vrot.lane.b32.xlu0 %v1212, 32
  %v1233 = vpop.permute.xlu0 %1232
  %v1235 = vmul.f32 %v1211, %v1233
  %1237 = vrot.lane.b32.xlu0 %v1235, 32
  %v1238 = vpop.permute.xlu0 %1237
  %v1240 = vadd.f32 %v1230, %v1238
  %v1241 = vtanh.pop %v1240
  %1243 = vrot.lane.b32.xlu0 %v1241, 32
  %v1244 = vpop.permute.xlu0 %1243
  %v1246 = vmul.f32 %v1211, %v1244
  %v1247 = vsel %vm738, %v1229, 0.0
  %1249 = vrot.lane.b32.xlu0 %v1247, 64
  %v1250 = vpop.permute.xlu0 %1249
  %1252 = vst.msk [vmem:[%s751] sm:$0xff] %vm219, %v1250
  %v1253 = vsel %vm732, %v1246, 0.0
  %1255 = vrot.lane.b32.xlu0 %v1253, 96
  %v1256 = vpop.permute.xlu0 %1255
  %1258 = vst.msk [vmem:[%s744] sm:$0xff] %vm389, %v1256
  %v1259 = vsel %vm738, %v1229, %v1097
  %v1260 = vsel %vm738, %v1223, %v1098
  %v1261 = vsel %vm732, %v1246, %v1099
  %v1262 = vsel %vm732, %v1240, %v1100
  %v1263 = vld [vmem:[%s447] sm:$0xff]
  %v1264 = vpack.c.bf16 %v1259, %v1259
  %1266 = vrot.lane.b32.xlu0 %v1264, 64
  %v1267 = vpop.permute.xlu0 %1266
  %v1269 = vsel %vm219, %v1267, 0
  %1271 = vmatprep.subr.bf16.mxu0 0
  %1272 = vmatpush1.bf16.msra.mxu0 0
  %1273 = vmatprep.subr.bf16.mxu0 0
  %1274 = vmatpush1.bf16.msra.mxu0 0
  %1275 = vmatprep.subr.bf16.mxu0 0
  %1276 = vmatpush1.bf16.msra.mxu0 0
  %1277 = vmatprep.subr.bf16.mxu0 0
  %1278 = vmatpush1.bf16.msra.mxu0 0
  %1279 = vmatprep.subr.bf16.mxu0 0
  %1280 = vmatpush1.bf16.msra.mxu0 0
  %1281 = vmatprep.subr.bf16.mxu0 0
  %1282 = vmatpush1.bf16.msra.mxu0 0
  %1283 = vmatprep.subr.bf16.mxu0 0
  %1284 = vmatpush1.bf16.msra.mxu0 %v216
  %1285 = vmatprep.subr.bf16.mxu0 0
  %1286 = vmatpush1.bf16.msra.mxu0 %v215
  %1287 = vmatprep.subr.bf16.mxu0 0
  %1288 = vmatpush2.bf16.msra.mxu0 0
  %1289 = vmatprep.subr.bf16.mxu0 0
  %1290 = vmatpush2.bf16.msra.mxu0 0
  %1291 = vmatprep.subr.bf16.mxu0 0
  %1292 = vmatpush2.bf16.msra.mxu0 0
  %1293 = vmatprep.subr.bf16.mxu0 0
  %1294 = vmatpush2.bf16.msra.mxu0 0
  %1295 = vmatprep.subr.bf16.mxu0 0
  %1296 = vmatpush2.bf16.msra.mxu0 0
  %1297 = vmatprep.subr.bf16.mxu0 0
  %1298 = vmatpush2.bf16.msra.mxu0 0
  %1299 = vmatprep.subr.bf16.mxu0 0
  %1300 = vmatpush2.bf16.msra.mxu0 0
  %1301 = vmatprep.subr.bf16.mxu0 0
  %1302 = vmatpush2.bf16.msra.mxu0 0
  %1303 = vmatprep.mubr.bf16.mxu0 0
  %1304 = vmatmul.mubr.bf16.gmra.mxu0 %v1269
  %v1305 = vpop.f32.mrf.mxu0
  %v1306 = vadd.f32 0.0, %v1305
  %v1307 = vpop.f32.mrf.mxu0
  %v1308 = vpop.f32.mrf.mxu0
  %v1309 = vpop.f32.mrf.mxu0
  %1310 = vdwg.mxu0
  %v1311 = vadd.f32 %v1263, %v1306
  %v1312 = vld [vmem:[%s395 + $0x8] sm:$0xff]
  %v1313 = vpack.c.bf16 %v1261, %v1261
  %1315 = vrot.lane.b32.xlu0 %v1313, 64
  %v1316 = vpop.permute.xlu0 %1315
  %v1318 = vsel %vm219, %v1316, 0
  %1320 = vmatprep.subr.bf16.mxu0 0
  %1321 = vmatpush1.bf16.msra.mxu0 0
  %1322 = vmatprep.subr.bf16.mxu0 0
  %1323 = vmatpush1.bf16.msra.mxu0 0
  %1324 = vmatprep.subr.bf16.mxu0 0
  %1325 = vmatpush1.bf16.msra.mxu0 0
  %1326 = vmatprep.subr.bf16.mxu0 0
  %1327 = vmatpush1.bf16.msra.mxu0 0
  %1328 = vmatprep.subr.bf16.mxu0 0
  %1329 = vmatpush1.bf16.msra.mxu0 0
  %1330 = vmatprep.subr.bf16.mxu0 0
  %1331 = vmatpush1.bf16.msra.mxu0 0
  %1332 = vmatprep.subr.bf16.mxu0 0
  %1333 = vmatpush1.bf16.msra.mxu0 %v273
  %1334 = vmatprep.subr.bf16.mxu0 0
  %1335 = vmatpush1.bf16.msra.mxu0 %v272
  %1336 = vmatprep.subr.bf16.mxu0 0
  %1337 = vmatpush2.bf16.msra.mxu0 0
  %1338 = vmatprep.subr.bf16.mxu0 0
  %1339 = vmatpush2.bf16.msra.mxu0 0
  %1340 = vmatprep.subr.bf16.mxu0 0
  %1341 = vmatpush2.bf16.msra.mxu0 0
  %1342 = vmatprep.subr.bf16.mxu0 0
  %1343 = vmatpush2.bf16.msra.mxu0 0
  %1344 = vmatprep.subr.bf16.mxu0 0
  %1345 = vmatpush2.bf16.msra.mxu0 0
  %1346 = vmatprep.subr.bf16.mxu0 0
  %1347 = vmatpush2.bf16.msra.mxu0 0
  %1348 = vmatprep.subr.bf16.mxu0 0
  %1349 = vmatpush2.bf16.msra.mxu0 0
  %1350 = vmatprep.subr.bf16.mxu0 0
  %1351 = vmatpush2.bf16.msra.mxu0 0
  %1352 = vmatprep.mubr.bf16.mxu0 0
  %1353 = vmatmul.mubr.bf16.gmra.mxu0 %v1318
  %v1354 = vpop.f32.mrf.mxu0
  %v1355 = vadd.f32 0.0, %v1354
  %v1356 = vpop.f32.mrf.mxu0
  %v1357 = vpop.f32.mrf.mxu0
  %v1358 = vpop.f32.mrf.mxu0
  %1359 = vdwg.mxu0
  %v1360 = vadd.f32 %v1312, %v1355
  %v1361 = vxor.u32 %v1311, 2147483648
  %v1362 = vmul.f32 %v1361, 1.442695
  %v1363 = vpow.pop %v1362
  %v1364 = vadd.f32 %v1363, 1.0
  %v1365 = vrcp.pop %v1364
  %v1366 = vmul.f32 1.0, %v1365
  %v1367 = vtanh.pop %v1311
  %v1368 = vxor.u32 %v1360, 2147483648
  %v1369 = vmul.f32 %v1368, 1.442695
  %v1370 = vpow.pop %v1369
  %v1371 = vadd.f32 %v1370, 1.0
  %v1372 = vrcp.pop %v1371
  %v1373 = vmul.f32 1.0, %v1372
  %v1374 = vtanh.pop %v1360
  %v1375 = vmul.f32 %v1366, %v1260
  %1377 = vrot.lane.b32.xlu0 %v1367, 32
  %v1378 = vpop.permute.xlu0 %1377
  %v1380 = vmul.f32 %v1366, %v1378
  %1382 = vrot.lane.b32.xlu0 %v1380, 32
  %v1383 = vpop.permute.xlu0 %1382
  %v1385 = vadd.f32 %v1375, %v1383
  %v1386 = vtanh.pop %v1385
  %1388 = vrot.lane.b32.xlu0 %v1386, 32
  %v1389 = vpop.permute.xlu0 %1388
  %v1391 = vmul.f32 %v1366, %v1389
  %v1392 = vmul.f32 %v1373, %v1262
  %1394 = vrot.lane.b32.xlu0 %v1374, 32
  %v1395 = vpop.permute.xlu0 %1394
  %v1397 = vmul.f32 %v1373, %v1395
  %1399 = vrot.lane.b32.xlu0 %v1397, 32
  %v1400 = vpop.permute.xlu0 %1399
  %v1402 = vadd.f32 %v1392, %v1400
  %v1403 = vtanh.pop %v1402
  %1405 = vrot.lane.b32.xlu0 %v1403, 32
  %v1406 = vpop.permute.xlu0 %1405
  %v1408 = vmul.f32 %v1373, %v1406
  %v1409 = vsel %vm556, %v1391, 0.0
  %1411 = vrot.lane.b32.xlu0 %v1409, 64
  %v1412 = vpop.permute.xlu0 %1411
  %1414 = vst.msk [vmem:[%s569] sm:$0xff] %vm219, %v1412
  %v1415 = vsel %vm550, %v1408, 0.0
  %1417 = vrot.lane.b32.xlu0 %v1415, 96
  %v1418 = vpop.permute.xlu0 %1417
  %1420 = vst.msk [vmem:[%s562] sm:$0xff] %vm389, %v1418
  %v1421 = vsel %vm556, %v1391, %v1259
  %v1422 = vsel %vm556, %v1385, %v1260
  %v1423 = vsel %vm550, %v1408, %v1261
  %v1424 = vsel %vm550, %v1402, %v1262
  %v1425 = vld [vmem:[%s266] sm:$0xff]
  %v1426 = vpack.c.bf16 %v1421, %v1421
  %1428 = vrot.lane.b32.xlu0 %v1426, 64
  %v1429 = vpop.permute.xlu0 %1428
  %v1431 = vsel %vm219, %v1429, 0
  %1433 = vmatprep.subr.bf16.mxu0 0
  %1434 = vmatpush1.bf16.msra.mxu0 0
  %1435 = vmatprep.subr.bf16.mxu0 0
  %1436 = vmatpush1.bf16.msra.mxu0 0
  %1437 = vmatprep.subr.bf16.mxu0 0
  %1438 = vmatpush1.bf16.msra.mxu0 0
  %1439 = vmatprep.subr.bf16.mxu0 0
  %1440 = vmatpush1.bf16.msra.mxu0 0
  %1441 = vmatprep.subr.bf16.mxu0 0
  %1442 = vmatpush1.bf16.msra.mxu0 0
  %1443 = vmatprep.subr.bf16.mxu0 0
  %1444 = vmatpush1.bf16.msra.mxu0 0
  %1445 = vmatprep.subr.bf16.mxu0 0
  %1446 = vmatpush1.bf16.msra.mxu0 %v216
  %1447 = vmatprep.subr.bf16.mxu0 0
  %1448 = vmatpush1.bf16.msra.mxu0 %v215
  %1449 = vmatprep.subr.bf16.mxu0 0
  %1450 = vmatpush2.bf16.msra.mxu0 0
  %1451 = vmatprep.subr.bf16.mxu0 0
  %1452 = vmatpush2.bf16.msra.mxu0 0
  %1453 = vmatprep.subr.bf16.mxu0 0
  %1454 = vmatpush2.bf16.msra.mxu0 0
  %1455 = vmatprep.subr.bf16.mxu0 0
  %1456 = vmatpush2.bf16.msra.mxu0 0
  %1457 = vmatprep.subr.bf16.mxu0 0
  %1458 = vmatpush2.bf16.msra.mxu0 0
  %1459 = vmatprep.subr.bf16.mxu0 0
  %1460 = vmatpush2.bf16.msra.mxu0 0
  %1461 = vmatprep.subr.bf16.mxu0 0
  %1462 = vmatpush2.bf16.msra.mxu0 0
  %1463 = vmatprep.subr.bf16.mxu0 0
  %1464 = vmatpush2.bf16.msra.mxu0 0
  %1465 = vmatprep.mubr.bf16.mxu0 0
  %1466 = vmatmul.mubr.bf16.gmra.mxu0 %v1431
  %v1467 = vpop.f32.mrf.mxu0
  %v1468 = vadd.f32 0.0, %v1467
  %v1469 = vpop.f32.mrf.mxu0
  %v1470 = vpop.f32.mrf.mxu0
  %v1471 = vpop.f32.mrf.mxu0
  %1472 = vdwg.mxu0
  %v1473 = vadd.f32 %v1425, %v1468
  %v1474 = vld [vmem:[%s205 + $0x8] sm:$0xff]
  %v1475 = vpack.c.bf16 %v1423, %v1423
  %1477 = vrot.lane.b32.xlu0 %v1475, 64
  %v1478 = vpop.permute.xlu0 %1477
  %v1480 = vsel %vm219, %v1478, 0
  %1482 = vmatprep.subr.bf16.mxu0 0
  %1483 = vmatpush1.bf16.msra.mxu0 0
  %1484 = vmatprep.subr.bf16.mxu0 0
  %1485 = vmatpush1.bf16.msra.mxu0 0
  %1486 = vmatprep.subr.bf16.mxu0 0
  %1487 = vmatpush1.bf16.msra.mxu0 0
  %1488 = vmatprep.subr.bf16.mxu0 0
  %1489 = vmatpush1.bf16.msra.mxu0 0
  %1490 = vmatprep.subr.bf16.mxu0 0
  %1491 = vmatpush1.bf16.msra.mxu0 0
  %1492 = vmatprep.subr.bf16.mxu0 0
  %1493 = vmatpush1.bf16.msra.mxu0 0
  %1494 = vmatprep.subr.bf16.mxu0 0
  %1495 = vmatpush1.bf16.msra.mxu0 %v273
  %1496 = vmatprep.subr.bf16.mxu0 0
  %1497 = vmatpush1.bf16.msra.mxu0 %v272
  %1498 = vmatprep.subr.bf16.mxu0 0
  %1499 = vmatpush2.bf16.msra.mxu0 0
  %1500 = vmatprep.subr.bf16.mxu0 0
  %1501 = vmatpush2.bf16.msra.mxu0 0
  %1502 = vmatprep.subr.bf16.mxu0 0
  %1503 = vmatpush2.bf16.msra.mxu0 0
  %1504 = vmatprep.subr.bf16.mxu0 0
  %1505 = vmatpush2.bf16.msra.mxu0 0
  %1506 = vmatprep.subr.bf16.mxu0 0
  %1507 = vmatpush2.bf16.msra.mxu0 0
  %1508 = vmatprep.subr.bf16.mxu0 0
  %1509 = vmatpush2.bf16.msra.mxu0 0
  %1510 = vmatprep.subr.bf16.mxu0 0
  %1511 = vmatpush2.bf16.msra.mxu0 0
  %1512 = vmatprep.subr.bf16.mxu0 0
  %1513 = vmatpush2.bf16.msra.mxu0 0
  %1514 = vmatprep.mubr.bf16.mxu0 0
  %1515 = vmatmul.mubr.bf16.gmra.mxu0 %v1480
  %v1516 = vpop.f32.mrf.mxu0
  %v1517 = vadd.f32 0.0, %v1516
  %v1518 = vpop.f32.mrf.mxu0
  %v1519 = vpop.f32.mrf.mxu0
  %v1520 = vpop.f32.mrf.mxu0
  %1521 = vdwg.mxu0
  %v1522 = vadd.f32 %v1474, %v1517
  %v1523 = vxor.u32 %v1473, 2147483648
  %v1524 = vmul.f32 %v1523, 1.442695
  %v1525 = vpow.pop %v1524
  %v1526 = vadd.f32 %v1525, 1.0
  %v1527 = vrcp.pop %v1526
  %v1528 = vmul.f32 1.0, %v1527
  %v1529 = vtanh.pop %v1473
  %v1530 = vxor.u32 %v1522, 2147483648
  %v1531 = vmul.f32 %v1530, 1.442695
  %v1532 = vpow.pop %v1531
  %v1533 = vadd.f32 %v1532, 1.0
  %v1534 = vrcp.pop %v1533
  %v1535 = vmul.f32 1.0, %v1534
  %v1536 = vtanh.pop %v1522
  %v1537 = vmul.f32 %v1528, %v1422
  %1539 = vrot.lane.b32.xlu0 %v1529, 32
  %v1540 = vpop.permute.xlu0 %1539
  %v1542 = vmul.f32 %v1528, %v1540
  %1544 = vrot.lane.b32.xlu0 %v1542, 32
  %v1545 = vpop.permute.xlu0 %1544
  %v1547 = vadd.f32 %v1537, %v1545
  %v1548 = vtanh.pop %v1547
  %1550 = vrot.lane.b32.xlu0 %v1548, 32
  %v1551 = vpop.permute.xlu0 %1550
  %v1553 = vmul.f32 %v1528, %v1551
  %v1554 = vmul.f32 %v1535, %v1424
  %1556 = vrot.lane.b32.xlu0 %v1536, 32
  %v1557 = vpop.permute.xlu0 %1556
  %v1559 = vmul.f32 %v1535, %v1557
  %1561 = vrot.lane.b32.xlu0 %v1559, 32
  %v1562 = vpop.permute.xlu0 %1561
  %v1564 = vadd.f32 %v1554, %v1562
  %v1565 = vtanh.pop %v1564
  %1567 = vrot.lane.b32.xlu0 %v1565, 32
  %v1568 = vpop.permute.xlu0 %1567
  %v1570 = vmul.f32 %v1535, %v1568
  %v1571 = vsel %vm376, %v1553, 0.0
  %1573 = vrot.lane.b32.xlu0 %v1571, 64
  %v1574 = vpop.permute.xlu0 %1573
  %1576 = vst.msk [vmem:[%s388] sm:$0xff] %vm219, %v1574
  %v1577 = vsel %vm370, %v1570, 0.0
  %1579 = vrot.lane.b32.xlu0 %v1577, 96
  %v1580 = vpop.permute.xlu0 %1579
  %1582 = vst.msk [vmem:[%s5] sm:$0xff] %vm389, %v1580
  %v1583 = vsel %vm376, %v1553, %v1421
  %v1584 = vsel %vm376, %v1547, %v1422
  %v1585 = vsel %vm370, %v1570, %v1423
  %v1586 = vsel %vm370, %v1564, %v1424
  %1588 = vrot.lane.b32.xlu0 %v1583, 64
  %v1589 = vpop.permute.xlu0 %1588
  %1591 = vst.msk [vmem:[%s6] sm:$0xff] %vm219, %v1589
  %1593 = vrot.lane.b32.xlu0 %v1585, 96
  %v1594 = vpop.permute.xlu0 %1593
  %1596 = vst.msk [vmem:[%s6] sm:$0xff] %vm389, %v1594
  %1598 = vrot.lane.b32.xlu0 %v1584, 96
  %v1599 = vpop.permute.xlu0 %1598
  %1601 = vst.msk [vmem:[%s7] sm:$0xff] %vm219, %v1599
  %1602 = vst.msk [vmem:[%s7] sm:$0xff] %vm389, %v1586
  // Predicated region
  $region22: #{encoder_forward.3} parent=0 // pred_check
    _
  $region23: #{encoder_forward.3} parent=0 // pred_check_branch
    %1604 = sbr.rel (0) target = $region25
  $region24: #{encoder_forward.3} parent=0 // pred_region
    _
  $region25: #{encoder_forward.3} parent=0 // pred_fallthru
    _
  // Predicated region
  $region26: #{encoder_forward.3} parent=0 // pred_check
    _
  $region27: #{encoder_forward.3} parent=0 // pred_check_branch
    %1606 = sbr.rel (0) target = $region29
  $region28: #{encoder_forward.3} parent=0 // pred_region
    _
  $region29: #{encoder_forward.3} parent=0 // pred_fallthru
    _
  // Predicated region
  $region30: #{encoder_forward.3} parent=0 // pred_check
    _
  $region31: #{encoder_forward.3} parent=0 // pred_check_branch
    %1608 = sbr.rel (0) target = $region33
  $region32: #{encoder_forward.3} parent=0 // pred_region
    _
  $region33: #{encoder_forward.3} parent=0 // pred_fallthru
    _
  // Predicated region
  $region34: #{encoder_forward.3} parent=0 // pred_check
    _
  $region35: #{encoder_forward.3} parent=0 // pred_check_branch
    %1610 = sbr.rel (0) target = $region37
  $region36: #{encoder_forward.3} parent=0 // pred_region
    _
  $region37: #{encoder_forward.3} parent=0 // pred_fallthru
    _
  // Predicated region
  $region38: #{encoder_forward.3} parent=0 // pred_check
    _
  $region39: #{encoder_forward.3} parent=0 // pred_check_branch
    %1612 = sbr.rel (0) target = $region41
  $region40: #{encoder_forward.3} parent=0 // pred_region
    _
  $region41: #{encoder_forward.3} parent=0 // pred_fallthru
    _
  // Predicated region
  $region42: #{encoder_forward.3} parent=0 // pred_check
    _
  $region43: #{encoder_forward.3} parent=0 // pred_check_branch
    %1614 = sbr.rel (0) target = $region45
  $region44: #{encoder_forward.3} parent=0 // pred_region
    _
  $region45: #{encoder_forward.3} parent=0 // pred_fallthru
    _

</llo_original>
